<compile_context>
chip_gen: v7x
topology: tpu7x:2x2x1
jax: 0.10.0
libtpu: 0.0.40
codegen_flags: <defaults>
</compile_context>

<pallas_src>
import functools

import jax
import jax.numpy as jnp
from jax.experimental import pallas as pl
from jax.experimental.pallas import tpu as pltpu


def _round_up(x, m):
    return (x + m - 1) // m * m


# --------------------------- Pallas kernel ---------------------------------
def _mm_bias_act_kernel(x_ref, w_ref, b_ref, o_ref, acc_ref, *, relu):
    """Tiled GEMM with fused bias + optional ReLU.

    x_ref: (tm, tk) bf16   w_ref: (tk, tn) bf16   b_ref: (1, tn) f32
    o_ref: (tm, tn) out dtype    acc_ref: VMEM scratch (tm, tn) f32
    """
    k = pl.program_id(2)

    @pl.when(k == 0)
    def _():
        acc_ref[...] = jnp.zeros_like(acc_ref)

    acc_ref[...] += jnp.dot(x_ref[...], w_ref[...],
                            preferred_element_type=jnp.float32)

    @pl.when(k == pl.num_programs(2) - 1)
    def _():
        out = acc_ref[...] + b_ref[...]
        if relu:
            out = jnp.maximum(out, 0.0)
        o_ref[...] = out.astype(o_ref.dtype)


def _matmul_bias_act(lhs, rhs, bias, *, relu, out_dtype=jnp.float32):
    """out = act(lhs @ rhs + bias), lhs:(R,K) rhs:(K,C) bias:(C,) -> (R,C)."""
    R, K = lhs.shape
    _, C = rhs.shape

    Cp = _round_up(C, 128)
    tm = min(512, _round_up(R, 8))
    tn = min(256, Cp)
    tk = min(512, _round_up(K, 128))

    Rp = _round_up(R, tm)
    Kp = _round_up(K, tk)
    Cp = _round_up(Cp, tn)

    lhs_p = jnp.pad(lhs.astype(jnp.bfloat16), ((0, Rp - R), (0, Kp - K)))
    rhs_p = jnp.pad(rhs.astype(jnp.bfloat16), ((0, Kp - K), (0, Cp - C)))
    bias_p = jnp.pad(bias.astype(jnp.float32), (0, Cp - C)).reshape(1, Cp)

    grid = (Rp // tm, Cp // tn, Kp // tk)

    flops = 2 * Rp * Kp * Cp
    bytes_accessed = (Rp * Kp * 2                      # lhs (bf16), read once
                      + grid[0] * Kp * Cp * 2          # rhs re-read per row tile
                      + Rp * Cp * jnp.dtype(out_dtype).itemsize   # output
                      + Cp * 4)                        # bias

    kernel = functools.partial(_mm_bias_act_kernel, relu=relu)

    out = pl.pallas_call(
        kernel,
        out_shape=jax.ShapeDtypeStruct((Rp, Cp), out_dtype),
        grid_spec=pltpu.PrefetchScalarGridSpec(
            num_scalar_prefetch=0,
            grid=grid,
            in_specs=[
                pl.BlockSpec((tm, tk), lambda i, j, k: (i, k)),
                pl.BlockSpec((tk, tn), lambda i, j, k: (k, j)),
                pl.BlockSpec((1, tn), lambda i, j, k: (0, j)),
            ],
            out_specs=pl.BlockSpec((tm, tn), lambda i, j, k: (i, j)),
            scratch_shapes=[pltpu.VMEM((tm, tn), jnp.float32)],
        ),
        compiler_params=pltpu.CompilerParams(
            dimension_semantics=("parallel", "parallel", "arbitrary"),
            vmem_limit_bytes=32 * 1024 * 1024,
        ),
        cost_estimate=pl.CostEstimate(
            flops=flops, transcendentals=0, bytes_accessed=int(bytes_accessed)),
    )(lhs_p, rhs_p, bias_p)

    return out[:R, :C]


# --------------------------- conv layer wrapper -----------------------------
def conv2d_pallas(x_nhwc, w, b, *, stride, relu, out_dtype=jnp.float32):
    """Conv2d (padding = kernel_size // 2, like compressai conv/conv3x3), NHWC.

    Lowered as: im2col (JAX layout glue) -> one tiled Pallas GEMM with fused
    bias + ReLU.
    """
    B, H, W, Cin = x_nhwc.shape
    KH, KW, _, Cout = w.shape
    pad = KH // 2
    Ho = (H + 2 * pad - KH) // stride + 1
    Wo = (W + 2 * pad - KW) // stride + 1

    xp = jnp.pad(x_nhwc, ((0, 0), (pad, pad), (pad, pad), (0, 0)))

    # im2col: K ordered as (kh, kw, cin) to match w.reshape(KH*KW*Cin, Cout).
    cols = []
    for kh in range(KH):
        for kw in range(KW):
            patch = jax.lax.slice(
                xp,
                (0, kh, kw, 0),
                (B, kh + (Ho - 1) * stride + 1, kw + (Wo - 1) * stride + 1, Cin),
                (1, stride, stride, 1))
            cols.append(patch)                      # (B, Ho, Wo, Cin)
    lhs = jnp.concatenate(cols, axis=-1).reshape(B * Ho * Wo, KH * KW * Cin)
    rhs = w.reshape(KH * KW * Cin, Cout)

    out2d = _matmul_bias_act(lhs, rhs, b, relu=relu, out_dtype=out_dtype)
    return out2d.reshape(B, Ho, Wo, Cout)


# --------------------------- model -----------------------------------------
def init_params(key, M, N):
    ks = jax.random.split(key, 6)

    def w_init(k, shape):
        fan_in = shape[0] * shape[1] * shape[2]
        return jax.random.normal(k, shape, jnp.float32) / jnp.sqrt(fan_in)

    return {
        "w1": w_init(ks[0], (3, 3, M, N)),
        "b1": 0.1 * jax.random.normal(ks[1], (N,), jnp.float32),
        "w2": w_init(ks[2], (5, 5, N, N)),
        "b2": 0.1 * jax.random.normal(ks[3], (N,), jnp.float32),
        "w3": w_init(ks[4], (5, 5, N, N)),
        "b3": 0.1 * jax.random.normal(ks[5], (N,), jnp.float32),
    }


@jax.jit
def hyper_analysis_ex(x_nchw, params):
    """Forward pass matching HyperAnalysisEX.forward (input/output NCHW)."""
    x = jnp.transpose(x_nchw, (0, 2, 3, 1))                       # -> NHWC
    # Intermediates stored bf16: they are re-cast to bf16 for the next GEMM
    # anyway, so the rounding point is identical but HBM traffic is halved.
    x = conv2d_pallas(x, params["w1"], params["b1"], stride=1, relu=True,
                      out_dtype=jnp.bfloat16)
    x = conv2d_pallas(x, params["w2"], params["b2"], stride=2, relu=True,
                      out_dtype=jnp.bfloat16)
    x = conv2d_pallas(x, params["w3"], params["b3"], stride=2, relu=False,
                      out_dtype=jnp.float32)
    return jnp.transpose(x, (0, 3, 1, 2))                         # -> NCHW


# ---------- pure-JAX reference (bf16 matmul inputs, f32 accumulation) -------
def _conv_ref(x_nchw, w, b, stride, relu):
    pad = w.shape[0] // 2
    out = jax.lax.conv_general_dilated(
        x_nchw.astype(jnp.bfloat16), w.astype(jnp.bfloat16),
        window_strides=(stride, stride),
        padding=[(pad, pad), (pad, pad)],
        dimension_numbers=("NCHW", "HWIO", "NCHW"),
        preferred_element_type=jnp.float32)
    out = out + b.reshape(1, -1, 1, 1)
    return jnp.maximum(out, 0.0) if relu else out


def hyper_analysis_ex_ref(x_nchw, params):
    x = _conv_ref(x_nchw, params["w1"], params["b1"], 1, True)
    x = _conv_ref(x, params["w2"], params["b2"], 2, True)
    x = _conv_ref(x, params["w3"], params["b3"], 2, False)
    return x


if __name__ == "__main__":
    B, M, N, H, W = 2, 8, 16, 32, 32   # small synthetic shapes (M -> N channels)

    key = jax.random.PRNGKey(0)
    kx, kp = jax.random.split(key)
    x = jax.random.normal(kx, (B, M, H, W), jnp.float32)   # NCHW, like PyTorch
    params = init_params(kp, M, N)

    y = hyper_analysis_ex(x, params)
    y = jax.block_until_ready(y)

    assert y.shape == (B, N, H // 4, W // 4), y.shape
    assert y.dtype == jnp.float32, y.dtype

    y_ref = hyper_analysis_ex_ref(x, params)
    assert jnp.allclose(y, y_ref, rtol=1e-2, atol=1e-2), \
        float(jnp.max(jnp.abs(y - y_ref)))

    print("KERNEL_OK")
</pallas_src>

<mosaic_0001>
module attributes {stable_mosaic.version = 11 : i64} {
  func.func @_mm_bias_act_kernel(%arg0: i32, %arg1: i32, %arg2: i32, %arg3: memref<512x128xbf16, #tpu.memory_space<vmem>>, %arg4: memref<128x128xbf16, #tpu.memory_space<vmem>>, %arg5: memref<1x128xf32, #tpu.memory_space<vmem>>, %arg6: memref<512x128xbf16, #tpu.memory_space<vmem>>, %arg7: memref<512x128xf32, #tpu.memory_space<vmem>>) attributes {dimension_semantics = [#tpu.dimension_semantics<parallel>, #tpu.dimension_semantics<parallel>, #tpu.dimension_semantics<arbitrary>], iteration_bounds = array<i64: 4, 1, 1>, scalar_prefetch = 0 : i64, scratch_operands = 1 : i64, tpu.core_type = #tpu.core_type<tc>, window_params = [{transform_indices = @transform_0, window_bounds = array<i64: 512, 128>}, {transform_indices = @transform_1, window_bounds = array<i64: 128, 128>}, {transform_indices = @transform_2, window_bounds = array<i64: 1, 128>}, {transform_indices = @transform_3, window_bounds = array<i64: 512, 128>}]} {
    %c0_i32 = arith.constant 0 : i32
    %0 = arith.cmpi eq, %arg2, %c0_i32 : i32
    %1 = arith.extui %0 : i1 to i32
    %c0_i32_0 = arith.constant 0 : i32
    %2 = arith.cmpi ne, %1, %c0_i32_0 : i32
    scf.if %2 {
      %cst_10 = arith.constant 0.000000e+00 : f32
      %12 = vector.broadcast %cst_10 : f32 to vector<512x128xf32>
      %c0_11 = arith.constant 0 : index
      %c0_12 = arith.constant 0 : index
      %13 = vector.load %arg7[%c0_11, %c0_12] : memref<512x128xf32, #tpu.memory_space<vmem>>, vector<512x128xf32>
      tpu.vector_store %arg7[%c0_11, %c0_12], %12 {strides = array<i32>} : memref<512x128xf32, #tpu.memory_space<vmem>>, vector<512x128xf32>,
    } else {
    }
    %c0 = arith.constant 0 : index
    %c0_1 = arith.constant 0 : index
    %3 = vector.load %arg7[%c0, %c0_1] : memref<512x128xf32, #tpu.memory_space<vmem>>, vector<512x128xf32>
    %c0_2 = arith.constant 0 : index
    %c0_3 = arith.constant 0 : index
    %4 = vector.load %arg3[%c0_2, %c0_3] : memref<512x128xbf16, #tpu.memory_space<vmem>>, vector<512x128xbf16>
    %c0_4 = arith.constant 0 : index
    %c0_5 = arith.constant 0 : index
    %5 = vector.load %arg4[%c0_4, %c0_5] : memref<128x128xbf16, #tpu.memory_space<vmem>>, vector<128x128xbf16>
    %cst = arith.constant dense<0.000000e+00> : vector<512x128xf32>
    %6 = tpu.matmul %4, %5, %cst {dimension_numbers = #tpu.dot_dimension_numbers<[1], [0], [0], [1], [0, 0, 1, 1], [], []>} : vector<512x128xbf16>, vector<128x128xbf16>, vector<512x128xf32> -> vector<512x128xf32>
    %7 = arith.addf %3, %6 : vector<512x128xf32>
    %c0_6 = arith.constant 0 : index
    %c0_7 = arith.constant 0 : index
    %8 = vector.load %arg7[%c0_6, %c0_7] : memref<512x128xf32, #tpu.memory_space<vmem>>, vector<512x128xf32>
    tpu.vector_store %arg7[%c0_6, %c0_7], %7 {strides = array<i32>} : memref<512x128xf32, #tpu.memory_space<vmem>>, vector<512x128xf32>,
    %c0_i32_8 = arith.constant 0 : i32
    %9 = arith.cmpi eq, %arg2, %c0_i32_8 : i32
    %10 = arith.extui %9 : i1 to i32
    %c0_i32_9 = arith.constant 0 : i32
    %11 = arith.cmpi ne, %10, %c0_i32_9 : i32
    scf.if %11 {
      %c0_10 = arith.constant 0 : index
      %c0_11 = arith.constant 0 : index
      %12 = vector.load %arg7[%c0_10, %c0_11] : memref<512x128xf32, #tpu.memory_space<vmem>>, vector<512x128xf32>
      %c0_12 = arith.constant 0 : index
      %c0_13 = arith.constant 0 : index
      %13 = vector.load %arg5[%c0_12, %c0_13] : memref<1x128xf32, #tpu.memory_space<vmem>>, vector<1x128xf32>
      %14 = vector.broadcast %13 : vector<1x128xf32> to vector<512x128xf32>
      %15 = arith.addf %12, %14 : vector<512x128xf32>
      %cst_14 = arith.constant 0.000000e+00 : f32
      %16 = vector.broadcast %cst_14 : f32 to vector<512x128xf32>
      %17 = arith.maximumf %15, %16 : vector<512x128xf32>
      %18 = arith.truncf %17 : vector<512x128xf32> to vector<512x128xbf16>
      %c0_15 = arith.constant 0 : index
      %c0_16 = arith.constant 0 : index
      %19 = vector.load %arg6[%c0_15, %c0_16] : memref<512x128xbf16, #tpu.memory_space<vmem>>, vector<512x128xbf16>
      tpu.vector_store %arg6[%c0_15, %c0_16], %18 {strides = array<i32>} : memref<512x128xbf16, #tpu.memory_space<vmem>>, vector<512x128xbf16>,
    } else {
    }
    return
  }
  func.func @transform_0(%arg0: i32, %arg1: i32, %arg2: i32) -> (i32, i32) {
    %c0_i32 = arith.constant 0 : i32
    return %arg0, %arg2 : i32, i32
  }
  func.func @transform_1(%arg0: i32, %arg1: i32, %arg2: i32) -> (i32, i32) {
    %c0_i32 = arith.constant 0 : i32
    return %arg2, %arg1 : i32, i32
  }
  func.func @transform_2(%arg0: i32, %arg1: i32, %arg2: i32) -> (i32, i32) {
    %c0_i32 = arith.constant 0 : i32
    %c0_i32_0 = arith.constant 0 : i32
    return %c0_i32, %arg1 : i32, i32
  }
  func.func @transform_3(%arg0: i32, %arg1: i32, %arg2: i32) -> (i32, i32) {
    %c0_i32 = arith.constant 0 : i32
    return %arg0, %arg1 : i32, i32
  }
}

module attributes {stable_mosaic.version = 11 : i64} {
  func.func @_mm_bias_act_kernel(%arg0: i32, %arg1: i32, %arg2: i32, %arg3: memref<512x512xbf16, #tpu.memory_space<vmem>>, %arg4: memref<512x128xbf16, #tpu.memory_space<vmem>>, %arg5: memref<1x128xf32, #tpu.memory_space<vmem>>, %arg6: memref<512x128xbf16, #tpu.memory_space<vmem>>, %arg7: memref<512x128xf32, #tpu.memory_space<vmem>>) attributes {dimension_semantics = [#tpu.dimension_semantics<parallel>, #tpu.dimension_semantics<parallel>, #tpu.dimension_semantics<arbitrary>], iteration_bounds = array<i64: 1, 1, 1>, scalar_prefetch = 0 : i64, scratch_operands = 1 : i64, tpu.core_type = #tpu.core_type<tc>, window_params = [{transform_indices = @transform_0, window_bounds = array<i64: 512, 512>}, {transform_indices = @transform_1, window_bounds = array<i64: 512, 128>}, {transform_indices = @transform_2, window_bounds = array<i64: 1, 128>}, {transform_indices = @transform_3, window_bounds = array<i64: 512, 128>}]} {
    %c0_i32 = arith.constant 0 : i32
    %0 = arith.cmpi eq, %arg2, %c0_i32 : i32
    %1 = arith.extui %0 : i1 to i32
    %c0_i32_0 = arith.constant 0 : i32
    %2 = arith.cmpi ne, %1, %c0_i32_0 : i32
    scf.if %2 {
      %cst_10 = arith.constant 0.000000e+00 : f32
      %12 = vector.broadcast %cst_10 : f32 to vector<512x128xf32>
      %c0_11 = arith.constant 0 : index
      %c0_12 = arith.constant 0 : index
      %13 = vector.load %arg7[%c0_11, %c0_12] : memref<512x128xf32, #tpu.memory_space<vmem>>, vector<512x128xf32>
      tpu.vector_store %arg7[%c0_11, %c0_12], %12 {strides = array<i32>} : memref<512x128xf32, #tpu.memory_space<vmem>>, vector<512x128xf32>,
    } else {
    }
    %c0 = arith.constant 0 : index
    %c0_1 = arith.constant 0 : index
    %3 = vector.load %arg7[%c0, %c0_1] : memref<512x128xf32, #tpu.memory_space<vmem>>, vector<512x128xf32>
    %c0_2 = arith.constant 0 : index
    %c0_3 = arith.constant 0 : index
    %4 = vector.load %arg3[%c0_2, %c0_3] : memref<512x512xbf16, #tpu.memory_space<vmem>>, vector<512x512xbf16>
    %c0_4 = arith.constant 0 : index
    %c0_5 = arith.constant 0 : index
    %5 = vector.load %arg4[%c0_4, %c0_5] : memref<512x128xbf16, #tpu.memory_space<vmem>>, vector<512x128xbf16>
    %cst = arith.constant dense<0.000000e+00> : vector<512x128xf32>
    %6 = tpu.matmul %4, %5, %cst {dimension_numbers = #tpu.dot_dimension_numbers<[1], [0], [0], [1], [0, 0, 1, 1], [], []>} : vector<512x512xbf16>, vector<512x128xbf16>, vector<512x128xf32> -> vector<512x128xf32>
    %7 = arith.addf %3, %6 : vector<512x128xf32>
    %c0_6 = arith.constant 0 : index
    %c0_7 = arith.constant 0 : index
    %8 = vector.load %arg7[%c0_6, %c0_7] : memref<512x128xf32, #tpu.memory_space<vmem>>, vector<512x128xf32>
    tpu.vector_store %arg7[%c0_6, %c0_7], %7 {strides = array<i32>} : memref<512x128xf32, #tpu.memory_space<vmem>>, vector<512x128xf32>,
    %c0_i32_8 = arith.constant 0 : i32
    %9 = arith.cmpi eq, %arg2, %c0_i32_8 : i32
    %10 = arith.extui %9 : i1 to i32
    %c0_i32_9 = arith.constant 0 : i32
    %11 = arith.cmpi ne, %10, %c0_i32_9 : i32
    scf.if %11 {
      %c0_10 = arith.constant 0 : index
      %c0_11 = arith.constant 0 : index
      %12 = vector.load %arg7[%c0_10, %c0_11] : memref<512x128xf32, #tpu.memory_space<vmem>>, vector<512x128xf32>
      %c0_12 = arith.constant 0 : index
      %c0_13 = arith.constant 0 : index
      %13 = vector.load %arg5[%c0_12, %c0_13] : memref<1x128xf32, #tpu.memory_space<vmem>>, vector<1x128xf32>
      %14 = vector.broadcast %13 : vector<1x128xf32> to vector<512x128xf32>
      %15 = arith.addf %12, %14 : vector<512x128xf32>
      %cst_14 = arith.constant 0.000000e+00 : f32
      %16 = vector.broadcast %cst_14 : f32 to vector<512x128xf32>
      %17 = arith.maximumf %15, %16 : vector<512x128xf32>
      %18 = arith.truncf %17 : vector<512x128xf32> to vector<512x128xbf16>
      %c0_15 = arith.constant 0 : index
      %c0_16 = arith.constant 0 : index
      %19 = vector.load %arg6[%c0_15, %c0_16] : memref<512x128xbf16, #tpu.memory_space<vmem>>, vector<512x128xbf16>
      tpu.vector_store %arg6[%c0_15, %c0_16], %18 {strides = array<i32>} : memref<512x128xbf16, #tpu.memory_space<vmem>>, vector<512x128xbf16>,
    } else {
    }
    return
  }
  func.func @transform_0(%arg0: i32, %arg1: i32, %arg2: i32) -> (i32, i32) {
    %c0_i32 = arith.constant 0 : i32
    return %arg0, %arg2 : i32, i32
  }
  func.func @transform_1(%arg0: i32, %arg1: i32, %arg2: i32) -> (i32, i32) {
    %c0_i32 = arith.constant 0 : i32
    return %arg2, %arg1 : i32, i32
  }
  func.func @transform_2(%arg0: i32, %arg1: i32, %arg2: i32) -> (i32, i32) {
    %c0_i32 = arith.constant 0 : i32
    %c0_i32_0 = arith.constant 0 : i32
    return %c0_i32, %arg1 : i32, i32
  }
  func.func @transform_3(%arg0: i32, %arg1: i32, %arg2: i32) -> (i32, i32) {
    %c0_i32 = arith.constant 0 : i32
    return %arg0, %arg1 : i32, i32
  }
}

module attributes {stable_mosaic.version = 11 : i64} {
  func.func @_mm_bias_act_kernel(%arg0: i32, %arg1: i32, %arg2: i32, %arg3: memref<128x512xbf16, #tpu.memory_space<vmem>>, %arg4: memref<512x128xbf16, #tpu.memory_space<vmem>>, %arg5: memref<1x128xf32, #tpu.memory_space<vmem>>, %arg6: memref<128x128xf32, #tpu.memory_space<vmem>>, %arg7: memref<128x128xf32, #tpu.memory_space<vmem>>) attributes {dimension_semantics = [#tpu.dimension_semantics<parallel>, #tpu.dimension_semantics<parallel>, #tpu.dimension_semantics<arbitrary>], iteration_bounds = array<i64: 1, 1, 1>, scalar_prefetch = 0 : i64, scratch_operands = 1 : i64, tpu.core_type = #tpu.core_type<tc>, window_params = [{transform_indices = @transform_0, window_bounds = array<i64: 128, 512>}, {transform_indices = @transform_1, window_bounds = array<i64: 512, 128>}, {transform_indices = @transform_2, window_bounds = array<i64: 1, 128>}, {transform_indices = @transform_3, window_bounds = array<i64: 128, 128>}]} {
    %c0_i32 = arith.constant 0 : i32
    %0 = arith.cmpi eq, %arg2, %c0_i32 : i32
    %1 = arith.extui %0 : i1 to i32
    %c0_i32_0 = arith.constant 0 : i32
    %2 = arith.cmpi ne, %1, %c0_i32_0 : i32
    scf.if %2 {
      %cst_10 = arith.constant 0.000000e+00 : f32
      %12 = vector.broadcast %cst_10 : f32 to vector<128x128xf32>
      %c0_11 = arith.constant 0 : index
      %c0_12 = arith.constant 0 : index
      %13 = vector.load %arg7[%c0_11, %c0_12] : memref<128x128xf32, #tpu.memory_space<vmem>>, vector<128x128xf32>
      tpu.vector_store %arg7[%c0_11, %c0_12], %12 {strides = array<i32>} : memref<128x128xf32, #tpu.memory_space<vmem>>, vector<128x128xf32>,
    } else {
    }
    %c0 = arith.constant 0 : index
    %c0_1 = arith.constant 0 : index
    %3 = vector.load %arg7[%c0, %c0_1] : memref<128x128xf32, #tpu.memory_space<vmem>>, vector<128x128xf32>
    %c0_2 = arith.constant 0 : index
    %c0_3 = arith.constant 0 : index
    %4 = vector.load %arg3[%c0_2, %c0_3] : memref<128x512xbf16, #tpu.memory_space<vmem>>, vector<128x512xbf16>
    %c0_4 = arith.constant 0 : index
    %c0_5 = arith.constant 0 : index
    %5 = vector.load %arg4[%c0_4, %c0_5] : memref<512x128xbf16, #tpu.memory_space<vmem>>, vector<512x128xbf16>
    %cst = arith.constant dense<0.000000e+00> : vector<128x128xf32>
    %6 = tpu.matmul %4, %5, %cst {dimension_numbers = #tpu.dot_dimension_numbers<[1], [0], [0], [1], [0, 0, 1, 1], [], []>} : vector<128x512xbf16>, vector<512x128xbf16>, vector<128x128xf32> -> vector<128x128xf32>
    %7 = arith.addf %3, %6 : vector<128x128xf32>
    %c0_6 = arith.constant 0 : index
    %c0_7 = arith.constant 0 : index
    %8 = vector.load %arg7[%c0_6, %c0_7] : memref<128x128xf32, #tpu.memory_space<vmem>>, vector<128x128xf32>
    tpu.vector_store %arg7[%c0_6, %c0_7], %7 {strides = array<i32>} : memref<128x128xf32, #tpu.memory_space<vmem>>, vector<128x128xf32>,
    %c0_i32_8 = arith.constant 0 : i32
    %9 = arith.cmpi eq, %arg2, %c0_i32_8 : i32
    %10 = arith.extui %9 : i1 to i32
    %c0_i32_9 = arith.constant 0 : i32
    %11 = arith.cmpi ne, %10, %c0_i32_9 : i32
    scf.if %11 {
      %c0_10 = arith.constant 0 : index
      %c0_11 = arith.constant 0 : index
      %12 = vector.load %arg7[%c0_10, %c0_11] : memref<128x128xf32, #tpu.memory_space<vmem>>, vector<128x128xf32>
      %c0_12 = arith.constant 0 : index
      %c0_13 = arith.constant 0 : index
      %13 = vector.load %arg5[%c0_12, %c0_13] : memref<1x128xf32, #tpu.memory_space<vmem>>, vector<1x128xf32>
      %14 = vector.broadcast %13 : vector<1x128xf32> to vector<128x128xf32>
      %15 = arith.addf %12, %14 : vector<128x128xf32>
      %c0_14 = arith.constant 0 : index
      %c0_15 = arith.constant 0 : index
      %16 = vector.load %arg6[%c0_14, %c0_15] : memref<128x128xf32, #tpu.memory_space<vmem>>, vector<128x128xf32>
      tpu.vector_store %arg6[%c0_14, %c0_15], %15 {strides = array<i32>} : memref<128x128xf32, #tpu.memory_space<vmem>>, vector<128x128xf32>,
    } else {
    }
    return
  }
  func.func @transform_0(%arg0: i32, %arg1: i32, %arg2: i32) -> (i32, i32) {
    %c0_i32 = arith.constant 0 : i32
    return %arg0, %arg2 : i32, i32
  }
  func.func @transform_1(%arg0: i32, %arg1: i32, %arg2: i32) -> (i32, i32) {
    %c0_i32 = arith.constant 0 : i32
    return %arg2, %arg1 : i32, i32
  }
  func.func @transform_2(%arg0: i32, %arg1: i32, %arg2: i32) -> (i32, i32) {
    %c0_i32 = arith.constant 0 : i32
    %c0_i32_0 = arith.constant 0 : i32
    return %c0_i32, %arg1 : i32, i32
  }
  func.func @transform_3(%arg0: i32, %arg1: i32, %arg2: i32) -> (i32, i32) {
    %c0_i32 = arith.constant 0 : i32
    return %arg0, %arg1 : i32, i32
  }
}

</mosaic_0001>

<llo_original>
// kernel: hyper_analysis_ex.3
$region0: #{hyper_analysis_ex.3}
  #allocation0 [shape = 'u32[]', space=smem, size = 0x4, offset = 0x4, fixed_abs, tag = 'smem constant byte address 0x4 - core index']
  #allocation1 [shape = 'u32[144,128]{1,0:T(1,128)}', space=vmem, size = 0x12000, scoped, tag = 'internal scratch']
  #allocation2 [shape = 'f32[512,128]{1,0:T(8,128)}', space=vmem, size = 0x40000, scoped, tag = 'scratch operand']
  %s0 = inlined_call_operand.vmem [shape: bf16[2048,128], index: 0, kind: input, shape index: {}]
  %s1 = inlined_call_operand.vmem [shape: bf16[128,128], index: 1, kind: input, shape index: {}]
  %s2 = inlined_call_operand.vmem [shape: f32[1,128], index: 2, kind: input, shape index: {}]
  %s3 = inlined_call_operand.vmem [shape: bf16[2048,128], index: 3, kind: output, shape index: {}]
  %s4 = sld [smem:[#allocation0]]
  $region53: #{hyper_analysis_ex.3} parent=0
    _
  %s6 = ssub.s32 1, %s4
  %s7 = scalar_select 0, %s6, %s4
  loop: start=0, step=1, limit=6
  $region2: #{hyper_analysis_ex.3} parent=0 // loop_pre_header
    _
  $region3: #{hyper_analysis_ex.3} parent=0 // loop_header
    %s9 = sphi 0, %s13
    %p10 = scmp.ge.s32.totalorder %s9, 6
    %s16 = sphi 0, %s35
    %s17 = sphi 0, %s31
    %s18 = sphi 0, %s27
    %s19 = sphi 0, %s16
    %s20 = sphi 0, %s17
    %s21 = sphi 0, %s18
    %s22 = sphi 0, %s19
    %s23 = sphi 0, %s20
    %s24 = sphi 0, %s21
    %s40 = sphi 0, %s42
    %s43 = sphi 0, %s40
    %s44 = sphi 0, %s43
    %s60 = sphi 0, %s44
    %s68 = sphi 0, %s70
    %s71 = sphi 0, %s68
    %s72 = sphi 0, %s71
    %s88 = sphi 0, %s72
    %s94 = sphi 0, %s96
    %s97 = sphi 0, %s94
    %s98 = sphi 0, %s97
    %s114 = sphi 0, %s98
    %s122 = sphi 0, %s124
    %s125 = sphi 0, %s122
    %s126 = sphi 0, %s125
    %s142 = sphi 0, %s126
  $region4: #{hyper_analysis_ex.3} parent=0 // loop_header_branch
    %12 = sbr.rel (%p10) target = $region8
  $region5: #{hyper_analysis_ex.3} parent=0 // loop_body
    %s14 = ssub.s32 %s9, 1
    %s15 = ssub.s32 %s9, 2
    %s25 = sadd.s32 1, %s18
    %p26 = scmp.ge.s32.totalorder %s25, 1
    %s27 = scalar_select %p26, 0, %s25
    %s28 = sadd.s32 1, %s17
    %s29 = scalar_select %p26, %s28, %s17
    %p30 = scmp.ge.s32.totalorder %s29, 1
    %s31 = scalar_select %p30, 0, %s29
    %s32 = sadd.s32 1, %s16
    %s33 = scalar_select %p30, %s32, %s16
    %p34 = scmp.ge.s32.totalorder %s33, 4
    %s35 = scalar_select %p34, 0, %s33
    %s36 = ssub.s32 %s16, %s35
    %s37 = ssub.s32 %s18, %s27
    %s38 = sor.u32 %s36, %s37
    %p39 = scmp.eq.s32.totalorder %s38, 0
    %s41 = sadd.s32 %s40, 1
    %s42 = scalar_select %p39, %s40, %s41
    %p45 = pneg %p39
    %p46 = scmp.eq.s32.totalorder %s9, 3
    %p47 = por %p45, %p46
    %p48 = scmp.ne.s32.totalorder %s40, %s43
    %p49 = scmp.eq.s32.totalorder %s9, 0
    %p50 = por %p48, %p49
    %p51 = scmp.ne.s32.totalorder %s40, %s43
    %p52 = scmp.eq.s32.totalorder %s14, 3
    %p53 = por %p51, %p52
    %p54 = scmp.ne.s32.totalorder %s43, %s44
    %p55 = scmp.eq.s32.totalorder %s14, 0
    %p56 = por %p54, %p55
    %p57 = scmp.ne.s32.totalorder %s43, %s44
    %p58 = scmp.eq.s32.totalorder %s15, 3
    %p59 = por %p57, %p58
    %p61 = scmp.ne.s32.totalorder %s44, %s60
    %p62 = scmp.eq.s32.totalorder %s15, 0
    %p63 = por %p61, %p62
    %s64 = ssub.s32 %s18, %s27
    %s65 = ssub.s32 %s17, %s31
    %s66 = sor.u32 %s64, %s65
    %p67 = scmp.eq.s32.totalorder %s66, 0
    %s69 = sadd.s32 %s68, 1
    %s70 = scalar_select %p67, %s68, %s69
    %p73 = pneg %p67
    %p74 = scmp.eq.s32.totalorder %s9, 3
    %p75 = por %p73, %p74
    %p76 = scmp.ne.s32.totalorder %s68, %s71
    %p77 = scmp.eq.s32.totalorder %s9, 0
    %p78 = por %p76, %p77
    %p79 = scmp.ne.s32.totalorder %s68, %s71
    %p80 = scmp.eq.s32.totalorder %s14, 3
    %p81 = por %p79, %p80
    %p82 = scmp.ne.s32.totalorder %s71, %s72
    %p83 = scmp.eq.s32.totalorder %s14, 0
    %p84 = por %p82, %p83
    %p85 = scmp.ne.s32.totalorder %s71, %s72
    %p86 = scmp.eq.s32.totalorder %s15, 3
    %p87 = por %p85, %p86
    %p89 = scmp.ne.s32.totalorder %s72, %s88
    %p90 = scmp.eq.s32.totalorder %s15, 0
    %p91 = por %p89, %p90
    %s92 = ssub.s32 %s17, %s31
    %p93 = scmp.eq.s32.totalorder %s92, 0
    %s95 = sadd.s32 %s94, 1
    %s96 = scalar_select %p93, %s94, %s95
    %p99 = pneg %p93
    %p100 = scmp.eq.s32.totalorder %s9, 3
    %p101 = por %p99, %p100
    %p102 = scmp.ne.s32.totalorder %s94, %s97
    %p103 = scmp.eq.s32.totalorder %s9, 0
    %p104 = por %p102, %p103
    %p105 = scmp.ne.s32.totalorder %s94, %s97
    %p106 = scmp.eq.s32.totalorder %s14, 3
    %p107 = por %p105, %p106
    %p108 = scmp.ne.s32.totalorder %s97, %s98
    %p109 = scmp.eq.s32.totalorder %s14, 0
    %p110 = por %p108, %p109
    %p111 = scmp.ne.s32.totalorder %s97, %s98
    %p112 = scmp.eq.s32.totalorder %s15, 3
    %p113 = por %p111, %p112
    %p115 = scmp.ne.s32.totalorder %s98, %s114
    %p116 = scmp.eq.s32.totalorder %s15, 0
    %p117 = por %p115, %p116
    %s118 = ssub.s32 %s16, %s35
    %s119 = ssub.s32 %s17, %s31
    %s120 = sor.u32 %s118, %s119
    %p121 = scmp.eq.s32.totalorder %s120, 0
    %s123 = sadd.s32 %s122, 1
    %s124 = scalar_select %p121, %s122, %s123
    %p127 = pneg %p121
    %p128 = scmp.eq.s32.totalorder %s9, 3
    %p129 = por %p127, %p128
    %p130 = scmp.ne.s32.totalorder %s122, %s125
    %p131 = scmp.eq.s32.totalorder %s9, 0
    %p132 = por %p130, %p131
    %p133 = scmp.ne.s32.totalorder %s122, %s125
    %p134 = scmp.eq.s32.totalorder %s14, 3
    %p135 = por %p133, %p134
    %p136 = scmp.ne.s32.totalorder %s125, %s126
    %p137 = scmp.eq.s32.totalorder %s14, 0
    %p138 = por %p136, %p137
    %p139 = scmp.ne.s32.totalorder %s125, %s126
    %p140 = scmp.eq.s32.totalorder %s15, 3
    %p141 = por %p139, %p140
    %p143 = scmp.ne.s32.totalorder %s126, %s142
    %p144 = scmp.eq.s32.totalorder %s15, 0
    %p145 = por %p143, %p144
    %p146 = scmp.le.s32.totalorder 1, %s9
    %p147 = scmp.lt.s32.totalorder %s9, 5
    %p148 = pnand %p146, %p147
    %p149 = pneg %p148
    // Predicated region
    $region9: #{hyper_analysis_ex.3} parent=5 // pred_check
      _
    $region10: #{hyper_analysis_ex.3} parent=5 // pred_check_branch
      %151 = sbr.rel (%p148) target = $region12
    $region11: #{hyper_analysis_ex.3} parent=5 // pred_region
      %s152 = ssub.s32 %s9, 1
      // Predicated region
      $region13: #{hyper_analysis_ex.3} parent=11 // pred_check
        %p153 = pneg %p84
      $region14: #{hyper_analysis_ex.3} parent=11 // pred_check_branch
        %155 = sbr.rel (%p153) target = $region16
      $region15: #{hyper_analysis_ex.3} parent=11 // pred_region
        %s156 = smul.u32 16, %s21
        %p157 = scmp.lt.s32.totalorder %s156, 15
        %s158 = scalar_select %p157, %s156, 15
        %p159 = scmp.lt.s32.totalorder %s20, 0
        %s160 = scalar_select %p159, %s20, 0
        %s161 = sadd.s32 %s160, %s158
        %s162 = smul.addr %s161, 4
        %s163 = scalar_lea.vmem %s1, %s162
        %s164 = smul.u32 16, %s21
      $region16: #{hyper_analysis_ex.3} parent=11 // pred_fallthru
        _
      // Predicated region
      $region17: #{hyper_analysis_ex.3} parent=11 // pred_check
        %p165 = pneg %p110
      $region18: #{hyper_analysis_ex.3} parent=11 // pred_check_branch
        %167 = sbr.rel (%p165) target = $region20
      $region19: #{hyper_analysis_ex.3} parent=11 // pred_region
        %p168 = scmp.lt.s32.totalorder %s20, 0
        %s169 = scalar_select %p168, %s20, 0
        %s170 = scalar_lea.vmem %s2, %s169
      $region20: #{hyper_analysis_ex.3} parent=11 // pred_fallthru
        _
    $region12: #{hyper_analysis_ex.3} parent=5 // pred_fallthru
      _
    %p171 = scmp.lt.s32.totalorder %s9, 4
    // Predicated region
    $region21: #{hyper_analysis_ex.3} parent=5 // pred_check
      %p172 = pneg %p171
    $region22: #{hyper_analysis_ex.3} parent=5 // pred_check_branch
      %174 = sbr.rel (%p172) target = $region24
    $region23: #{hyper_analysis_ex.3} parent=5 // pred_region
      // Predicated region
      $region25: #{hyper_analysis_ex.3} parent=23 // pred_check
        %p175 = pneg %p50
      $region26: #{hyper_analysis_ex.3} parent=23 // pred_check_branch
        %177 = sbr.rel (%p175) target = $region28
      $region27: #{hyper_analysis_ex.3} parent=23 // pred_region
        %s178 = smul.u32 64, %s16
        %p179 = scmp.lt.s32.totalorder %s178, 255
        %s180 = scalar_select %p179, %s178, 255
        %p181 = scmp.lt.s32.totalorder %s18, 0
        %s182 = scalar_select %p181, %s18, 0
        %s183 = sadd.s32 %s182, %s180
        %s184 = smul.addr %s183, 4
        %s185 = scalar_lea.vmem %s0, %s184
        %s186 = smul.u32 64, %s16
      $region28: #{hyper_analysis_ex.3} parent=23 // pred_fallthru
        _
    $region24: #{hyper_analysis_ex.3} parent=5 // pred_fallthru
      _
    %p187 = scmp.le.s32.totalorder 1, %s9
    %p188 = scmp.lt.s32.totalorder %s9, 5
    %p189 = pnand %p187, %p188
    %p190 = pneg %p189
    // Predicated region
    $region29: #{hyper_analysis_ex.3} parent=5 // pred_check
      _
    $region30: #{hyper_analysis_ex.3} parent=5 // pred_check_branch
      %192 = sbr.rel (%p189) target = $region32
    $region31: #{hyper_analysis_ex.3} parent=5 // pred_region
      %s193 = ssub.s32 %s9, 1
      %s194 = smul.u32 64, %s19
      %p195 = scmp.lt.s32.totalorder %s194, 255
      %s196 = scalar_select %p195, %s194, 255
      %p197 = scmp.lt.s32.totalorder %s21, 0
      %s198 = scalar_select %p197, %s21, 0
      %s199 = sadd.s32 %s198, %s196
      %s200 = smul.addr %s199, 4
      %s201 = scalar_lea.vmem %s0, %s200
      %p202 = pneg %p56
      %p203 = pneg %p53
      %s204 = smul.u32 16, %s21
      %p205 = scmp.lt.s32.totalorder %s204, 15
      %s206 = scalar_select %p205, %s204, 15
      %p207 = scmp.lt.s32.totalorder %s20, 0
      %s208 = scalar_select %p207, %s20, 0
      %s209 = sadd.s32 %s208, %s206
      %s210 = smul.addr %s209, 4
      %s211 = scalar_lea.vmem %s1, %s210
      %p212 = pneg %p84
      %p213 = pneg %p81
      %p214 = scmp.lt.s32.totalorder %s20, 0
      %s215 = scalar_select %p214, %s20, 0
      %s216 = scalar_lea.vmem %s2, %s215
      %p217 = pneg %p110
      %p218 = pneg %p107
      %p219 = pneg %p138
      %p220 = pneg %p135
      %s221 = smul.u32 64, %s19
      %p222 = scmp.lt.s32.totalorder %s221, 255
      %s223 = scalar_select %p222, %s221, 255
      %p224 = scmp.lt.s32.totalorder %s20, 0
      %s225 = scalar_select %p224, %s20, 0
      %s226 = sadd.s32 %s225, %s223
      %s227 = smul.addr %s226, 4
      %s228 = scalar_lea.vmem %s3, %s227
      %s229 = smul.u32 64, %s19
      %p230 = scmp.lt.s32.totalorder %s229, 255
      %s231 = scalar_select %p230, %s229, 255
      %p232 = scmp.lt.s32.totalorder %s21, 0
      %s233 = scalar_select %p232, %s21, 0
      %s234 = sadd.s32 %s233, %s231
      %s235 = smul.addr %s234, 4
      %s236 = scalar_lea.vmem %s0, %s235
      %s237 = smul.u32 64, %s19
      %s238 = smul.u32 16, %s21
      %p239 = scmp.lt.s32.totalorder %s238, 15
      %s240 = scalar_select %p239, %s238, 15
      %p241 = scmp.lt.s32.totalorder %s20, 0
      %s242 = scalar_select %p241, %s20, 0
      %s243 = sadd.s32 %s242, %s240
      %s244 = smul.addr %s243, 4
      %s245 = scalar_lea.vmem %s1, %s244
      %s246 = smul.u32 16, %s21
      %p247 = scmp.lt.s32.totalorder %s20, 0
      %s248 = scalar_select %p247, %s20, 0
      %s249 = scalar_lea.vmem %s2, %s248
      %s250 = smul.u32 64, %s19
      %p251 = scmp.lt.s32.totalorder %s250, 255
      %s252 = scalar_select %p251, %s250, 255
      %p253 = scmp.lt.s32.totalorder %s20, 0
      %s254 = scalar_select %p253, %s20, 0
      %s255 = sadd.s32 %s254, %s252
      %s256 = smul.addr %s255, 4
      %s257 = scalar_lea.vmem %s3, %s256
      %s258 = smul.u32 64, %s19
      %p260 = scmp.eq.s32.totalorder %s21, 0
      // Predicated region
      $region33: #{hyper_analysis_ex.3} parent=31 // pred_check
        %p261 = pneg %p260
      $region34: #{hyper_analysis_ex.3} parent=31 // pred_check_branch
        %263 = sbr.rel (%p261) target = $region36
      $region35: #{hyper_analysis_ex.3} parent=31 // pred_region
        %264 = vst [vmem:[#allocation2] sm:$0xff] 0.0
        %265 = vst [vmem:[#allocation2 + $0x8] sm:$0xff] 0.0
        %266 = vst [vmem:[#allocation2 + $0x10] sm:$0xff] 0.0
        %267 = vst [vmem:[#allocation2 + $0x18] sm:$0xff] 0.0
        %268 = vst [vmem:[#allocation2 + $0x20] sm:$0xff] 0.0
        %269 = vst [vmem:[#allocation2 + $0x28] sm:$0xff] 0.0
        %270 = vst [vmem:[#allocation2 + $0x30] sm:$0xff] 0.0
        %271 = vst [vmem:[#allocation2 + $0x38] sm:$0xff] 0.0
        %272 = vst [vmem:[#allocation2 + $0x40] sm:$0xff] 0.0
        %273 = vst [vmem:[#allocation2 + $0x48] sm:$0xff] 0.0
        %274 = vst [vmem:[#allocation2 + $0x50] sm:$0xff] 0.0
        %275 = vst [vmem:[#allocation2 + $0x58] sm:$0xff] 0.0
        %276 = vst [vmem:[#allocation2 + $0x60] sm:$0xff] 0.0
        %277 = vst [vmem:[#allocation2 + $0x68] sm:$0xff] 0.0
        %278 = vst [vmem:[#allocation2 + $0x70] sm:$0xff] 0.0
        %279 = vst [vmem:[#allocation2 + $0x78] sm:$0xff] 0.0
        %280 = vst [vmem:[#allocation2 + $0x80] sm:$0xff] 0.0
        %281 = vst [vmem:[#allocation2 + $0x88] sm:$0xff] 0.0
        %282 = vst [vmem:[#allocation2 + $0x90] sm:$0xff] 0.0
        %283 = vst [vmem:[#allocation2 + $0x98] sm:$0xff] 0.0
        %284 = vst [vmem:[#allocation2 + $0xa0] sm:$0xff] 0.0
        %285 = vst [vmem:[#allocation2 + $0xa8] sm:$0xff] 0.0
        %286 = vst [vmem:[#allocation2 + $0xb0] sm:$0xff] 0.0
        %287 = vst [vmem:[#allocation2 + $0xb8] sm:$0xff] 0.0
        %288 = vst [vmem:[#allocation2 + $0xc0] sm:$0xff] 0.0
        %289 = vst [vmem:[#allocation2 + $0xc8] sm:$0xff] 0.0
        %290 = vst [vmem:[#allocation2 + $0xd0] sm:$0xff] 0.0
        %291 = vst [vmem:[#allocation2 + $0xd8] sm:$0xff] 0.0
        %292 = vst [vmem:[#allocation2 + $0xe0] sm:$0xff] 0.0
        %293 = vst [vmem:[#allocation2 + $0xe8] sm:$0xff] 0.0
        %294 = vst [vmem:[#allocation2 + $0xf0] sm:$0xff] 0.0
        %295 = vst [vmem:[#allocation2 + $0xf8] sm:$0xff] 0.0
        %296 = vst [vmem:[#allocation2 + $0x100] sm:$0xff] 0.0
        %297 = vst [vmem:[#allocation2 + $0x108] sm:$0xff] 0.0
        %298 = vst [vmem:[#allocation2 + $0x110] sm:$0xff] 0.0
        %299 = vst [vmem:[#allocation2 + $0x118] sm:$0xff] 0.0
        %300 = vst [vmem:[#allocation2 + $0x120] sm:$0xff] 0.0
        %301 = vst [vmem:[#allocation2 + $0x128] sm:$0xff] 0.0
        %302 = vst [vmem:[#allocation2 + $0x130] sm:$0xff] 0.0
        %303 = vst [vmem:[#allocation2 + $0x138] sm:$0xff] 0.0
        %304 = vst [vmem:[#allocation2 + $0x140] sm:$0xff] 0.0
        %305 = vst [vmem:[#allocation2 + $0x148] sm:$0xff] 0.0
        %306 = vst [vmem:[#allocation2 + $0x150] sm:$0xff] 0.0
        %307 = vst [vmem:[#allocation2 + $0x158] sm:$0xff] 0.0
        %308 = vst [vmem:[#allocation2 + $0x160] sm:$0xff] 0.0
        %309 = vst [vmem:[#allocation2 + $0x168] sm:$0xff] 0.0
        %310 = vst [vmem:[#allocation2 + $0x170] sm:$0xff] 0.0
        %311 = vst [vmem:[#allocation2 + $0x178] sm:$0xff] 0.0
        %312 = vst [vmem:[#allocation2 + $0x180] sm:$0xff] 0.0
        %313 = vst [vmem:[#allocation2 + $0x188] sm:$0xff] 0.0
        %314 = vst [vmem:[#allocation2 + $0x190] sm:$0xff] 0.0
        %315 = vst [vmem:[#allocation2 + $0x198] sm:$0xff] 0.0
        %316 = vst [vmem:[#allocation2 + $0x1a0] sm:$0xff] 0.0
        %317 = vst [vmem:[#allocation2 + $0x1a8] sm:$0xff] 0.0
        %318 = vst [vmem:[#allocation2 + $0x1b0] sm:$0xff] 0.0
        %319 = vst [vmem:[#allocation2 + $0x1b8] sm:$0xff] 0.0
        %320 = vst [vmem:[#allocation2 + $0x1c0] sm:$0xff] 0.0
        %321 = vst [vmem:[#allocation2 + $0x1c8] sm:$0xff] 0.0
        %322 = vst [vmem:[#allocation2 + $0x1d0] sm:$0xff] 0.0
        %323 = vst [vmem:[#allocation2 + $0x1d8] sm:$0xff] 0.0
        %324 = vst [vmem:[#allocation2 + $0x1e0] sm:$0xff] 0.0
        %325 = vst [vmem:[#allocation2 + $0x1e8] sm:$0xff] 0.0
        %326 = vst [vmem:[#allocation2 + $0x1f0] sm:$0xff] 0.0
        %327 = vst [vmem:[#allocation2 + $0x1f8] sm:$0xff] 0.0
      $region36: #{hyper_analysis_ex.3} parent=31 // pred_fallthru
        _
      %v328 = vld [vmem:[#allocation2] sm:$0xff]
      %v329 = vld [vmem:[#allocation2 + $0x8] sm:$0xff]
      %v330 = vld [vmem:[#allocation2 + $0x10] sm:$0xff]
      %v331 = vld [vmem:[#allocation2 + $0x18] sm:$0xff]
      %v332 = vld [vmem:[#allocation2 + $0x20] sm:$0xff]
      %v333 = vld [vmem:[#allocation2 + $0x28] sm:$0xff]
      %v334 = vld [vmem:[#allocation2 + $0x30] sm:$0xff]
      %v335 = vld [vmem:[#allocation2 + $0x38] sm:$0xff]
      %v336 = vld [vmem:[#allocation2 + $0x40] sm:$0xff]
      %v337 = vld [vmem:[#allocation2 + $0x48] sm:$0xff]
      %v338 = vld [vmem:[#allocation2 + $0x50] sm:$0xff]
      %v339 = vld [vmem:[#allocation2 + $0x58] sm:$0xff]
      %v340 = vld [vmem:[#allocation2 + $0x60] sm:$0xff]
      %v341 = vld [vmem:[#allocation2 + $0x68] sm:$0xff]
      %v342 = vld [vmem:[#allocation2 + $0x70] sm:$0xff]
      %v343 = vld [vmem:[#allocation2 + $0x78] sm:$0xff]
      %v344 = vld [vmem:[#allocation2 + $0x80] sm:$0xff]
      %v345 = vld [vmem:[#allocation2 + $0x88] sm:$0xff]
      %v346 = vld [vmem:[#allocation2 + $0x90] sm:$0xff]
      %v347 = vld [vmem:[#allocation2 + $0x98] sm:$0xff]
      %v348 = vld [vmem:[#allocation2 + $0xa0] sm:$0xff]
      %v349 = vld [vmem:[#allocation2 + $0xa8] sm:$0xff]
      %v350 = vld [vmem:[#allocation2 + $0xb0] sm:$0xff]
      %v351 = vld [vmem:[#allocation2 + $0xb8] sm:$0xff]
      %v352 = vld [vmem:[#allocation2 + $0xc0] sm:$0xff]
      %v353 = vld [vmem:[#allocation2 + $0xc8] sm:$0xff]
      %v354 = vld [vmem:[#allocation2 + $0xd0] sm:$0xff]
      %v355 = vld [vmem:[#allocation2 + $0xd8] sm:$0xff]
      %v356 = vld [vmem:[#allocation2 + $0xe0] sm:$0xff]
      %v357 = vld [vmem:[#allocation2 + $0xe8] sm:$0xff]
      %v358 = vld [vmem:[#allocation2 + $0xf0] sm:$0xff]
      %v359 = vld [vmem:[#allocation2 + $0xf8] sm:$0xff]
      %v360 = vld [vmem:[#allocation2 + $0x100] sm:$0xff]
      %v361 = vld [vmem:[#allocation2 + $0x108] sm:$0xff]
      %v362 = vld [vmem:[#allocation2 + $0x110] sm:$0xff]
      %v363 = vld [vmem:[#allocation2 + $0x118] sm:$0xff]
      %v364 = vld [vmem:[#allocation2 + $0x120] sm:$0xff]
      %v365 = vld [vmem:[#allocation2 + $0x128] sm:$0xff]
      %v366 = vld [vmem:[#allocation2 + $0x130] sm:$0xff]
      %v367 = vld [vmem:[#allocation2 + $0x138] sm:$0xff]
      %v368 = vld [vmem:[#allocation2 + $0x140] sm:$0xff]
      %v369 = vld [vmem:[#allocation2 + $0x148] sm:$0xff]
      %v370 = vld [vmem:[#allocation2 + $0x150] sm:$0xff]
      %v371 = vld [vmem:[#allocation2 + $0x158] sm:$0xff]
      %v372 = vld [vmem:[#allocation2 + $0x160] sm:$0xff]
      %v373 = vld [vmem:[#allocation2 + $0x168] sm:$0xff]
      %v374 = vld [vmem:[#allocation2 + $0x170] sm:$0xff]
      %v375 = vld [vmem:[#allocation2 + $0x178] sm:$0xff]
      %v376 = vld [vmem:[#allocation2 + $0x180] sm:$0xff]
      %v377 = vld [vmem:[#allocation2 + $0x188] sm:$0xff]
      %v378 = vld [vmem:[#allocation2 + $0x190] sm:$0xff]
      %v379 = vld [vmem:[#allocation2 + $0x198] sm:$0xff]
      %v380 = vld [vmem:[#allocation2 + $0x1a0] sm:$0xff]
      %v381 = vld [vmem:[#allocation2 + $0x1a8] sm:$0xff]
      %v382 = vld [vmem:[#allocation2 + $0x1b0] sm:$0xff]
      %v383 = vld [vmem:[#allocation2 + $0x1b8] sm:$0xff]
      %v384 = vld [vmem:[#allocation2 + $0x1c0] sm:$0xff]
      %v385 = vld [vmem:[#allocation2 + $0x1c8] sm:$0xff]
      %v386 = vld [vmem:[#allocation2 + $0x1d0] sm:$0xff]
      %v387 = vld [vmem:[#allocation2 + $0x1d8] sm:$0xff]
      %v388 = vld [vmem:[#allocation2 + $0x1e0] sm:$0xff]
      %v389 = vld [vmem:[#allocation2 + $0x1e8] sm:$0xff]
      %v390 = vld [vmem:[#allocation2 + $0x1f0] sm:$0xff]
      %v391 = vld [vmem:[#allocation2 + $0x1f8] sm:$0xff]
      %v392 = vld [vmem:[%s236] sm:$0xf]
      %v393 = vld [vmem:[%s236 + $0x4] sm:$0xf]
      %v394 = vld [vmem:[%s236 + $0x8] sm:$0xf]
      %v395 = vld [vmem:[%s236 + $0xc] sm:$0xf]
      %v396 = vld [vmem:[%s236 + $0x10] sm:$0xf]
      %v397 = vld [vmem:[%s236 + $0x14] sm:$0xf]
      %v398 = vld [vmem:[%s236 + $0x18] sm:$0xf]
      %v399 = vld [vmem:[%s236 + $0x1c] sm:$0xf]
      %v400 = vld [vmem:[%s236 + $0x20] sm:$0xf]
      %v401 = vld [vmem:[%s236 + $0x24] sm:$0xf]
      %v402 = vld [vmem:[%s236 + $0x28] sm:$0xf]
      %v403 = vld [vmem:[%s236 + $0x2c] sm:$0xf]
      %v404 = vld [vmem:[%s236 + $0x30] sm:$0xf]
      %v405 = vld [vmem:[%s236 + $0x34] sm:$0xf]
      %v406 = vld [vmem:[%s236 + $0x38] sm:$0xf]
      %v407 = vld [vmem:[%s236 + $0x3c] sm:$0xf]
      %v408 = vld [vmem:[%s236 + $0x40] sm:$0xf]
      %v409 = vld [vmem:[%s236 + $0x44] sm:$0xf]
      %v410 = vld [vmem:[%s236 + $0x48] sm:$0xf]
      %v411 = vld [vmem:[%s236 + $0x4c] sm:$0xf]
      %v412 = vld [vmem:[%s236 + $0x50] sm:$0xf]
      %v413 = vld [vmem:[%s236 + $0x54] sm:$0xf]
      %v414 = vld [vmem:[%s236 + $0x58] sm:$0xf]
      %v415 = vld [vmem:[%s236 + $0x5c] sm:$0xf]
      %v416 = vld [vmem:[%s236 + $0x60] sm:$0xf]
      %v417 = vld [vmem:[%s236 + $0x64] sm:$0xf]
      %v418 = vld [vmem:[%s236 + $0x68] sm:$0xf]
      %v419 = vld [vmem:[%s236 + $0x6c] sm:$0xf]
      %v420 = vld [vmem:[%s236 + $0x70] sm:$0xf]
      %v421 = vld [vmem:[%s236 + $0x74] sm:$0xf]
      %v422 = vld [vmem:[%s236 + $0x78] sm:$0xf]
      %v423 = vld [vmem:[%s236 + $0x7c] sm:$0xf]
      %v424 = vld [vmem:[%s236 + $0x80] sm:$0xf]
      %v425 = vld [vmem:[%s236 + $0x84] sm:$0xf]
      %v426 = vld [vmem:[%s236 + $0x88] sm:$0xf]
      %v427 = vld [vmem:[%s236 + $0x8c] sm:$0xf]
      %v428 = vld [vmem:[%s236 + $0x90] sm:$0xf]
      %v429 = vld [vmem:[%s236 + $0x94] sm:$0xf]
      %v430 = vld [vmem:[%s236 + $0x98] sm:$0xf]
      %v431 = vld [vmem:[%s236 + $0x9c] sm:$0xf]
      %v432 = vld [vmem:[%s236 + $0xa0] sm:$0xf]
      %v433 = vld [vmem:[%s236 + $0xa4] sm:$0xf]
      %v434 = vld [vmem:[%s236 + $0xa8] sm:$0xf]
      %v435 = vld [vmem:[%s236 + $0xac] sm:$0xf]
      %v436 = vld [vmem:[%s236 + $0xb0] sm:$0xf]
      %v437 = vld [vmem:[%s236 + $0xb4] sm:$0xf]
      %v438 = vld [vmem:[%s236 + $0xb8] sm:$0xf]
      %v439 = vld [vmem:[%s236 + $0xbc] sm:$0xf]
      %v440 = vld [vmem:[%s236 + $0xc0] sm:$0xf]
      %v441 = vld [vmem:[%s236 + $0xc4] sm:$0xf]
      %v442 = vld [vmem:[%s236 + $0xc8] sm:$0xf]
      %v443 = vld [vmem:[%s236 + $0xcc] sm:$0xf]
      %v444 = vld [vmem:[%s236 + $0xd0] sm:$0xf]
      %v445 = vld [vmem:[%s236 + $0xd4] sm:$0xf]
      %v446 = vld [vmem:[%s236 + $0xd8] sm:$0xf]
      %v447 = vld [vmem:[%s236 + $0xdc] sm:$0xf]
      %v448 = vld [vmem:[%s236 + $0xe0] sm:$0xf]
      %v449 = vld [vmem:[%s236 + $0xe4] sm:$0xf]
      %v450 = vld [vmem:[%s236 + $0xe8] sm:$0xf]
      %v451 = vld [vmem:[%s236 + $0xec] sm:$0xf]
      %v452 = vld [vmem:[%s236 + $0xf0] sm:$0xf]
      %v453 = vld [vmem:[%s236 + $0xf4] sm:$0xf]
      %v454 = vld [vmem:[%s236 + $0xf8] sm:$0xf]
      %v455 = vld [vmem:[%s236 + $0xfc] sm:$0xf]
      %v456 = vld [vmem:[%s245] sm:$0xf]
      %v457 = vld [vmem:[%s245 + $0x4] sm:$0xf]
      %v458 = vld [vmem:[%s245 + $0x8] sm:$0xf]
      %v459 = vld [vmem:[%s245 + $0xc] sm:$0xf]
      %v460 = vld [vmem:[%s245 + $0x10] sm:$0xf]
      %v461 = vld [vmem:[%s245 + $0x14] sm:$0xf]
      %v462 = vld [vmem:[%s245 + $0x18] sm:$0xf]
      %v463 = vld [vmem:[%s245 + $0x1c] sm:$0xf]
      %v464 = vld [vmem:[%s245 + $0x20] sm:$0xf]
      %v465 = vld [vmem:[%s245 + $0x24] sm:$0xf]
      %v466 = vld [vmem:[%s245 + $0x28] sm:$0xf]
      %v467 = vld [vmem:[%s245 + $0x2c] sm:$0xf]
      %v468 = vld [vmem:[%s245 + $0x30] sm:$0xf]
      %v469 = vld [vmem:[%s245 + $0x34] sm:$0xf]
      %v470 = vld [vmem:[%s245 + $0x38] sm:$0xf]
      %v471 = vld [vmem:[%s245 + $0x3c] sm:$0xf]
      %v536 = vunpack.c.l.b16 %v392
      %v537 = vunpack.c.l.b16 %v393
      %v538 = vunpack.c.l.b16 %v394
      %v539 = vunpack.c.l.b16 %v395
      %v540 = vunpack.c.l.b16 %v396
      %v541 = vunpack.c.l.b16 %v397
      %v542 = vunpack.c.l.b16 %v398
      %v543 = vunpack.c.l.b16 %v399
      %v544 = vunpack.c.l.b16 %v400
      %v545 = vunpack.c.l.b16 %v401
      %v546 = vunpack.c.l.b16 %v402
      %v547 = vunpack.c.l.b16 %v403
      %v548 = vunpack.c.l.b16 %v404
      %v549 = vunpack.c.l.b16 %v405
      %v550 = vunpack.c.l.b16 %v406
      %v551 = vunpack.c.l.b16 %v407
      %v552 = vunpack.c.l.b16 %v408
      %v553 = vunpack.c.l.b16 %v409
      %v554 = vunpack.c.l.b16 %v410
      %v555 = vunpack.c.l.b16 %v411
      %v556 = vunpack.c.l.b16 %v412
      %v557 = vunpack.c.l.b16 %v413
      %v558 = vunpack.c.l.b16 %v414
      %v559 = vunpack.c.l.b16 %v415
      %v560 = vunpack.c.l.b16 %v416
      %v561 = vunpack.c.l.b16 %v417
      %v562 = vunpack.c.l.b16 %v418
      %v563 = vunpack.c.l.b16 %v419
      %v564 = vunpack.c.l.b16 %v420
      %v565 = vunpack.c.l.b16 %v421
      %v566 = vunpack.c.l.b16 %v422
      %v567 = vunpack.c.l.b16 %v423
      %v568 = vunpack.c.l.b16 %v424
      %v569 = vunpack.c.l.b16 %v425
      %v570 = vunpack.c.l.b16 %v426
      %v571 = vunpack.c.l.b16 %v427
      %v572 = vunpack.c.l.b16 %v428
      %v573 = vunpack.c.l.b16 %v429
      %v574 = vunpack.c.l.b16 %v430
      %v575 = vunpack.c.l.b16 %v431
      %v576 = vunpack.c.l.b16 %v432
      %v577 = vunpack.c.l.b16 %v433
      %v578 = vunpack.c.l.b16 %v434
      %v579 = vunpack.c.l.b16 %v435
      %v580 = vunpack.c.l.b16 %v436
      %v581 = vunpack.c.l.b16 %v437
      %v582 = vunpack.c.l.b16 %v438
      %v583 = vunpack.c.l.b16 %v439
      %v584 = vunpack.c.l.b16 %v440
      %v585 = vunpack.c.l.b16 %v441
      %v586 = vunpack.c.l.b16 %v442
      %v587 = vunpack.c.l.b16 %v443
      %v588 = vunpack.c.l.b16 %v444
      %v589 = vunpack.c.l.b16 %v445
      %v590 = vunpack.c.l.b16 %v446
      %v591 = vunpack.c.l.b16 %v447
      %v592 = vunpack.c.l.b16 %v448
      %v593 = vunpack.c.l.b16 %v449
      %v594 = vunpack.c.l.b16 %v450
      %v595 = vunpack.c.l.b16 %v451
      %v596 = vunpack.c.l.b16 %v452
      %v597 = vunpack.c.l.b16 %v453
      %v598 = vunpack.c.l.b16 %v454
      %v599 = vunpack.c.l.b16 %v455
      %v600 = vpack.c.b16 %v537, %v536
      %v601 = vpack.c.b16 %v539, %v538
      %v602 = vpack.c.b16 %v541, %v540
      %v603 = vpack.c.b16 %v543, %v542
      %v604 = vpack.c.b16 %v545, %v544
      %v605 = vpack.c.b16 %v547, %v546
      %v606 = vpack.c.b16 %v549, %v548
      %v607 = vpack.c.b16 %v551, %v550
      %v608 = vpack.c.b16 %v553, %v552
      %v609 = vpack.c.b16 %v555, %v554
      %v610 = vpack.c.b16 %v557, %v556
      %v611 = vpack.c.b16 %v559, %v558
      %v612 = vpack.c.b16 %v561, %v560
      %v613 = vpack.c.b16 %v563, %v562
      %v614 = vpack.c.b16 %v565, %v564
      %v615 = vpack.c.b16 %v567, %v566
      %v616 = vpack.c.b16 %v569, %v568
      %v617 = vpack.c.b16 %v571, %v570
      %v618 = vpack.c.b16 %v573, %v572
      %v619 = vpack.c.b16 %v575, %v574
      %v620 = vpack.c.b16 %v577, %v576
      %v621 = vpack.c.b16 %v579, %v578
      %v622 = vpack.c.b16 %v581, %v580
      %v623 = vpack.c.b16 %v583, %v582
      %v624 = vpack.c.b16 %v585, %v584
      %v625 = vpack.c.b16 %v587, %v586
      %v626 = vpack.c.b16 %v589, %v588
      %v627 = vpack.c.b16 %v591, %v590
      %v628 = vpack.c.b16 %v593, %v592
      %v629 = vpack.c.b16 %v595, %v594
      %v630 = vpack.c.b16 %v597, %v596
      %v631 = vpack.c.b16 %v599, %v598
      %v680 = vunpack.c.l.b16 %v456
      %v681 = vunpack.c.l.b16 %v457
      %v682 = vunpack.c.l.b16 %v458
      %v683 = vunpack.c.l.b16 %v459
      %v684 = vunpack.c.l.b16 %v460
      %v685 = vunpack.c.l.b16 %v461
      %v686 = vunpack.c.l.b16 %v462
      %v687 = vunpack.c.l.b16 %v463
      %v688 = vunpack.c.l.b16 %v464
      %v689 = vunpack.c.l.b16 %v465
      %v690 = vunpack.c.l.b16 %v466
      %v691 = vunpack.c.l.b16 %v467
      %v692 = vunpack.c.l.b16 %v468
      %v693 = vunpack.c.l.b16 %v469
      %v694 = vunpack.c.l.b16 %v470
      %v695 = vunpack.c.l.b16 %v471
      %v696 = vpack.c.b16 %v681, %v680
      %v697 = vpack.c.b16 %v683, %v682
      %v698 = vpack.c.b16 %v685, %v684
      %v699 = vpack.c.b16 %v687, %v686
      %v700 = vpack.c.b16 %v689, %v688
      %v701 = vpack.c.b16 %v691, %v690
      %v702 = vpack.c.b16 %v693, %v692
      %v703 = vpack.c.b16 %v695, %v694
      %712 = vmatprep.subr.bf16.mxu0 0
      %713 = vmatpush1.bf16.msra.mxu0 %v696
      %714 = vmatprep.subr.bf16.mxu0 0
      %715 = vmatpush1.bf16.msra.mxu0 %v697
      %716 = vmatprep.subr.bf16.mxu0 0
      %717 = vmatpush1.bf16.msra.mxu0 %v698
      %718 = vmatprep.subr.bf16.mxu0 0
      %719 = vmatpush1.bf16.msra.mxu0 %v699
      %720 = vmatprep.subr.bf16.mxu0 0
      %721 = vmatpush1.bf16.msra.mxu0 %v700
      %722 = vmatprep.subr.bf16.mxu0 0
      %723 = vmatpush1.bf16.msra.mxu0 %v701
      %724 = vmatprep.subr.bf16.mxu0 0
      %725 = vmatpush1.bf16.msra.mxu0 %v702
      %726 = vmatprep.subr.bf16.mxu0 0
      %727 = vmatpush1.bf16.msra.mxu0 %v703
      %728 = vmatprep.subr.bf16.mxu0 0
      %729 = vmatpush1.bf16.msra.mxu0 0
      %730 = vmatprep.subr.bf16.mxu0 0
      %731 = vmatpush1.bf16.msra.mxu0 0
      %732 = vmatprep.subr.bf16.mxu0 0
      %733 = vmatpush1.bf16.msra.mxu0 0
      %734 = vmatprep.subr.bf16.mxu0 0
      %735 = vmatpush1.bf16.msra.mxu0 0
      %736 = vmatprep.subr.bf16.mxu0 0
      %737 = vmatpush1.bf16.msra.mxu0 0
      %738 = vmatprep.subr.bf16.mxu0 0
      %739 = vmatpush1.bf16.msra.mxu0 0
      %740 = vmatprep.subr.bf16.mxu0 0
      %741 = vmatpush1.bf16.msra.mxu0 0
      %742 = vmatprep.subr.bf16.mxu0 0
      %743 = vmatpush1.bf16.msra.mxu0 0
      %744 = vmatprep.mubr.bf16.mxu0 0
      %745 = vmatmul.mubr.bf16.gmra.mrb[0].mxu0 %v600
      %v746 = vpop.f32.mrb[0].mxu0
      %v747 = vadd.f32 0.0, %v746
      %v748 = vpop.f32.mrb[0].mxu0
      %v749 = vpop.f32.mrb[0].mxu0
      %v750 = vadd.f32 0.0, %v749
      %v751 = vpop.f32.mrb[0].mxu0
      %752 = vmatprep.mubr.bf16.mxu0 0
      %753 = vmatmul.mubr.bf16.gmra.mrb[0].mxu0 %v601
      %v754 = vpop.f32.mrb[0].mxu0
      %v755 = vadd.f32 0.0, %v754
      %v756 = vpop.f32.mrb[0].mxu0
      %v757 = vpop.f32.mrb[0].mxu0
      %v758 = vadd.f32 0.0, %v757
      %v759 = vpop.f32.mrb[0].mxu0
      %760 = vmatprep.mubr.bf16.mxu0 0
      %761 = vmatmul.mubr.bf16.gmra.mrb[0].mxu0 %v602
      %v762 = vpop.f32.mrb[0].mxu0
      %v763 = vadd.f32 0.0, %v762
      %v764 = vpop.f32.mrb[0].mxu0
      %v765 = vpop.f32.mrb[0].mxu0
      %v766 = vadd.f32 0.0, %v765
      %v767 = vpop.f32.mrb[0].mxu0
      %768 = vmatprep.mubr.bf16.mxu0 0
      %769 = vmatmul.mubr.bf16.gmra.mrb[0].mxu0 %v603
      %v770 = vpop.f32.mrb[0].mxu0
      %v771 = vadd.f32 0.0, %v770
      %v772 = vpop.f32.mrb[0].mxu0
      %v773 = vpop.f32.mrb[0].mxu0
      %v774 = vadd.f32 0.0, %v773
      %v775 = vpop.f32.mrb[0].mxu0
      %776 = vmatprep.mubr.bf16.mxu0 0
      %777 = vmatmul.mubr.bf16.gmra.mrb[0].mxu0 %v604
      %v778 = vpop.f32.mrb[0].mxu0
      %v779 = vadd.f32 0.0, %v778
      %v780 = vpop.f32.mrb[0].mxu0
      %v781 = vpop.f32.mrb[0].mxu0
      %v782 = vadd.f32 0.0, %v781
      %v783 = vpop.f32.mrb[0].mxu0
      %784 = vmatprep.mubr.bf16.mxu0 0
      %785 = vmatmul.mubr.bf16.gmra.mrb[0].mxu0 %v605
      %v786 = vpop.f32.mrb[0].mxu0
      %v787 = vadd.f32 0.0, %v786
      %v788 = vpop.f32.mrb[0].mxu0
      %v789 = vpop.f32.mrb[0].mxu0
      %v790 = vadd.f32 0.0, %v789
      %v791 = vpop.f32.mrb[0].mxu0
      %792 = vmatprep.mubr.bf16.mxu0 0
      %793 = vmatmul.mubr.bf16.gmra.mrb[0].mxu0 %v606
      %v794 = vpop.f32.mrb[0].mxu0
      %v795 = vadd.f32 0.0, %v794
      %v796 = vpop.f32.mrb[0].mxu0
      %v797 = vpop.f32.mrb[0].mxu0
      %v798 = vadd.f32 0.0, %v797
      %v799 = vpop.f32.mrb[0].mxu0
      %800 = vmatprep.mubr.bf16.mxu0 0
      %801 = vmatmul.mubr.bf16.gmra.mrb[0].mxu0 %v607
      %v802 = vpop.f32.mrb[0].mxu0
      %v803 = vadd.f32 0.0, %v802
      %v804 = vpop.f32.mrb[0].mxu0
      %v805 = vpop.f32.mrb[0].mxu0
      %v806 = vadd.f32 0.0, %v805
      %v807 = vpop.f32.mrb[0].mxu0
      %808 = vmatprep.mubr.bf16.mxu0 0
      %809 = vmatmul.mubr.bf16.gmra.mrb[0].mxu0 %v608
      %v810 = vpop.f32.mrb[0].mxu0
      %v811 = vadd.f32 0.0, %v810
      %v812 = vpop.f32.mrb[0].mxu0
      %v813 = vpop.f32.mrb[0].mxu0
      %v814 = vadd.f32 0.0, %v813
      %v815 = vpop.f32.mrb[0].mxu0
      %816 = vmatprep.mubr.bf16.mxu0 0
      %817 = vmatmul.mubr.bf16.gmra.mrb[0].mxu0 %v609
      %v818 = vpop.f32.mrb[0].mxu0
      %v819 = vadd.f32 0.0, %v818
      %v820 = vpop.f32.mrb[0].mxu0
      %v821 = vpop.f32.mrb[0].mxu0
      %v822 = vadd.f32 0.0, %v821
      %v823 = vpop.f32.mrb[0].mxu0
      %824 = vmatprep.mubr.bf16.mxu0 0
      %825 = vmatmul.mubr.bf16.gmra.mrb[0].mxu0 %v610
      %v826 = vpop.f32.mrb[0].mxu0
      %v827 = vadd.f32 0.0, %v826
      %v828 = vpop.f32.mrb[0].mxu0
      %v829 = vpop.f32.mrb[0].mxu0
      %v830 = vadd.f32 0.0, %v829
      %v831 = vpop.f32.mrb[0].mxu0
      %832 = vmatprep.mubr.bf16.mxu0 0
      %833 = vmatmul.mubr.bf16.gmra.mrb[0].mxu0 %v611
      %v834 = vpop.f32.mrb[0].mxu0
      %v835 = vadd.f32 0.0, %v834
      %v836 = vpop.f32.mrb[0].mxu0
      %v837 = vpop.f32.mrb[0].mxu0
      %v838 = vadd.f32 0.0, %v837
      %v839 = vpop.f32.mrb[0].mxu0
      %840 = vmatprep.mubr.bf16.mxu0 0
      %841 = vmatmul.mubr.bf16.gmra.mrb[0].mxu0 %v612
      %v842 = vpop.f32.mrb[0].mxu0
      %v843 = vadd.f32 0.0, %v842
      %v844 = vpop.f32.mrb[0].mxu0
      %v845 = vpop.f32.mrb[0].mxu0
      %v846 = vadd.f32 0.0, %v845
      %v847 = vpop.f32.mrb[0].mxu0
      %848 = vmatprep.mubr.bf16.mxu0 0
      %849 = vmatmul.mubr.bf16.gmra.mrb[0].mxu0 %v613
      %v850 = vpop.f32.mrb[0].mxu0
      %v851 = vadd.f32 0.0, %v850
      %v852 = vpop.f32.mrb[0].mxu0
      %v853 = vpop.f32.mrb[0].mxu0
      %v854 = vadd.f32 0.0, %v853
      %v855 = vpop.f32.mrb[0].mxu0
      %856 = vmatprep.mubr.bf16.mxu0 0
      %857 = vmatmul.mubr.bf16.gmra.mrb[0].mxu0 %v614
      %v858 = vpop.f32.mrb[0].mxu0
      %v859 = vadd.f32 0.0, %v858
      %v860 = vpop.f32.mrb[0].mxu0
      %v861 = vpop.f32.mrb[0].mxu0
      %v862 = vadd.f32 0.0, %v861
      %v863 = vpop.f32.mrb[0].mxu0
      %864 = vmatprep.mubr.bf16.mxu0 0
      %865 = vmatmul.mubr.bf16.gmra.mrb[0].mxu0 %v615
      %v866 = vpop.f32.mrb[0].mxu0
      %v867 = vadd.f32 0.0, %v866
      %v868 = vpop.f32.mrb[0].mxu0
      %v869 = vpop.f32.mrb[0].mxu0
      %v870 = vadd.f32 0.0, %v869
      %v871 = vpop.f32.mrb[0].mxu0
      %872 = vmatprep.mubr.bf16.mxu0 0
      %873 = vmatmul.mubr.bf16.gmra.mrb[0].mxu0 %v616
      %v874 = vpop.f32.mrb[0].mxu0
      %v875 = vadd.f32 0.0, %v874
      %v876 = vpop.f32.mrb[0].mxu0
      %v877 = vpop.f32.mrb[0].mxu0
      %v878 = vadd.f32 0.0, %v877
      %v879 = vpop.f32.mrb[0].mxu0
      %880 = vmatprep.mubr.bf16.mxu0 0
      %881 = vmatmul.mubr.bf16.gmra.mrb[0].mxu0 %v617
      %v882 = vpop.f32.mrb[0].mxu0
      %v883 = vadd.f32 0.0, %v882
      %v884 = vpop.f32.mrb[0].mxu0
      %v885 = vpop.f32.mrb[0].mxu0
      %v886 = vadd.f32 0.0, %v885
      %v887 = vpop.f32.mrb[0].mxu0
      %888 = vmatprep.mubr.bf16.mxu0 0
      %889 = vmatmul.mubr.bf16.gmra.mrb[0].mxu0 %v618
      %v890 = vpop.f32.mrb[0].mxu0
      %v891 = vadd.f32 0.0, %v890
      %v892 = vpop.f32.mrb[0].mxu0
      %v893 = vpop.f32.mrb[0].mxu0
      %v894 = vadd.f32 0.0, %v893
      %v895 = vpop.f32.mrb[0].mxu0
      %896 = vmatprep.mubr.bf16.mxu0 0
      %897 = vmatmul.mubr.bf16.gmra.mrb[0].mxu0 %v619
      %v898 = vpop.f32.mrb[0].mxu0
      %v899 = vadd.f32 0.0, %v898
      %v900 = vpop.f32.mrb[0].mxu0
      %v901 = vpop.f32.mrb[0].mxu0
      %v902 = vadd.f32 0.0, %v901
      %v903 = vpop.f32.mrb[0].mxu0
      %904 = vmatprep.mubr.bf16.mxu0 0
      %905 = vmatmul.mubr.bf16.gmra.mrb[0].mxu0 %v620
      %v906 = vpop.f32.mrb[0].mxu0
      %v907 = vadd.f32 0.0, %v906
      %v908 = vpop.f32.mrb[0].mxu0
      %v909 = vpop.f32.mrb[0].mxu0
      %v910 = vadd.f32 0.0, %v909
      %v911 = vpop.f32.mrb[0].mxu0
      %912 = vmatprep.mubr.bf16.mxu0 0
      %913 = vmatmul.mubr.bf16.gmra.mrb[0].mxu0 %v621
      %v914 = vpop.f32.mrb[0].mxu0
      %v915 = vadd.f32 0.0, %v914
      %v916 = vpop.f32.mrb[0].mxu0
      %v917 = vpop.f32.mrb[0].mxu0
      %v918 = vadd.f32 0.0, %v917
      %v919 = vpop.f32.mrb[0].mxu0
      %920 = vmatprep.mubr.bf16.mxu0 0
      %921 = vmatmul.mubr.bf16.gmra.mrb[0].mxu0 %v622
      %v922 = vpop.f32.mrb[0].mxu0
      %v923 = vadd.f32 0.0, %v922
      %v924 = vpop.f32.mrb[0].mxu0
      %v925 = vpop.f32.mrb[0].mxu0
      %v926 = vadd.f32 0.0, %v925
      %v927 = vpop.f32.mrb[0].mxu0
      %928 = vmatprep.mubr.bf16.mxu0 0
      %929 = vmatmul.mubr.bf16.gmra.mrb[0].mxu0 %v623
      %v930 = vpop.f32.mrb[0].mxu0
      %v931 = vadd.f32 0.0, %v930
      %v932 = vpop.f32.mrb[0].mxu0
      %v933 = vpop.f32.mrb[0].mxu0
      %v934 = vadd.f32 0.0, %v933
      %v935 = vpop.f32.mrb[0].mxu0
      %936 = vmatprep.mubr.bf16.mxu0 0
      %937 = vmatmul.mubr.bf16.gmra.mrb[0].mxu0 %v624
      %v938 = vpop.f32.mrb[0].mxu0
      %v939 = vadd.f32 0.0, %v938
      %v940 = vpop.f32.mrb[0].mxu0
      %v941 = vpop.f32.mrb[0].mxu0
      %v942 = vadd.f32 0.0, %v941
      %v943 = vpop.f32.mrb[0].mxu0
      %944 = vmatprep.mubr.bf16.mxu0 0
      %945 = vmatmul.mubr.bf16.gmra.mrb[0].mxu0 %v625
      %v946 = vpop.f32.mrb[0].mxu0
      %v947 = vadd.f32 0.0, %v946
      %v948 = vpop.f32.mrb[0].mxu0
      %v949 = vpop.f32.mrb[0].mxu0
      %v950 = vadd.f32 0.0, %v949
      %v951 = vpop.f32.mrb[0].mxu0
      %952 = vmatprep.mubr.bf16.mxu0 0
      %953 = vmatmul.mubr.bf16.gmra.mrb[0].mxu0 %v626
      %v954 = vpop.f32.mrb[0].mxu0
      %v955 = vadd.f32 0.0, %v954
      %v956 = vpop.f32.mrb[0].mxu0
      %v957 = vpop.f32.mrb[0].mxu0
      %v958 = vadd.f32 0.0, %v957
      %v959 = vpop.f32.mrb[0].mxu0
      %960 = vmatprep.mubr.bf16.mxu0 0
      %961 = vmatmul.mubr.bf16.gmra.mrb[0].mxu0 %v627
      %v962 = vpop.f32.mrb[0].mxu0
      %v963 = vadd.f32 0.0, %v962
      %v964 = vpop.f32.mrb[0].mxu0
      %v965 = vpop.f32.mrb[0].mxu0
      %v966 = vadd.f32 0.0, %v965
      %v967 = vpop.f32.mrb[0].mxu0
      %968 = vmatprep.mubr.bf16.mxu0 0
      %969 = vmatmul.mubr.bf16.gmra.mrb[0].mxu0 %v628
      %v970 = vpop.f32.mrb[0].mxu0
      %v971 = vadd.f32 0.0, %v970
      %v972 = vpop.f32.mrb[0].mxu0
      %v973 = vpop.f32.mrb[0].mxu0
      %v974 = vadd.f32 0.0, %v973
      %v975 = vpop.f32.mrb[0].mxu0
      %976 = vmatprep.mubr.bf16.mxu0 0
      %977 = vmatmul.mubr.bf16.gmra.mrb[0].mxu0 %v629
      %v978 = vpop.f32.mrb[0].mxu0
      %v979 = vadd.f32 0.0, %v978
      %v980 = vpop.f32.mrb[0].mxu0
      %v981 = vpop.f32.mrb[0].mxu0
      %v982 = vadd.f32 0.0, %v981
      %v983 = vpop.f32.mrb[0].mxu0
      %984 = vmatprep.mubr.bf16.mxu0 0
      %985 = vmatmul.mubr.bf16.gmra.mrb[0].mxu0 %v630
      %v986 = vpop.f32.mrb[0].mxu0
      %v987 = vadd.f32 0.0, %v986
      %v988 = vpop.f32.mrb[0].mxu0
      %v989 = vpop.f32.mrb[0].mxu0
      %v990 = vadd.f32 0.0, %v989
      %v991 = vpop.f32.mrb[0].mxu0
      %992 = vmatprep.mubr.bf16.mxu0 0
      %993 = vmatmul.mubr.bf16.gmra.mrb[0].mxu0 %v631
      %v994 = vpop.f32.mrb[0].mxu0
      %v995 = vadd.f32 0.0, %v994
      %v996 = vpop.f32.mrb[0].mxu0
      %v997 = vpop.f32.mrb[0].mxu0
      %v998 = vadd.f32 0.0, %v997
      %v999 = vpop.f32.mrb[0].mxu0
      %1000 = vdwg.mxu0
      %v1001 = vadd.f32 %v328, %v747
      %v1002 = vadd.f32 %v329, %v750
      %v1003 = vadd.f32 %v330, %v755
      %v1004 = vadd.f32 %v331, %v758
      %v1005 = vadd.f32 %v332, %v763
      %v1006 = vadd.f32 %v333, %v766
      %v1007 = vadd.f32 %v334, %v771
      %v1008 = vadd.f32 %v335, %v774
      %v1009 = vadd.f32 %v336, %v779
      %v1010 = vadd.f32 %v337, %v782
      %v1011 = vadd.f32 %v338, %v787
      %v1012 = vadd.f32 %v339, %v790
      %v1013 = vadd.f32 %v340, %v795
      %v1014 = vadd.f32 %v341, %v798
      %v1015 = vadd.f32 %v342, %v803
      %v1016 = vadd.f32 %v343, %v806
      %v1017 = vadd.f32 %v344, %v811
      %v1018 = vadd.f32 %v345, %v814
      %v1019 = vadd.f32 %v346, %v819
      %v1020 = vadd.f32 %v347, %v822
      %v1021 = vadd.f32 %v348, %v827
      %v1022 = vadd.f32 %v349, %v830
      %v1023 = vadd.f32 %v350, %v835
      %v1024 = vadd.f32 %v351, %v838
      %v1025 = vadd.f32 %v352, %v843
      %v1026 = vadd.f32 %v353, %v846
      %v1027 = vadd.f32 %v354, %v851
      %v1028 = vadd.f32 %v355, %v854
      %v1029 = vadd.f32 %v356, %v859
      %v1030 = vadd.f32 %v357, %v862
      %v1031 = vadd.f32 %v358, %v867
      %v1032 = vadd.f32 %v359, %v870
      %v1033 = vadd.f32 %v360, %v875
      %v1034 = vadd.f32 %v361, %v878
      %v1035 = vadd.f32 %v362, %v883
      %v1036 = vadd.f32 %v363, %v886
      %v1037 = vadd.f32 %v364, %v891
      %v1038 = vadd.f32 %v365, %v894
      %v1039 = vadd.f32 %v366, %v899
      %v1040 = vadd.f32 %v367, %v902
      %v1041 = vadd.f32 %v368, %v907
      %v1042 = vadd.f32 %v369, %v910
      %v1043 = vadd.f32 %v370, %v915
      %v1044 = vadd.f32 %v371, %v918
      %v1045 = vadd.f32 %v372, %v923
      %v1046 = vadd.f32 %v373, %v926
      %v1047 = vadd.f32 %v374, %v931
      %v1048 = vadd.f32 %v375, %v934
      %v1049 = vadd.f32 %v376, %v939
      %v1050 = vadd.f32 %v377, %v942
      %v1051 = vadd.f32 %v378, %v947
      %v1052 = vadd.f32 %v379, %v950
      %v1053 = vadd.f32 %v380, %v955
      %v1054 = vadd.f32 %v381, %v958
      %v1055 = vadd.f32 %v382, %v963
      %v1056 = vadd.f32 %v383, %v966
      %v1057 = vadd.f32 %v384, %v971
      %v1058 = vadd.f32 %v385, %v974
      %v1059 = vadd.f32 %v386, %v979
      %v1060 = vadd.f32 %v387, %v982
      %v1061 = vadd.f32 %v388, %v987
      %v1062 = vadd.f32 %v389, %v990
      %v1063 = vadd.f32 %v390, %v995
      %v1064 = vadd.f32 %v391, %v998
      %1065 = vst [vmem:[#allocation2] sm:$0xff] %v1001
      %1066 = vst [vmem:[#allocation2 + $0x8] sm:$0xff] %v1002
      %1067 = vst [vmem:[#allocation2 + $0x10] sm:$0xff] %v1003
      %1068 = vst [vmem:[#allocation2 + $0x18] sm:$0xff] %v1004
      %1069 = vst [vmem:[#allocation2 + $0x20] sm:$0xff] %v1005
      %1070 = vst [vmem:[#allocation2 + $0x28] sm:$0xff] %v1006
      %1071 = vst [vmem:[#allocation2 + $0x30] sm:$0xff] %v1007
      %1072 = vst [vmem:[#allocation2 + $0x38] sm:$0xff] %v1008
      %1073 = vst [vmem:[#allocation2 + $0x40] sm:$0xff] %v1009
      %1074 = vst [vmem:[#allocation2 + $0x48] sm:$0xff] %v1010
      %1075 = vst [vmem:[#allocation2 + $0x50] sm:$0xff] %v1011
      %1076 = vst [vmem:[#allocation2 + $0x58] sm:$0xff] %v1012
      %1077 = vst [vmem:[#allocation2 + $0x60] sm:$0xff] %v1013
      %1078 = vst [vmem:[#allocation2 + $0x68] sm:$0xff] %v1014
      %1079 = vst [vmem:[#allocation2 + $0x70] sm:$0xff] %v1015
      %1080 = vst [vmem:[#allocation2 + $0x78] sm:$0xff] %v1016
      %1081 = vst [vmem:[#allocation2 + $0x80] sm:$0xff] %v1017
      %1082 = vst [vmem:[#allocation2 + $0x88] sm:$0xff] %v1018
      %1083 = vst [vmem:[#allocation2 + $0x90] sm:$0xff] %v1019
      %1084 = vst [vmem:[#allocation2 + $0x98] sm:$0xff] %v1020
      %1085 = vst [vmem:[#allocation2 + $0xa0] sm:$0xff] %v1021
      %1086 = vst [vmem:[#allocation2 + $0xa8] sm:$0xff] %v1022
      %1087 = vst [vmem:[#allocation2 + $0xb0] sm:$0xff] %v1023
      %1088 = vst [vmem:[#allocation2 + $0xb8] sm:$0xff] %v1024
      %1089 = vst [vmem:[#allocation2 + $0xc0] sm:$0xff] %v1025
      %1090 = vst [vmem:[#allocation2 + $0xc8] sm:$0xff] %v1026
      %1091 = vst [vmem:[#allocation2 + $0xd0] sm:$0xff] %v1027
      %1092 = vst [vmem:[#allocation2 + $0xd8] sm:$0xff] %v1028
      %1093 = vst [vmem:[#allocation2 + $0xe0] sm:$0xff] %v1029
      %1094 = vst [vmem:[#allocation2 + $0xe8] sm:$0xff] %v1030
      %1095 = vst [vmem:[#allocation2 + $0xf0] sm:$0xff] %v1031
      %1096 = vst [vmem:[#allocation2 + $0xf8] sm:$0xff] %v1032
      %1097 = vst [vmem:[#allocation2 + $0x100] sm:$0xff] %v1033
      %1098 = vst [vmem:[#allocation2 + $0x108] sm:$0xff] %v1034
      %1099 = vst [vmem:[#allocation2 + $0x110] sm:$0xff] %v1035
      %1100 = vst [vmem:[#allocation2 + $0x118] sm:$0xff] %v1036
      %1101 = vst [vmem:[#allocation2 + $0x120] sm:$0xff] %v1037
      %1102 = vst [vmem:[#allocation2 + $0x128] sm:$0xff] %v1038
      %1103 = vst [vmem:[#allocation2 + $0x130] sm:$0xff] %v1039
      %1104 = vst [vmem:[#allocation2 + $0x138] sm:$0xff] %v1040
      %1105 = vst [vmem:[#allocation2 + $0x140] sm:$0xff] %v1041
      %1106 = vst [vmem:[#allocation2 + $0x148] sm:$0xff] %v1042
      %1107 = vst [vmem:[#allocation2 + $0x150] sm:$0xff] %v1043
      %1108 = vst [vmem:[#allocation2 + $0x158] sm:$0xff] %v1044
      %1109 = vst [vmem:[#allocation2 + $0x160] sm:$0xff] %v1045
      %1110 = vst [vmem:[#allocation2 + $0x168] sm:$0xff] %v1046
      %1111 = vst [vmem:[#allocation2 + $0x170] sm:$0xff] %v1047
      %1112 = vst [vmem:[#allocation2 + $0x178] sm:$0xff] %v1048
      %1113 = vst [vmem:[#allocation2 + $0x180] sm:$0xff] %v1049
      %1114 = vst [vmem:[#allocation2 + $0x188] sm:$0xff] %v1050
      %1115 = vst [vmem:[#allocation2 + $0x190] sm:$0xff] %v1051
      %1116 = vst [vmem:[#allocation2 + $0x198] sm:$0xff] %v1052
      %1117 = vst [vmem:[#allocation2 + $0x1a0] sm:$0xff] %v1053
      %1118 = vst [vmem:[#allocation2 + $0x1a8] sm:$0xff] %v1054
      %1119 = vst [vmem:[#allocation2 + $0x1b0] sm:$0xff] %v1055
      %1120 = vst [vmem:[#allocation2 + $0x1b8] sm:$0xff] %v1056
      %1121 = vst [vmem:[#allocation2 + $0x1c0] sm:$0xff] %v1057
      %1122 = vst [vmem:[#allocation2 + $0x1c8] sm:$0xff] %v1058
      %1123 = vst [vmem:[#allocation2 + $0x1d0] sm:$0xff] %v1059
      %1124 = vst [vmem:[#allocation2 + $0x1d8] sm:$0xff] %v1060
      %1125 = vst [vmem:[#allocation2 + $0x1e0] sm:$0xff] %v1061
      %1126 = vst [vmem:[#allocation2 + $0x1e8] sm:$0xff] %v1062
      %1127 = vst [vmem:[#allocation2 + $0x1f0] sm:$0xff] %v1063
      %1128 = vst [vmem:[#allocation2 + $0x1f8] sm:$0xff] %v1064
      // Predicated region
      $region37: #{hyper_analysis_ex.3} parent=31 // pred_check
        %p1129 = pneg %p260
      $region38: #{hyper_analysis_ex.3} parent=31 // pred_check_branch
        %1131 = sbr.rel (%p1129) target = $region40
      $region39: #{hyper_analysis_ex.3} parent=31 // pred_region
        %v1132 = vld [vmem:[#allocation2] sm:$0xff]
        %v1133 = vld [vmem:[#allocation2 + $0x8] sm:$0xff]
        %v1134 = vld [vmem:[#allocation2 + $0x10] sm:$0xff]
        %v1135 = vld [vmem:[#allocation2 + $0x18] sm:$0xff]
        %v1136 = vld [vmem:[#allocation2 + $0x20] sm:$0xff]
        %v1137 = vld [vmem:[#allocation2 + $0x28] sm:$0xff]
        %v1138 = vld [vmem:[#allocation2 + $0x30] sm:$0xff]
        %v1139 = vld [vmem:[#allocation2 + $0x38] sm:$0xff]
        %v1140 = vld [vmem:[#allocation2 + $0x40] sm:$0xff]
        %v1141 = vld [vmem:[#allocation2 + $0x48] sm:$0xff]
        %v1142 = vld [vmem:[#allocation2 + $0x50] sm:$0xff]
        %v1143 = vld [vmem:[#allocation2 + $0x58] sm:$0xff]
        %v1144 = vld [vmem:[#allocation2 + $0x60] sm:$0xff]
        %v1145 = vld [vmem:[#allocation2 + $0x68] sm:$0xff]
        %v1146 = vld [vmem:[#allocation2 + $0x70] sm:$0xff]
        %v1147 = vld [vmem:[#allocation2 + $0x78] sm:$0xff]
        %v1148 = vld [vmem:[#allocation2 + $0x80] sm:$0xff]
        %v1149 = vld [vmem:[#allocation2 + $0x88] sm:$0xff]
        %v1150 = vld [vmem:[#allocation2 + $0x90] sm:$0xff]
        %v1151 = vld [vmem:[#allocation2 + $0x98] sm:$0xff]
        %v1152 = vld [vmem:[#allocation2 + $0xa0] sm:$0xff]
        %v1153 = vld [vmem:[#allocation2 + $0xa8] sm:$0xff]
        %v1154 = vld [vmem:[#allocation2 + $0xb0] sm:$0xff]
        %v1155 = vld [vmem:[#allocation2 + $0xb8] sm:$0xff]
        %v1156 = vld [vmem:[#allocation2 + $0xc0] sm:$0xff]
        %v1157 = vld [vmem:[#allocation2 + $0xc8] sm:$0xff]
        %v1158 = vld [vmem:[#allocation2 + $0xd0] sm:$0xff]
        %v1159 = vld [vmem:[#allocation2 + $0xd8] sm:$0xff]
        %v1160 = vld [vmem:[#allocation2 + $0xe0] sm:$0xff]
        %v1161 = vld [vmem:[#allocation2 + $0xe8] sm:$0xff]
        %v1162 = vld [vmem:[#allocation2 + $0xf0] sm:$0xff]
        %v1163 = vld [vmem:[#allocation2 + $0xf8] sm:$0xff]
        %v1164 = vld [vmem:[#allocation2 + $0x100] sm:$0xff]
        %v1165 = vld [vmem:[#allocation2 + $0x108] sm:$0xff]
        %v1166 = vld [vmem:[#allocation2 + $0x110] sm:$0xff]
        %v1167 = vld [vmem:[#allocation2 + $0x118] sm:$0xff]
        %v1168 = vld [vmem:[#allocation2 + $0x120] sm:$0xff]
        %v1169 = vld [vmem:[#allocation2 + $0x128] sm:$0xff]
        %v1170 = vld [vmem:[#allocation2 + $0x130] sm:$0xff]
        %v1171 = vld [vmem:[#allocation2 + $0x138] sm:$0xff]
        %v1172 = vld [vmem:[#allocation2 + $0x140] sm:$0xff]
        %v1173 = vld [vmem:[#allocation2 + $0x148] sm:$0xff]
        %v1174 = vld [vmem:[#allocation2 + $0x150] sm:$0xff]
        %v1175 = vld [vmem:[#allocation2 + $0x158] sm:$0xff]
        %v1176 = vld [vmem:[#allocation2 + $0x160] sm:$0xff]
        %v1177 = vld [vmem:[#allocation2 + $0x168] sm:$0xff]
        %v1178 = vld [vmem:[#allocation2 + $0x170] sm:$0xff]
        %v1179 = vld [vmem:[#allocation2 + $0x178] sm:$0xff]
        %v1180 = vld [vmem:[#allocation2 + $0x180] sm:$0xff]
        %v1181 = vld [vmem:[#allocation2 + $0x188] sm:$0xff]
        %v1182 = vld [vmem:[#allocation2 + $0x190] sm:$0xff]
        %v1183 = vld [vmem:[#allocation2 + $0x198] sm:$0xff]
        %v1184 = vld [vmem:[#allocation2 + $0x1a0] sm:$0xff]
        %v1185 = vld [vmem:[#allocation2 + $0x1a8] sm:$0xff]
        %v1186 = vld [vmem:[#allocation2 + $0x1b0] sm:$0xff]
        %v1187 = vld [vmem:[#allocation2 + $0x1b8] sm:$0xff]
        %v1188 = vld [vmem:[#allocation2 + $0x1c0] sm:$0xff]
        %v1189 = vld [vmem:[#allocation2 + $0x1c8] sm:$0xff]
        %v1190 = vld [vmem:[#allocation2 + $0x1d0] sm:$0xff]
        %v1191 = vld [vmem:[#allocation2 + $0x1d8] sm:$0xff]
        %v1192 = vld [vmem:[#allocation2 + $0x1e0] sm:$0xff]
        %v1193 = vld [vmem:[#allocation2 + $0x1e8] sm:$0xff]
        %v1194 = vld [vmem:[#allocation2 + $0x1f0] sm:$0xff]
        %v1195 = vld [vmem:[#allocation2 + $0x1f8] sm:$0xff]
        %v1196 = vld [vmem:[%s249] sm:$0x1]
        %v1198 = vlaneseq
        %v1199 = vshrl.u32 %v1198, 7
        %v1200 = vsub.s32 0, %v1199
        %v1201 = vrot.slane %v1196, %v1200
        %v1203 = vadd.f32 %v1132, %v1201
        %v1204 = vadd.f32 %v1133, %v1201
        %v1205 = vadd.f32 %v1134, %v1201
        %v1206 = vadd.f32 %v1135, %v1201
        %v1207 = vadd.f32 %v1136, %v1201
        %v1208 = vadd.f32 %v1137, %v1201
        %v1209 = vadd.f32 %v1138, %v1201
        %v1210 = vadd.f32 %v1139, %v1201
        %v1211 = vadd.f32 %v1140, %v1201
        %v1212 = vadd.f32 %v1141, %v1201
        %v1213 = vadd.f32 %v1142, %v1201
        %v1214 = vadd.f32 %v1143, %v1201
        %v1215 = vadd.f32 %v1144, %v1201
        %v1216 = vadd.f32 %v1145, %v1201
        %v1217 = vadd.f32 %v1146, %v1201
        %v1218 = vadd.f32 %v1147, %v1201
        %v1219 = vadd.f32 %v1148, %v1201
        %v1220 = vadd.f32 %v1149, %v1201
        %v1221 = vadd.f32 %v1150, %v1201
        %v1222 = vadd.f32 %v1151, %v1201
        %v1223 = vadd.f32 %v1152, %v1201
        %v1224 = vadd.f32 %v1153, %v1201
        %v1225 = vadd.f32 %v1154, %v1201
        %v1226 = vadd.f32 %v1155, %v1201
        %v1227 = vadd.f32 %v1156, %v1201
        %v1228 = vadd.f32 %v1157, %v1201
        %v1229 = vadd.f32 %v1158, %v1201
        %v1230 = vadd.f32 %v1159, %v1201
        %v1231 = vadd.f32 %v1160, %v1201
        %v1232 = vadd.f32 %v1161, %v1201
        %v1233 = vadd.f32 %v1162, %v1201
        %v1234 = vadd.f32 %v1163, %v1201
        %v1235 = vadd.f32 %v1164, %v1201
        %v1236 = vadd.f32 %v1165, %v1201
        %v1237 = vadd.f32 %v1166, %v1201
        %v1238 = vadd.f32 %v1167, %v1201
        %v1239 = vadd.f32 %v1168, %v1201
        %v1240 = vadd.f32 %v1169, %v1201
        %v1241 = vadd.f32 %v1170, %v1201
        %v1242 = vadd.f32 %v1171, %v1201
        %v1243 = vadd.f32 %v1172, %v1201
        %v1244 = vadd.f32 %v1173, %v1201
        %v1245 = vadd.f32 %v1174, %v1201
        %v1246 = vadd.f32 %v1175, %v1201
        %v1247 = vadd.f32 %v1176, %v1201
        %v1248 = vadd.f32 %v1177, %v1201
        %v1249 = vadd.f32 %v1178, %v1201
        %v1250 = vadd.f32 %v1179, %v1201
        %v1251 = vadd.f32 %v1180, %v1201
        %v1252 = vadd.f32 %v1181, %v1201
        %v1253 = vadd.f32 %v1182, %v1201
        %v1254 = vadd.f32 %v1183, %v1201
        %v1255 = vadd.f32 %v1184, %v1201
        %v1256 = vadd.f32 %v1185, %v1201
        %v1257 = vadd.f32 %v1186, %v1201
        %v1258 = vadd.f32 %v1187, %v1201
        %v1259 = vadd.f32 %v1188, %v1201
        %v1260 = vadd.f32 %v1189, %v1201
        %v1261 = vadd.f32 %v1190, %v1201
        %v1262 = vadd.f32 %v1191, %v1201
        %v1263 = vadd.f32 %v1192, %v1201
        %v1264 = vadd.f32 %v1193, %v1201
        %v1265 = vadd.f32 %v1194, %v1201
        %v1266 = vadd.f32 %v1195, %v1201
        %v1267 = vmax.f32 %v1203, 0.0
        %v1268 = vmax.f32 %v1204, 0.0
        %v1269 = vmax.f32 %v1205, 0.0
        %v1270 = vmax.f32 %v1206, 0.0
        %v1271 = vmax.f32 %v1207, 0.0
        %v1272 = vmax.f32 %v1208, 0.0
        %v1273 = vmax.f32 %v1209, 0.0
        %v1274 = vmax.f32 %v1210, 0.0
        %v1275 = vmax.f32 %v1211, 0.0
        %v1276 = vmax.f32 %v1212, 0.0
        %v1277 = vmax.f32 %v1213, 0.0
        %v1278 = vmax.f32 %v1214, 0.0
        %v1279 = vmax.f32 %v1215, 0.0
        %v1280 = vmax.f32 %v1216, 0.0
        %v1281 = vmax.f32 %v1217, 0.0
        %v1282 = vmax.f32 %v1218, 0.0
        %v1283 = vmax.f32 %v1219, 0.0
        %v1284 = vmax.f32 %v1220, 0.0
        %v1285 = vmax.f32 %v1221, 0.0
        %v1286 = vmax.f32 %v1222, 0.0
        %v1287 = vmax.f32 %v1223, 0.0
        %v1288 = vmax.f32 %v1224, 0.0
        %v1289 = vmax.f32 %v1225, 0.0
        %v1290 = vmax.f32 %v1226, 0.0
        %v1291 = vmax.f32 %v1227, 0.0
        %v1292 = vmax.f32 %v1228, 0.0
        %v1293 = vmax.f32 %v1229, 0.0
        %v1294 = vmax.f32 %v1230, 0.0
        %v1295 = vmax.f32 %v1231, 0.0
        %v1296 = vmax.f32 %v1232, 0.0
        %v1297 = vmax.f32 %v1233, 0.0
        %v1298 = vmax.f32 %v1234, 0.0
        %v1299 = vmax.f32 %v1235, 0.0
        %v1300 = vmax.f32 %v1236, 0.0
        %v1301 = vmax.f32 %v1237, 0.0
        %v1302 = vmax.f32 %v1238, 0.0
        %v1303 = vmax.f32 %v1239, 0.0
        %v1304 = vmax.f32 %v1240, 0.0
        %v1305 = vmax.f32 %v1241, 0.0
        %v1306 = vmax.f32 %v1242, 0.0
        %v1307 = vmax.f32 %v1243, 0.0
        %v1308 = vmax.f32 %v1244, 0.0
        %v1309 = vmax.f32 %v1245, 0.0
        %v1310 = vmax.f32 %v1246, 0.0
        %v1311 = vmax.f32 %v1247, 0.0
        %v1312 = vmax.f32 %v1248, 0.0
        %v1313 = vmax.f32 %v1249, 0.0
        %v1314 = vmax.f32 %v1250, 0.0
        %v1315 = vmax.f32 %v1251, 0.0
        %v1316 = vmax.f32 %v1252, 0.0
        %v1317 = vmax.f32 %v1253, 0.0
        %v1318 = vmax.f32 %v1254, 0.0
        %v1319 = vmax.f32 %v1255, 0.0
        %v1320 = vmax.f32 %v1256, 0.0
        %v1321 = vmax.f32 %v1257, 0.0
        %v1322 = vmax.f32 %v1258, 0.0
        %v1323 = vmax.f32 %v1259, 0.0
        %v1324 = vmax.f32 %v1260, 0.0
        %v1325 = vmax.f32 %v1261, 0.0
        %v1326 = vmax.f32 %v1262, 0.0
        %v1327 = vmax.f32 %v1263, 0.0
        %v1328 = vmax.f32 %v1264, 0.0
        %v1329 = vmax.f32 %v1265, 0.0
        %v1330 = vmax.f32 %v1266, 0.0
        %v1331 = vpack.c.bf16 %v1268, %v1267
        %v1332 = vpack.c.bf16 %v1270, %v1269
        %v1333 = vpack.c.bf16 %v1272, %v1271
        %v1334 = vpack.c.bf16 %v1274, %v1273
        %v1335 = vpack.c.bf16 %v1276, %v1275
        %v1336 = vpack.c.bf16 %v1278, %v1277
        %v1337 = vpack.c.bf16 %v1280, %v1279
        %v1338 = vpack.c.bf16 %v1282, %v1281
        %v1339 = vpack.c.bf16 %v1284, %v1283
        %v1340 = vpack.c.bf16 %v1286, %v1285
        %v1341 = vpack.c.bf16 %v1288, %v1287
        %v1342 = vpack.c.bf16 %v1290, %v1289
        %v1343 = vpack.c.bf16 %v1292, %v1291
        %v1344 = vpack.c.bf16 %v1294, %v1293
        %v1345 = vpack.c.bf16 %v1296, %v1295
        %v1346 = vpack.c.bf16 %v1298, %v1297
        %v1347 = vpack.c.bf16 %v1300, %v1299
        %v1348 = vpack.c.bf16 %v1302, %v1301
        %v1349 = vpack.c.bf16 %v1304, %v1303
        %v1350 = vpack.c.bf16 %v1306, %v1305
        %v1351 = vpack.c.bf16 %v1308, %v1307
        %v1352 = vpack.c.bf16 %v1310, %v1309
        %v1353 = vpack.c.bf16 %v1312, %v1311
        %v1354 = vpack.c.bf16 %v1314, %v1313
        %v1355 = vpack.c.bf16 %v1316, %v1315
        %v1356 = vpack.c.bf16 %v1318, %v1317
        %v1357 = vpack.c.bf16 %v1320, %v1319
        %v1358 = vpack.c.bf16 %v1322, %v1321
        %v1359 = vpack.c.bf16 %v1324, %v1323
        %v1360 = vpack.c.bf16 %v1326, %v1325
        %v1361 = vpack.c.bf16 %v1328, %v1327
        %v1362 = vpack.c.bf16 %v1330, %v1329
        %v1395 = vunpack.c.l.b16 %v1331
        %v1396 = vunpack.c.h.b16 %v1331
        %v1397 = vunpack.c.l.b16 %v1332
        %v1398 = vunpack.c.h.b16 %v1332
        %v1399 = vunpack.c.l.b16 %v1333
        %v1400 = vunpack.c.h.b16 %v1333
        %v1401 = vunpack.c.l.b16 %v1334
        %v1402 = vunpack.c.h.b16 %v1334
        %v1403 = vunpack.c.l.b16 %v1335
        %v1404 = vunpack.c.h.b16 %v1335
        %v1405 = vunpack.c.l.b16 %v1336
        %v1406 = vunpack.c.h.b16 %v1336
        %v1407 = vunpack.c.l.b16 %v1337
        %v1408 = vunpack.c.h.b16 %v1337
        %v1409 = vunpack.c.l.b16 %v1338
        %v1410 = vunpack.c.h.b16 %v1338
        %v1411 = vunpack.c.l.b16 %v1339
        %v1412 = vunpack.c.h.b16 %v1339
        %v1413 = vunpack.c.l.b16 %v1340
        %v1414 = vunpack.c.h.b16 %v1340
        %v1415 = vunpack.c.l.b16 %v1341
        %v1416 = vunpack.c.h.b16 %v1341
        %v1417 = vunpack.c.l.b16 %v1342
        %v1418 = vunpack.c.h.b16 %v1342
        %v1419 = vunpack.c.l.b16 %v1343
        %v1420 = vunpack.c.h.b16 %v1343
        %v1421 = vunpack.c.l.b16 %v1344
        %v1422 = vunpack.c.h.b16 %v1344
        %v1423 = vunpack.c.l.b16 %v1345
        %v1424 = vunpack.c.h.b16 %v1345
        %v1425 = vunpack.c.l.b16 %v1346
        %v1426 = vunpack.c.h.b16 %v1346
        %v1427 = vunpack.c.l.b16 %v1347
        %v1428 = vunpack.c.h.b16 %v1347
        %v1429 = vunpack.c.l.b16 %v1348
        %v1430 = vunpack.c.h.b16 %v1348
        %v1431 = vunpack.c.l.b16 %v1349
        %v1432 = vunpack.c.h.b16 %v1349
        %v1433 = vunpack.c.l.b16 %v1350
        %v1434 = vunpack.c.h.b16 %v1350
        %v1435 = vunpack.c.l.b16 %v1351
        %v1436 = vunpack.c.h.b16 %v1351
        %v1437 = vunpack.c.l.b16 %v1352
        %v1438 = vunpack.c.h.b16 %v1352
        %v1439 = vunpack.c.l.b16 %v1353
        %v1440 = vunpack.c.h.b16 %v1353
        %v1441 = vunpack.c.l.b16 %v1354
        %v1442 = vunpack.c.h.b16 %v1354
        %v1443 = vunpack.c.l.b16 %v1355
        %v1444 = vunpack.c.h.b16 %v1355
        %v1445 = vunpack.c.l.b16 %v1356
        %v1446 = vunpack.c.h.b16 %v1356
        %v1447 = vunpack.c.l.b16 %v1357
        %v1448 = vunpack.c.h.b16 %v1357
        %v1449 = vunpack.c.l.b16 %v1358
        %v1450 = vunpack.c.h.b16 %v1358
        %v1451 = vunpack.c.l.b16 %v1359
        %v1452 = vunpack.c.h.b16 %v1359
        %v1453 = vunpack.c.l.b16 %v1360
        %v1454 = vunpack.c.h.b16 %v1360
        %v1455 = vunpack.c.l.b16 %v1361
        %v1456 = vunpack.c.h.b16 %v1361
        %v1457 = vunpack.c.l.b16 %v1362
        %v1458 = vunpack.c.h.b16 %v1362
        %v1459 = vpack.c.b16 %v1395, %v1395
        %v1460 = vpack.c.b16 %v1396, %v1396
        %v1461 = vpack.c.b16 %v1397, %v1397
        %v1462 = vpack.c.b16 %v1398, %v1398
        %v1463 = vpack.c.b16 %v1399, %v1399
        %v1464 = vpack.c.b16 %v1400, %v1400
        %v1465 = vpack.c.b16 %v1401, %v1401
        %v1466 = vpack.c.b16 %v1402, %v1402
        %v1467 = vpack.c.b16 %v1403, %v1403
        %v1468 = vpack.c.b16 %v1404, %v1404
        %v1469 = vpack.c.b16 %v1405, %v1405
        %v1470 = vpack.c.b16 %v1406, %v1406
        %v1471 = vpack.c.b16 %v1407, %v1407
        %v1472 = vpack.c.b16 %v1408, %v1408
        %v1473 = vpack.c.b16 %v1409, %v1409
        %v1474 = vpack.c.b16 %v1410, %v1410
        %v1475 = vpack.c.b16 %v1411, %v1411
        %v1476 = vpack.c.b16 %v1412, %v1412
        %v1477 = vpack.c.b16 %v1413, %v1413
        %v1478 = vpack.c.b16 %v1414, %v1414
        %v1479 = vpack.c.b16 %v1415, %v1415
        %v1480 = vpack.c.b16 %v1416, %v1416
        %v1481 = vpack.c.b16 %v1417, %v1417
        %v1482 = vpack.c.b16 %v1418, %v1418
        %v1483 = vpack.c.b16 %v1419, %v1419
        %v1484 = vpack.c.b16 %v1420, %v1420
        %v1485 = vpack.c.b16 %v1421, %v1421
        %v1486 = vpack.c.b16 %v1422, %v1422
        %v1487 = vpack.c.b16 %v1423, %v1423
        %v1488 = vpack.c.b16 %v1424, %v1424
        %v1489 = vpack.c.b16 %v1425, %v1425
        %v1490 = vpack.c.b16 %v1426, %v1426
        %v1491 = vpack.c.b16 %v1427, %v1427
        %v1492 = vpack.c.b16 %v1428, %v1428
        %v1493 = vpack.c.b16 %v1429, %v1429
        %v1494 = vpack.c.b16 %v1430, %v1430
        %v1495 = vpack.c.b16 %v1431, %v1431
        %v1496 = vpack.c.b16 %v1432, %v1432
        %v1497 = vpack.c.b16 %v1433, %v1433
        %v1498 = vpack.c.b16 %v1434, %v1434
        %v1499 = vpack.c.b16 %v1435, %v1435
        %v1500 = vpack.c.b16 %v1436, %v1436
        %v1501 = vpack.c.b16 %v1437, %v1437
        %v1502 = vpack.c.b16 %v1438, %v1438
        %v1503 = vpack.c.b16 %v1439, %v1439
        %v1504 = vpack.c.b16 %v1440, %v1440
        %v1505 = vpack.c.b16 %v1441, %v1441
        %v1506 = vpack.c.b16 %v1442, %v1442
        %v1507 = vpack.c.b16 %v1443, %v1443
        %v1508 = vpack.c.b16 %v1444, %v1444
        %v1509 = vpack.c.b16 %v1445, %v1445
        %v1510 = vpack.c.b16 %v1446, %v1446
        %v1511 = vpack.c.b16 %v1447, %v1447
        %v1512 = vpack.c.b16 %v1448, %v1448
        %v1513 = vpack.c.b16 %v1449, %v1449
        %v1514 = vpack.c.b16 %v1450, %v1450
        %v1515 = vpack.c.b16 %v1451, %v1451
        %v1516 = vpack.c.b16 %v1452, %v1452
        %v1517 = vpack.c.b16 %v1453, %v1453
        %v1518 = vpack.c.b16 %v1454, %v1454
        %v1519 = vpack.c.b16 %v1455, %v1455
        %v1520 = vpack.c.b16 %v1456, %v1456
        %v1521 = vpack.c.b16 %v1457, %v1457
        %v1522 = vpack.c.b16 %v1458, %v1458
        %1587 = vst [vmem:[%s257] sm:$0xf] %v1459
        %1588 = vst [vmem:[%s257 + $0x4] sm:$0xf] %v1460
        %1589 = vst [vmem:[%s257 + $0x8] sm:$0xf] %v1461
        %1590 = vst [vmem:[%s257 + $0xc] sm:$0xf] %v1462
        %1591 = vst [vmem:[%s257 + $0x10] sm:$0xf] %v1463
        %1592 = vst [vmem:[%s257 + $0x14] sm:$0xf] %v1464
        %1593 = vst [vmem:[%s257 + $0x18] sm:$0xf] %v1465
        %1594 = vst [vmem:[%s257 + $0x1c] sm:$0xf] %v1466
        %1595 = vst [vmem:[%s257 + $0x20] sm:$0xf] %v1467
        %1596 = vst [vmem:[%s257 + $0x24] sm:$0xf] %v1468
        %1597 = vst [vmem:[%s257 + $0x28] sm:$0xf] %v1469
        %1598 = vst [vmem:[%s257 + $0x2c] sm:$0xf] %v1470
        %1599 = vst [vmem:[%s257 + $0x30] sm:$0xf] %v1471
        %1600 = vst [vmem:[%s257 + $0x34] sm:$0xf] %v1472
        %1601 = vst [vmem:[%s257 + $0x38] sm:$0xf] %v1473
        %1602 = vst [vmem:[%s257 + $0x3c] sm:$0xf] %v1474
        %1603 = vst [vmem:[%s257 + $0x40] sm:$0xf] %v1475
        %1604 = vst [vmem:[%s257 + $0x44] sm:$0xf] %v1476
        %1605 = vst [vmem:[%s257 + $0x48] sm:$0xf] %v1477
        %1606 = vst [vmem:[%s257 + $0x4c] sm:$0xf] %v1478
        %1607 = vst [vmem:[%s257 + $0x50] sm:$0xf] %v1479
        %1608 = vst [vmem:[%s257 + $0x54] sm:$0xf] %v1480
        %1609 = vst [vmem:[%s257 + $0x58] sm:$0xf] %v1481
        %1610 = vst [vmem:[%s257 + $0x5c] sm:$0xf] %v1482
        %1611 = vst [vmem:[%s257 + $0x60] sm:$0xf] %v1483
        %1612 = vst [vmem:[%s257 + $0x64] sm:$0xf] %v1484
        %1613 = vst [vmem:[%s257 + $0x68] sm:$0xf] %v1485
        %1614 = vst [vmem:[%s257 + $0x6c] sm:$0xf] %v1486
        %1615 = vst [vmem:[%s257 + $0x70] sm:$0xf] %v1487
        %1616 = vst [vmem:[%s257 + $0x74] sm:$0xf] %v1488
        %1617 = vst [vmem:[%s257 + $0x78] sm:$0xf] %v1489
        %1618 = vst [vmem:[%s257 + $0x7c] sm:$0xf] %v1490
        %1619 = vst [vmem:[%s257 + $0x80] sm:$0xf] %v1491
        %1620 = vst [vmem:[%s257 + $0x84] sm:$0xf] %v1492
        %1621 = vst [vmem:[%s257 + $0x88] sm:$0xf] %v1493
        %1622 = vst [vmem:[%s257 + $0x8c] sm:$0xf] %v1494
        %1623 = vst [vmem:[%s257 + $0x90] sm:$0xf] %v1495
        %1624 = vst [vmem:[%s257 + $0x94] sm:$0xf] %v1496
        %1625 = vst [vmem:[%s257 + $0x98] sm:$0xf] %v1497
        %1626 = vst [vmem:[%s257 + $0x9c] sm:$0xf] %v1498
        %1627 = vst [vmem:[%s257 + $0xa0] sm:$0xf] %v1499
        %1628 = vst [vmem:[%s257 + $0xa4] sm:$0xf] %v1500
        %1629 = vst [vmem:[%s257 + $0xa8] sm:$0xf] %v1501
        %1630 = vst [vmem:[%s257 + $0xac] sm:$0xf] %v1502
        %1631 = vst [vmem:[%s257 + $0xb0] sm:$0xf] %v1503
        %1632 = vst [vmem:[%s257 + $0xb4] sm:$0xf] %v1504
        %1633 = vst [vmem:[%s257 + $0xb8] sm:$0xf] %v1505
        %1634 = vst [vmem:[%s257 + $0xbc] sm:$0xf] %v1506
        %1635 = vst [vmem:[%s257 + $0xc0] sm:$0xf] %v1507
        %1636 = vst [vmem:[%s257 + $0xc4] sm:$0xf] %v1508
        %1637 = vst [vmem:[%s257 + $0xc8] sm:$0xf] %v1509
        %1638 = vst [vmem:[%s257 + $0xcc] sm:$0xf] %v1510
        %1639 = vst [vmem:[%s257 + $0xd0] sm:$0xf] %v1511
        %1640 = vst [vmem:[%s257 + $0xd4] sm:$0xf] %v1512
        %1641 = vst [vmem:[%s257 + $0xd8] sm:$0xf] %v1513
        %1642 = vst [vmem:[%s257 + $0xdc] sm:$0xf] %v1514
        %1643 = vst [vmem:[%s257 + $0xe0] sm:$0xf] %v1515
        %1644 = vst [vmem:[%s257 + $0xe4] sm:$0xf] %v1516
        %1645 = vst [vmem:[%s257 + $0xe8] sm:$0xf] %v1517
        %1646 = vst [vmem:[%s257 + $0xec] sm:$0xf] %v1518
        %1647 = vst [vmem:[%s257 + $0xf0] sm:$0xf] %v1519
        %1648 = vst [vmem:[%s257 + $0xf4] sm:$0xf] %v1520
        %1649 = vst [vmem:[%s257 + $0xf8] sm:$0xf] %v1521
        %1650 = vst [vmem:[%s257 + $0xfc] sm:$0xf] %v1522
      $region40: #{hyper_analysis_ex.3} parent=31 // pred_fallthru
        _
      %s1651 = smul.u32 64, %s19
      %p1652 = scmp.lt.s32.totalorder %s1651, 255
      %s1653 = scalar_select %p1652, %s1651, 255
      %p1654 = scmp.lt.s32.totalorder %s20, 0
      %s1655 = scalar_select %p1654, %s20, 0
      %s1656 = sadd.s32 %s1655, %s1653
      %s1657 = smul.addr %s1656, 4
      %s1658 = scalar_lea.vmem %s3, %s1657
      // Predicated region
      $region41: #{hyper_analysis_ex.3} parent=31 // pred_check
        %p1659 = pneg %p135
      $region42: #{hyper_analysis_ex.3} parent=31 // pred_check_branch
        %1661 = sbr.rel (%p1659) target = $region44
      $region43: #{hyper_analysis_ex.3} parent=31 // pred_region
        %s1662 = smul.u32 64, %s19
      $region44: #{hyper_analysis_ex.3} parent=31 // pred_fallthru
        _
    $region32: #{hyper_analysis_ex.3} parent=5 // pred_fallthru
      _
    %p1663 = scmp.le.s32.totalorder 2, %s9
    // Predicated region
    $region45: #{hyper_analysis_ex.3} parent=5 // pred_check
      %p1664 = pneg %p1663
    $region46: #{hyper_analysis_ex.3} parent=5 // pred_check_branch
      %1666 = sbr.rel (%p1664) target = $region48
    $region47: #{hyper_analysis_ex.3} parent=5 // pred_region
      %s1667 = ssub.s32 %s9, 2
      // Predicated region
      $region49: #{hyper_analysis_ex.3} parent=47 // pred_check
        %p1668 = pneg %p141
      $region50: #{hyper_analysis_ex.3} parent=47 // pred_check_branch
        %1670 = sbr.rel (%p1668) target = $region52
      $region51: #{hyper_analysis_ex.3} parent=47 // pred_region
        %s1671 = smul.u32 64, %s22
        %p1672 = scmp.lt.s32.totalorder %s1671, 255
        %s1673 = scalar_select %p1672, %s1671, 255
        %p1674 = scmp.lt.s32.totalorder %s23, 0
        %s1675 = scalar_select %p1674, %s23, 0
        %s1676 = sadd.s32 %s1675, %s1673
        %s1677 = smul.addr %s1676, 4
        %s1678 = scalar_lea.vmem %s3, %s1677
      $region52: #{hyper_analysis_ex.3} parent=47 // pred_fallthru
        _
    $region48: #{hyper_analysis_ex.3} parent=5 // pred_fallthru
      _
  $region6: #{hyper_analysis_ex.3} parent=0 // loop_footer
    %s13 = sadd.s32 1, %s9
  $region7: #{hyper_analysis_ex.3} parent=0 // loop_footer_branch
    %8 = sbr.rel target = $region3
  $region8: #{hyper_analysis_ex.3} parent=0 // loop_exit
    _

// kernel: hyper_analysis_ex.4
$region0: #{hyper_analysis_ex.4}
  #allocation0 [shape = 'u32[]', space=smem, size = 0x4, offset = 0x4, fixed_abs, tag = 'smem constant byte address 0x4 - core index']
  #allocation1 [shape = 'u32[144,128]{1,0:T(1,128)}', space=vmem, size = 0x12000, scoped, tag = 'internal scratch']
  #allocation2 [shape = 'f32[512,128]{1,0:T(8,128)}', space=vmem, size = 0x40000, scoped, tag = 'scratch operand']
  %s0 = inlined_call_operand.vmem [shape: bf16[512,512], index: 0, kind: input, shape index: {}]
  %s1 = inlined_call_operand.vmem [shape: bf16[512,128], index: 1, kind: input, shape index: {}]
  %s2 = inlined_call_operand.vmem [shape: f32[1,128], index: 2, kind: input, shape index: {}]
  %s3 = inlined_call_operand.vmem [shape: bf16[512,128], index: 3, kind: output, shape index: {}]
  %s4 = sld [smem:[#allocation0]]
  $region30: #{hyper_analysis_ex.4} parent=0
    _
  %s6 = ssub.s32 1, %s4
  %s7 = scalar_select 0, %s6, %s4
  // Predicated region
  $region2: #{hyper_analysis_ex.4} parent=0 // pred_check
    _
  $region3: #{hyper_analysis_ex.4} parent=0 // pred_check_branch
    %9 = sbr.rel (0) target = $region5
  $region4: #{hyper_analysis_ex.4} parent=0 // pred_region
    _
  $region5: #{hyper_analysis_ex.4} parent=0 // pred_fallthru
    _
  // Predicated region
  $region6: #{hyper_analysis_ex.4} parent=0 // pred_check
    _
  $region7: #{hyper_analysis_ex.4} parent=0 // pred_check_branch
    %11 = sbr.rel (0) target = $region9
  $region8: #{hyper_analysis_ex.4} parent=0 // pred_region
    _
  $region9: #{hyper_analysis_ex.4} parent=0 // pred_fallthru
    _
  // Predicated region
  $region10: #{hyper_analysis_ex.4} parent=0 // pred_check
    _
  $region11: #{hyper_analysis_ex.4} parent=0 // pred_check_branch
    %13 = sbr.rel (0) target = $region13
  $region12: #{hyper_analysis_ex.4} parent=0 // pred_region
    _
  $region13: #{hyper_analysis_ex.4} parent=0 // pred_fallthru
    _
  %p15 = scmp.eq.s32.totalorder 0, 0
  // Predicated region
  $region14: #{hyper_analysis_ex.4} parent=0 // pred_check
    %p16 = pneg %p15
  $region15: #{hyper_analysis_ex.4} parent=0 // pred_check_branch
    %18 = sbr.rel (%p16) target = $region17
  $region16: #{hyper_analysis_ex.4} parent=0 // pred_region
    %19 = vst [vmem:[#allocation2] sm:$0xff] 0.0
    %20 = vst [vmem:[#allocation2 + $0x8] sm:$0xff] 0.0
    %21 = vst [vmem:[#allocation2 + $0x10] sm:$0xff] 0.0
    %22 = vst [vmem:[#allocation2 + $0x18] sm:$0xff] 0.0
    %23 = vst [vmem:[#allocation2 + $0x20] sm:$0xff] 0.0
    %24 = vst [vmem:[#allocation2 + $0x28] sm:$0xff] 0.0
    %25 = vst [vmem:[#allocation2 + $0x30] sm:$0xff] 0.0
    %26 = vst [vmem:[#allocation2 + $0x38] sm:$0xff] 0.0
    %27 = vst [vmem:[#allocation2 + $0x40] sm:$0xff] 0.0
    %28 = vst [vmem:[#allocation2 + $0x48] sm:$0xff] 0.0
    %29 = vst [vmem:[#allocation2 + $0x50] sm:$0xff] 0.0
    %30 = vst [vmem:[#allocation2 + $0x58] sm:$0xff] 0.0
    %31 = vst [vmem:[#allocation2 + $0x60] sm:$0xff] 0.0
    %32 = vst [vmem:[#allocation2 + $0x68] sm:$0xff] 0.0
    %33 = vst [vmem:[#allocation2 + $0x70] sm:$0xff] 0.0
    %34 = vst [vmem:[#allocation2 + $0x78] sm:$0xff] 0.0
    %35 = vst [vmem:[#allocation2 + $0x80] sm:$0xff] 0.0
    %36 = vst [vmem:[#allocation2 + $0x88] sm:$0xff] 0.0
    %37 = vst [vmem:[#allocation2 + $0x90] sm:$0xff] 0.0
    %38 = vst [vmem:[#allocation2 + $0x98] sm:$0xff] 0.0
    %39 = vst [vmem:[#allocation2 + $0xa0] sm:$0xff] 0.0
    %40 = vst [vmem:[#allocation2 + $0xa8] sm:$0xff] 0.0
    %41 = vst [vmem:[#allocation2 + $0xb0] sm:$0xff] 0.0
    %42 = vst [vmem:[#allocation2 + $0xb8] sm:$0xff] 0.0
    %43 = vst [vmem:[#allocation2 + $0xc0] sm:$0xff] 0.0
    %44 = vst [vmem:[#allocation2 + $0xc8] sm:$0xff] 0.0
    %45 = vst [vmem:[#allocation2 + $0xd0] sm:$0xff] 0.0
    %46 = vst [vmem:[#allocation2 + $0xd8] sm:$0xff] 0.0
    %47 = vst [vmem:[#allocation2 + $0xe0] sm:$0xff] 0.0
    %48 = vst [vmem:[#allocation2 + $0xe8] sm:$0xff] 0.0
    %49 = vst [vmem:[#allocation2 + $0xf0] sm:$0xff] 0.0
    %50 = vst [vmem:[#allocation2 + $0xf8] sm:$0xff] 0.0
    %51 = vst [vmem:[#allocation2 + $0x100] sm:$0xff] 0.0
    %52 = vst [vmem:[#allocation2 + $0x108] sm:$0xff] 0.0
    %53 = vst [vmem:[#allocation2 + $0x110] sm:$0xff] 0.0
    %54 = vst [vmem:[#allocation2 + $0x118] sm:$0xff] 0.0
    %55 = vst [vmem:[#allocation2 + $0x120] sm:$0xff] 0.0
    %56 = vst [vmem:[#allocation2 + $0x128] sm:$0xff] 0.0
    %57 = vst [vmem:[#allocation2 + $0x130] sm:$0xff] 0.0
    %58 = vst [vmem:[#allocation2 + $0x138] sm:$0xff] 0.0
    %59 = vst [vmem:[#allocation2 + $0x140] sm:$0xff] 0.0
    %60 = vst [vmem:[#allocation2 + $0x148] sm:$0xff] 0.0
    %61 = vst [vmem:[#allocation2 + $0x150] sm:$0xff] 0.0
    %62 = vst [vmem:[#allocation2 + $0x158] sm:$0xff] 0.0
    %63 = vst [vmem:[#allocation2 + $0x160] sm:$0xff] 0.0
    %64 = vst [vmem:[#allocation2 + $0x168] sm:$0xff] 0.0
    %65 = vst [vmem:[#allocation2 + $0x170] sm:$0xff] 0.0
    %66 = vst [vmem:[#allocation2 + $0x178] sm:$0xff] 0.0
    %67 = vst [vmem:[#allocation2 + $0x180] sm:$0xff] 0.0
    %68 = vst [vmem:[#allocation2 + $0x188] sm:$0xff] 0.0
    %69 = vst [vmem:[#allocation2 + $0x190] sm:$0xff] 0.0
    %70 = vst [vmem:[#allocation2 + $0x198] sm:$0xff] 0.0
    %71 = vst [vmem:[#allocation2 + $0x1a0] sm:$0xff] 0.0
    %72 = vst [vmem:[#allocation2 + $0x1a8] sm:$0xff] 0.0
    %73 = vst [vmem:[#allocation2 + $0x1b0] sm:$0xff] 0.0
    %74 = vst [vmem:[#allocation2 + $0x1b8] sm:$0xff] 0.0
    %75 = vst [vmem:[#allocation2 + $0x1c0] sm:$0xff] 0.0
    %76 = vst [vmem:[#allocation2 + $0x1c8] sm:$0xff] 0.0
    %77 = vst [vmem:[#allocation2 + $0x1d0] sm:$0xff] 0.0
    %78 = vst [vmem:[#allocation2 + $0x1d8] sm:$0xff] 0.0
    %79 = vst [vmem:[#allocation2 + $0x1e0] sm:$0xff] 0.0
    %80 = vst [vmem:[#allocation2 + $0x1e8] sm:$0xff] 0.0
    %81 = vst [vmem:[#allocation2 + $0x1f0] sm:$0xff] 0.0
    %82 = vst [vmem:[#allocation2 + $0x1f8] sm:$0xff] 0.0
  $region17: #{hyper_analysis_ex.4} parent=0 // pred_fallthru
    _
  %v83 = vld [vmem:[#allocation2] sm:$0xff]
  %v84 = vld [vmem:[#allocation2 + $0x8] sm:$0xff]
  %v85 = vld [vmem:[#allocation2 + $0x10] sm:$0xff]
  %v86 = vld [vmem:[#allocation2 + $0x18] sm:$0xff]
  %v87 = vld [vmem:[#allocation2 + $0x20] sm:$0xff]
  %v88 = vld [vmem:[#allocation2 + $0x28] sm:$0xff]
  %v89 = vld [vmem:[#allocation2 + $0x30] sm:$0xff]
  %v90 = vld [vmem:[#allocation2 + $0x38] sm:$0xff]
  %v91 = vld [vmem:[#allocation2 + $0x40] sm:$0xff]
  %v92 = vld [vmem:[#allocation2 + $0x48] sm:$0xff]
  %v93 = vld [vmem:[#allocation2 + $0x50] sm:$0xff]
  %v94 = vld [vmem:[#allocation2 + $0x58] sm:$0xff]
  %v95 = vld [vmem:[#allocation2 + $0x60] sm:$0xff]
  %v96 = vld [vmem:[#allocation2 + $0x68] sm:$0xff]
  %v97 = vld [vmem:[#allocation2 + $0x70] sm:$0xff]
  %v98 = vld [vmem:[#allocation2 + $0x78] sm:$0xff]
  %v99 = vld [vmem:[#allocation2 + $0x80] sm:$0xff]
  %v100 = vld [vmem:[#allocation2 + $0x88] sm:$0xff]
  %v101 = vld [vmem:[#allocation2 + $0x90] sm:$0xff]
  %v102 = vld [vmem:[#allocation2 + $0x98] sm:$0xff]
  %v103 = vld [vmem:[#allocation2 + $0xa0] sm:$0xff]
  %v104 = vld [vmem:[#allocation2 + $0xa8] sm:$0xff]
  %v105 = vld [vmem:[#allocation2 + $0xb0] sm:$0xff]
  %v106 = vld [vmem:[#allocation2 + $0xb8] sm:$0xff]
  %v107 = vld [vmem:[#allocation2 + $0xc0] sm:$0xff]
  %v108 = vld [vmem:[#allocation2 + $0xc8] sm:$0xff]
  %v109 = vld [vmem:[#allocation2 + $0xd0] sm:$0xff]
  %v110 = vld [vmem:[#allocation2 + $0xd8] sm:$0xff]
  %v111 = vld [vmem:[#allocation2 + $0xe0] sm:$0xff]
  %v112 = vld [vmem:[#allocation2 + $0xe8] sm:$0xff]
  %v113 = vld [vmem:[#allocation2 + $0xf0] sm:$0xff]
  %v114 = vld [vmem:[#allocation2 + $0xf8] sm:$0xff]
  %v115 = vld [vmem:[#allocation2 + $0x100] sm:$0xff]
  %v116 = vld [vmem:[#allocation2 + $0x108] sm:$0xff]
  %v117 = vld [vmem:[#allocation2 + $0x110] sm:$0xff]
  %v118 = vld [vmem:[#allocation2 + $0x118] sm:$0xff]
  %v119 = vld [vmem:[#allocation2 + $0x120] sm:$0xff]
  %v120 = vld [vmem:[#allocation2 + $0x128] sm:$0xff]
  %v121 = vld [vmem:[#allocation2 + $0x130] sm:$0xff]
  %v122 = vld [vmem:[#allocation2 + $0x138] sm:$0xff]
  %v123 = vld [vmem:[#allocation2 + $0x140] sm:$0xff]
  %v124 = vld [vmem:[#allocation2 + $0x148] sm:$0xff]
  %v125 = vld [vmem:[#allocation2 + $0x150] sm:$0xff]
  %v126 = vld [vmem:[#allocation2 + $0x158] sm:$0xff]
  %v127 = vld [vmem:[#allocation2 + $0x160] sm:$0xff]
  %v128 = vld [vmem:[#allocation2 + $0x168] sm:$0xff]
  %v129 = vld [vmem:[#allocation2 + $0x170] sm:$0xff]
  %v130 = vld [vmem:[#allocation2 + $0x178] sm:$0xff]
  %v131 = vld [vmem:[#allocation2 + $0x180] sm:$0xff]
  %v132 = vld [vmem:[#allocation2 + $0x188] sm:$0xff]
  %v133 = vld [vmem:[#allocation2 + $0x190] sm:$0xff]
  %v134 = vld [vmem:[#allocation2 + $0x198] sm:$0xff]
  %v135 = vld [vmem:[#allocation2 + $0x1a0] sm:$0xff]
  %v136 = vld [vmem:[#allocation2 + $0x1a8] sm:$0xff]
  %v137 = vld [vmem:[#allocation2 + $0x1b0] sm:$0xff]
  %v138 = vld [vmem:[#allocation2 + $0x1b8] sm:$0xff]
  %v139 = vld [vmem:[#allocation2 + $0x1c0] sm:$0xff]
  %v140 = vld [vmem:[#allocation2 + $0x1c8] sm:$0xff]
  %v141 = vld [vmem:[#allocation2 + $0x1d0] sm:$0xff]
  %v142 = vld [vmem:[#allocation2 + $0x1d8] sm:$0xff]
  %v143 = vld [vmem:[#allocation2 + $0x1e0] sm:$0xff]
  %v144 = vld [vmem:[#allocation2 + $0x1e8] sm:$0xff]
  %v145 = vld [vmem:[#allocation2 + $0x1f0] sm:$0xff]
  %v146 = vld [vmem:[#allocation2 + $0x1f8] sm:$0xff]
  %v147 = vld [vmem:[%s0] sm:$0xff]
  %v148 = vld [vmem:[%s0 + $0x8] sm:$0xff]
  %v149 = vld [vmem:[%s0 + $0x10] sm:$0xff]
  %v150 = vld [vmem:[%s0 + $0x18] sm:$0xff]
  %v151 = vld [vmem:[%s0 + $0x20] sm:$0xff]
  %v152 = vld [vmem:[%s0 + $0x28] sm:$0xff]
  %v153 = vld [vmem:[%s0 + $0x30] sm:$0xff]
  %v154 = vld [vmem:[%s0 + $0x38] sm:$0xff]
  %v155 = vld [vmem:[%s0 + $0x40] sm:$0xff]
  %v156 = vld [vmem:[%s0 + $0x48] sm:$0xff]
  %v157 = vld [vmem:[%s0 + $0x50] sm:$0xff]
  %v158 = vld [vmem:[%s0 + $0x58] sm:$0xff]
  %v159 = vld [vmem:[%s0 + $0x60] sm:$0xff]
  %v160 = vld [vmem:[%s0 + $0x68] sm:$0xff]
  %v161 = vld [vmem:[%s0 + $0x70] sm:$0xff]
  %v162 = vld [vmem:[%s0 + $0x78] sm:$0xff]
  %v163 = vld [vmem:[%s0 + $0x80] sm:$0xff]
  %v164 = vld [vmem:[%s0 + $0x88] sm:$0xff]
  %v165 = vld [vmem:[%s0 + $0x90] sm:$0xff]
  %v166 = vld [vmem:[%s0 + $0x98] sm:$0xff]
  %v167 = vld [vmem:[%s0 + $0xa0] sm:$0xff]
  %v168 = vld [vmem:[%s0 + $0xa8] sm:$0xff]
  %v169 = vld [vmem:[%s0 + $0xb0] sm:$0xff]
  %v170 = vld [vmem:[%s0 + $0xb8] sm:$0xff]
  %v171 = vld [vmem:[%s0 + $0xc0] sm:$0xff]
  %v172 = vld [vmem:[%s0 + $0xc8] sm:$0xff]
  %v173 = vld [vmem:[%s0 + $0xd0] sm:$0xff]
  %v174 = vld [vmem:[%s0 + $0xd8] sm:$0xff]
  %v175 = vld [vmem:[%s0 + $0xe0] sm:$0xff]
  %v176 = vld [vmem:[%s0 + $0xe8] sm:$0xff]
  %v177 = vld [vmem:[%s0 + $0xf0] sm:$0xff]
  %v178 = vld [vmem:[%s0 + $0xf8] sm:$0xff]
  %v179 = vld [vmem:[%s0 + $0x100] sm:$0xff]
  %v180 = vld [vmem:[%s0 + $0x108] sm:$0xff]
  %v181 = vld [vmem:[%s0 + $0x110] sm:$0xff]
  %v182 = vld [vmem:[%s0 + $0x118] sm:$0xff]
  %v183 = vld [vmem:[%s0 + $0x120] sm:$0xff]
  %v184 = vld [vmem:[%s0 + $0x128] sm:$0xff]
  %v185 = vld [vmem:[%s0 + $0x130] sm:$0xff]
  %v186 = vld [vmem:[%s0 + $0x138] sm:$0xff]
  %v187 = vld [vmem:[%s0 + $0x140] sm:$0xff]
  %v188 = vld [vmem:[%s0 + $0x148] sm:$0xff]
  %v189 = vld [vmem:[%s0 + $0x150] sm:$0xff]
  %v190 = vld [vmem:[%s0 + $0x158] sm:$0xff]
  %v191 = vld [vmem:[%s0 + $0x160] sm:$0xff]
  %v192 = vld [vmem:[%s0 + $0x168] sm:$0xff]
  %v193 = vld [vmem:[%s0 + $0x170] sm:$0xff]
  %v194 = vld [vmem:[%s0 + $0x178] sm:$0xff]
  %v195 = vld [vmem:[%s0 + $0x180] sm:$0xff]
  %v196 = vld [vmem:[%s0 + $0x188] sm:$0xff]
  %v197 = vld [vmem:[%s0 + $0x190] sm:$0xff]
  %v198 = vld [vmem:[%s0 + $0x198] sm:$0xff]
  %v199 = vld [vmem:[%s0 + $0x1a0] sm:$0xff]
  %v200 = vld [vmem:[%s0 + $0x1a8] sm:$0xff]
  %v201 = vld [vmem:[%s0 + $0x1b0] sm:$0xff]
  %v202 = vld [vmem:[%s0 + $0x1b8] sm:$0xff]
  %v203 = vld [vmem:[%s0 + $0x1c0] sm:$0xff]
  %v204 = vld [vmem:[%s0 + $0x1c8] sm:$0xff]
  %v205 = vld [vmem:[%s0 + $0x1d0] sm:$0xff]
  %v206 = vld [vmem:[%s0 + $0x1d8] sm:$0xff]
  %v207 = vld [vmem:[%s0 + $0x1e0] sm:$0xff]
  %v208 = vld [vmem:[%s0 + $0x1e8] sm:$0xff]
  %v209 = vld [vmem:[%s0 + $0x1f0] sm:$0xff]
  %v210 = vld [vmem:[%s0 + $0x1f8] sm:$0xff]
  %v211 = vld [vmem:[%s0 + $0x200] sm:$0xff]
  %v212 = vld [vmem:[%s0 + $0x208] sm:$0xff]
  %v213 = vld [vmem:[%s0 + $0x210] sm:$0xff]
  %v214 = vld [vmem:[%s0 + $0x218] sm:$0xff]
  %v215 = vld [vmem:[%s0 + $0x220] sm:$0xff]
  %v216 = vld [vmem:[%s0 + $0x228] sm:$0xff]
  %v217 = vld [vmem:[%s0 + $0x230] sm:$0xff]
  %v218 = vld [vmem:[%s0 + $0x238] sm:$0xff]
  %v219 = vld [vmem:[%s0 + $0x240] sm:$0xff]
  %v220 = vld [vmem:[%s0 + $0x248] sm:$0xff]
  %v221 = vld [vmem:[%s0 + $0x250] sm:$0xff]
  %v222 = vld [vmem:[%s0 + $0x258] sm:$0xff]
  %v223 = vld [vmem:[%s0 + $0x260] sm:$0xff]
  %v224 = vld [vmem:[%s0 + $0x268] sm:$0xff]
  %v225 = vld [vmem:[%s0 + $0x270] sm:$0xff]
  %v226 = vld [vmem:[%s0 + $0x278] sm:$0xff]
  %v227 = vld [vmem:[%s0 + $0x280] sm:$0xff]
  %v228 = vld [vmem:[%s0 + $0x288] sm:$0xff]
  %v229 = vld [vmem:[%s0 + $0x290] sm:$0xff]
  %v230 = vld [vmem:[%s0 + $0x298] sm:$0xff]
  %v231 = vld [vmem:[%s0 + $0x2a0] sm:$0xff]
  %v232 = vld [vmem:[%s0 + $0x2a8] sm:$0xff]
  %v233 = vld [vmem:[%s0 + $0x2b0] sm:$0xff]
  %v234 = vld [vmem:[%s0 + $0x2b8] sm:$0xff]
  %v235 = vld [vmem:[%s0 + $0x2c0] sm:$0xff]
  %v236 = vld [vmem:[%s0 + $0x2c8] sm:$0xff]
  %v237 = vld [vmem:[%s0 + $0x2d0] sm:$0xff]
  %v238 = vld [vmem:[%s0 + $0x2d8] sm:$0xff]
  %v239 = vld [vmem:[%s0 + $0x2e0] sm:$0xff]
  %v240 = vld [vmem:[%s0 + $0x2e8] sm:$0xff]
  %v241 = vld [vmem:[%s0 + $0x2f0] sm:$0xff]
  %v242 = vld [vmem:[%s0 + $0x2f8] sm:$0xff]
  %v243 = vld [vmem:[%s0 + $0x300] sm:$0xff]
  %v244 = vld [vmem:[%s0 + $0x308] sm:$0xff]
  %v245 = vld [vmem:[%s0 + $0x310] sm:$0xff]
  %v246 = vld [vmem:[%s0 + $0x318] sm:$0xff]
  %v247 = vld [vmem:[%s0 + $0x320] sm:$0xff]
  %v248 = vld [vmem:[%s0 + $0x328] sm:$0xff]
  %v249 = vld [vmem:[%s0 + $0x330] sm:$0xff]
  %v250 = vld [vmem:[%s0 + $0x338] sm:$0xff]
  %v251 = vld [vmem:[%s0 + $0x340] sm:$0xff]
  %v252 = vld [vmem:[%s0 + $0x348] sm:$0xff]
  %v253 = vld [vmem:[%s0 + $0x350] sm:$0xff]
  %v254 = vld [vmem:[%s0 + $0x358] sm:$0xff]
  %v255 = vld [vmem:[%s0 + $0x360] sm:$0xff]
  %v256 = vld [vmem:[%s0 + $0x368] sm:$0xff]
  %v257 = vld [vmem:[%s0 + $0x370] sm:$0xff]
  %v258 = vld [vmem:[%s0 + $0x378] sm:$0xff]
  %v259 = vld [vmem:[%s0 + $0x380] sm:$0xff]
  %v260 = vld [vmem:[%s0 + $0x388] sm:$0xff]
  %v261 = vld [vmem:[%s0 + $0x390] sm:$0xff]
  %v262 = vld [vmem:[%s0 + $0x398] sm:$0xff]
  %v263 = vld [vmem:[%s0 + $0x3a0] sm:$0xff]
  %v264 = vld [vmem:[%s0 + $0x3a8] sm:$0xff]
  %v265 = vld [vmem:[%s0 + $0x3b0] sm:$0xff]
  %v266 = vld [vmem:[%s0 + $0x3b8] sm:$0xff]
  %v267 = vld [vmem:[%s0 + $0x3c0] sm:$0xff]
  %v268 = vld [vmem:[%s0 + $0x3c8] sm:$0xff]
  %v269 = vld [vmem:[%s0 + $0x3d0] sm:$0xff]
  %v270 = vld [vmem:[%s0 + $0x3d8] sm:$0xff]
  %v271 = vld [vmem:[%s0 + $0x3e0] sm:$0xff]
  %v272 = vld [vmem:[%s0 + $0x3e8] sm:$0xff]
  %v273 = vld [vmem:[%s0 + $0x3f0] sm:$0xff]
  %v274 = vld [vmem:[%s0 + $0x3f8] sm:$0xff]
  %v275 = vld [vmem:[%s1] sm:$0xf]
  %v276 = vld [vmem:[%s1 + $0x4] sm:$0xf]
  %v277 = vld [vmem:[%s1 + $0x8] sm:$0xf]
  %v278 = vld [vmem:[%s1 + $0xc] sm:$0xf]
  %v279 = vld [vmem:[%s1 + $0x10] sm:$0xf]
  %v280 = vld [vmem:[%s1 + $0x14] sm:$0xf]
  %v281 = vld [vmem:[%s1 + $0x18] sm:$0xf]
  %v282 = vld [vmem:[%s1 + $0x1c] sm:$0xf]
  %v283 = vld [vmem:[%s1 + $0x20] sm:$0xf]
  %v284 = vld [vmem:[%s1 + $0x24] sm:$0xf]
  %v285 = vld [vmem:[%s1 + $0x28] sm:$0xf]
  %v286 = vld [vmem:[%s1 + $0x2c] sm:$0xf]
  %v287 = vld [vmem:[%s1 + $0x30] sm:$0xf]
  %v288 = vld [vmem:[%s1 + $0x34] sm:$0xf]
  %v289 = vld [vmem:[%s1 + $0x38] sm:$0xf]
  %v290 = vld [vmem:[%s1 + $0x3c] sm:$0xf]
  %v291 = vld [vmem:[%s1 + $0x40] sm:$0xf]
  %v292 = vld [vmem:[%s1 + $0x44] sm:$0xf]
  %v293 = vld [vmem:[%s1 + $0x48] sm:$0xf]
  %v294 = vld [vmem:[%s1 + $0x4c] sm:$0xf]
  %v295 = vld [vmem:[%s1 + $0x50] sm:$0xf]
  %v296 = vld [vmem:[%s1 + $0x54] sm:$0xf]
  %v297 = vld [vmem:[%s1 + $0x58] sm:$0xf]
  %v298 = vld [vmem:[%s1 + $0x5c] sm:$0xf]
  %v299 = vld [vmem:[%s1 + $0x60] sm:$0xf]
  %v300 = vld [vmem:[%s1 + $0x64] sm:$0xf]
  %v301 = vld [vmem:[%s1 + $0x68] sm:$0xf]
  %v302 = vld [vmem:[%s1 + $0x6c] sm:$0xf]
  %v303 = vld [vmem:[%s1 + $0x70] sm:$0xf]
  %v304 = vld [vmem:[%s1 + $0x74] sm:$0xf]
  %v305 = vld [vmem:[%s1 + $0x78] sm:$0xf]
  %v306 = vld [vmem:[%s1 + $0x7c] sm:$0xf]
  %v307 = vld [vmem:[%s1 + $0x80] sm:$0xf]
  %v308 = vld [vmem:[%s1 + $0x84] sm:$0xf]
  %v309 = vld [vmem:[%s1 + $0x88] sm:$0xf]
  %v310 = vld [vmem:[%s1 + $0x8c] sm:$0xf]
  %v311 = vld [vmem:[%s1 + $0x90] sm:$0xf]
  %v312 = vld [vmem:[%s1 + $0x94] sm:$0xf]
  %v313 = vld [vmem:[%s1 + $0x98] sm:$0xf]
  %v314 = vld [vmem:[%s1 + $0x9c] sm:$0xf]
  %v315 = vld [vmem:[%s1 + $0xa0] sm:$0xf]
  %v316 = vld [vmem:[%s1 + $0xa4] sm:$0xf]
  %v317 = vld [vmem:[%s1 + $0xa8] sm:$0xf]
  %v318 = vld [vmem:[%s1 + $0xac] sm:$0xf]
  %v319 = vld [vmem:[%s1 + $0xb0] sm:$0xf]
  %v320 = vld [vmem:[%s1 + $0xb4] sm:$0xf]
  %v321 = vld [vmem:[%s1 + $0xb8] sm:$0xf]
  %v322 = vld [vmem:[%s1 + $0xbc] sm:$0xf]
  %v323 = vld [vmem:[%s1 + $0xc0] sm:$0xf]
  %v324 = vld [vmem:[%s1 + $0xc4] sm:$0xf]
  %v325 = vld [vmem:[%s1 + $0xc8] sm:$0xf]
  %v326 = vld [vmem:[%s1 + $0xcc] sm:$0xf]
  %v327 = vld [vmem:[%s1 + $0xd0] sm:$0xf]
  %v328 = vld [vmem:[%s1 + $0xd4] sm:$0xf]
  %v329 = vld [vmem:[%s1 + $0xd8] sm:$0xf]
  %v330 = vld [vmem:[%s1 + $0xdc] sm:$0xf]
  %v331 = vld [vmem:[%s1 + $0xe0] sm:$0xf]
  %v332 = vld [vmem:[%s1 + $0xe4] sm:$0xf]
  %v333 = vld [vmem:[%s1 + $0xe8] sm:$0xf]
  %v334 = vld [vmem:[%s1 + $0xec] sm:$0xf]
  %v335 = vld [vmem:[%s1 + $0xf0] sm:$0xf]
  %v336 = vld [vmem:[%s1 + $0xf4] sm:$0xf]
  %v337 = vld [vmem:[%s1 + $0xf8] sm:$0xf]
  %v338 = vld [vmem:[%s1 + $0xfc] sm:$0xf]
  %v467 = vunpack.c.l.b16 %v147
  %v468 = vunpack.c.h.b16 %v147
  %v469 = vunpack.c.l.b16 %v148
  %v470 = vunpack.c.h.b16 %v148
  %v471 = vunpack.c.l.b16 %v149
  %v472 = vunpack.c.h.b16 %v149
  %v473 = vunpack.c.l.b16 %v150
  %v474 = vunpack.c.h.b16 %v150
  %v475 = vunpack.c.l.b16 %v151
  %v476 = vunpack.c.h.b16 %v151
  %v477 = vunpack.c.l.b16 %v152
  %v478 = vunpack.c.h.b16 %v152
  %v479 = vunpack.c.l.b16 %v153
  %v480 = vunpack.c.h.b16 %v153
  %v481 = vunpack.c.l.b16 %v154
  %v482 = vunpack.c.h.b16 %v154
  %v483 = vunpack.c.l.b16 %v155
  %v484 = vunpack.c.h.b16 %v155
  %v485 = vunpack.c.l.b16 %v156
  %v486 = vunpack.c.h.b16 %v156
  %v487 = vunpack.c.l.b16 %v157
  %v488 = vunpack.c.h.b16 %v157
  %v489 = vunpack.c.l.b16 %v158
  %v490 = vunpack.c.h.b16 %v158
  %v491 = vunpack.c.l.b16 %v159
  %v492 = vunpack.c.h.b16 %v159
  %v493 = vunpack.c.l.b16 %v160
  %v494 = vunpack.c.h.b16 %v160
  %v495 = vunpack.c.l.b16 %v161
  %v496 = vunpack.c.h.b16 %v161
  %v497 = vunpack.c.l.b16 %v162
  %v498 = vunpack.c.h.b16 %v162
  %v499 = vunpack.c.l.b16 %v163
  %v500 = vunpack.c.h.b16 %v163
  %v501 = vunpack.c.l.b16 %v164
  %v502 = vunpack.c.h.b16 %v164
  %v503 = vunpack.c.l.b16 %v165
  %v504 = vunpack.c.h.b16 %v165
  %v505 = vunpack.c.l.b16 %v166
  %v506 = vunpack.c.h.b16 %v166
  %v507 = vunpack.c.l.b16 %v167
  %v508 = vunpack.c.h.b16 %v167
  %v509 = vunpack.c.l.b16 %v168
  %v510 = vunpack.c.h.b16 %v168
  %v511 = vunpack.c.l.b16 %v169
  %v512 = vunpack.c.h.b16 %v169
  %v513 = vunpack.c.l.b16 %v170
  %v514 = vunpack.c.h.b16 %v170
  %v515 = vunpack.c.l.b16 %v171
  %v516 = vunpack.c.h.b16 %v171
  %v517 = vunpack.c.l.b16 %v172
  %v518 = vunpack.c.h.b16 %v172
  %v519 = vunpack.c.l.b16 %v173
  %v520 = vunpack.c.h.b16 %v173
  %v521 = vunpack.c.l.b16 %v174
  %v522 = vunpack.c.h.b16 %v174
  %v523 = vunpack.c.l.b16 %v175
  %v524 = vunpack.c.h.b16 %v175
  %v525 = vunpack.c.l.b16 %v176
  %v526 = vunpack.c.h.b16 %v176
  %v527 = vunpack.c.l.b16 %v177
  %v528 = vunpack.c.h.b16 %v177
  %v529 = vunpack.c.l.b16 %v178
  %v530 = vunpack.c.h.b16 %v178
  %v531 = vunpack.c.l.b16 %v179
  %v532 = vunpack.c.h.b16 %v179
  %v533 = vunpack.c.l.b16 %v180
  %v534 = vunpack.c.h.b16 %v180
  %v535 = vunpack.c.l.b16 %v181
  %v536 = vunpack.c.h.b16 %v181
  %v537 = vunpack.c.l.b16 %v182
  %v538 = vunpack.c.h.b16 %v182
  %v539 = vunpack.c.l.b16 %v183
  %v540 = vunpack.c.h.b16 %v183
  %v541 = vunpack.c.l.b16 %v184
  %v542 = vunpack.c.h.b16 %v184
  %v543 = vunpack.c.l.b16 %v185
  %v544 = vunpack.c.h.b16 %v185
  %v545 = vunpack.c.l.b16 %v186
  %v546 = vunpack.c.h.b16 %v186
  %v547 = vunpack.c.l.b16 %v187
  %v548 = vunpack.c.h.b16 %v187
  %v549 = vunpack.c.l.b16 %v188
  %v550 = vunpack.c.h.b16 %v188
  %v551 = vunpack.c.l.b16 %v189
  %v552 = vunpack.c.h.b16 %v189
  %v553 = vunpack.c.l.b16 %v190
  %v554 = vunpack.c.h.b16 %v190
  %v555 = vunpack.c.l.b16 %v191
  %v556 = vunpack.c.h.b16 %v191
  %v557 = vunpack.c.l.b16 %v192
  %v558 = vunpack.c.h.b16 %v192
  %v559 = vunpack.c.l.b16 %v193
  %v560 = vunpack.c.h.b16 %v193
  %v561 = vunpack.c.l.b16 %v194
  %v562 = vunpack.c.h.b16 %v194
  %v563 = vunpack.c.l.b16 %v195
  %v564 = vunpack.c.h.b16 %v195
  %v565 = vunpack.c.l.b16 %v196
  %v566 = vunpack.c.h.b16 %v196
  %v567 = vunpack.c.l.b16 %v197
  %v568 = vunpack.c.h.b16 %v197
  %v569 = vunpack.c.l.b16 %v198
  %v570 = vunpack.c.h.b16 %v198
  %v571 = vunpack.c.l.b16 %v199
  %v572 = vunpack.c.h.b16 %v199
  %v573 = vunpack.c.l.b16 %v200
  %v574 = vunpack.c.h.b16 %v200
  %v575 = vunpack.c.l.b16 %v201
  %v576 = vunpack.c.h.b16 %v201
  %v577 = vunpack.c.l.b16 %v202
  %v578 = vunpack.c.h.b16 %v202
  %v579 = vunpack.c.l.b16 %v203
  %v580 = vunpack.c.h.b16 %v203
  %v581 = vunpack.c.l.b16 %v204
  %v582 = vunpack.c.h.b16 %v204
  %v583 = vunpack.c.l.b16 %v205
  %v584 = vunpack.c.h.b16 %v205
  %v585 = vunpack.c.l.b16 %v206
  %v586 = vunpack.c.h.b16 %v206
  %v587 = vunpack.c.l.b16 %v207
  %v588 = vunpack.c.h.b16 %v207
  %v589 = vunpack.c.l.b16 %v208
  %v590 = vunpack.c.h.b16 %v208
  %v591 = vunpack.c.l.b16 %v209
  %v592 = vunpack.c.h.b16 %v209
  %v593 = vunpack.c.l.b16 %v210
  %v594 = vunpack.c.h.b16 %v210
  %v595 = vunpack.c.l.b16 %v211
  %v596 = vunpack.c.h.b16 %v211
  %v597 = vunpack.c.l.b16 %v212
  %v598 = vunpack.c.h.b16 %v212
  %v599 = vunpack.c.l.b16 %v213
  %v600 = vunpack.c.h.b16 %v213
  %v601 = vunpack.c.l.b16 %v214
  %v602 = vunpack.c.h.b16 %v214
  %v603 = vunpack.c.l.b16 %v215
  %v604 = vunpack.c.h.b16 %v215
  %v605 = vunpack.c.l.b16 %v216
  %v606 = vunpack.c.h.b16 %v216
  %v607 = vunpack.c.l.b16 %v217
  %v608 = vunpack.c.h.b16 %v217
  %v609 = vunpack.c.l.b16 %v218
  %v610 = vunpack.c.h.b16 %v218
  %v611 = vunpack.c.l.b16 %v219
  %v612 = vunpack.c.h.b16 %v219
  %v613 = vunpack.c.l.b16 %v220
  %v614 = vunpack.c.h.b16 %v220
  %v615 = vunpack.c.l.b16 %v221
  %v616 = vunpack.c.h.b16 %v221
  %v617 = vunpack.c.l.b16 %v222
  %v618 = vunpack.c.h.b16 %v222
  %v619 = vunpack.c.l.b16 %v223
  %v620 = vunpack.c.h.b16 %v223
  %v621 = vunpack.c.l.b16 %v224
  %v622 = vunpack.c.h.b16 %v224
  %v623 = vunpack.c.l.b16 %v225
  %v624 = vunpack.c.h.b16 %v225
  %v625 = vunpack.c.l.b16 %v226
  %v626 = vunpack.c.h.b16 %v226
  %v627 = vunpack.c.l.b16 %v227
  %v628 = vunpack.c.h.b16 %v227
  %v629 = vunpack.c.l.b16 %v228
  %v630 = vunpack.c.h.b16 %v228
  %v631 = vunpack.c.l.b16 %v229
  %v632 = vunpack.c.h.b16 %v229
  %v633 = vunpack.c.l.b16 %v230
  %v634 = vunpack.c.h.b16 %v230
  %v635 = vunpack.c.l.b16 %v231
  %v636 = vunpack.c.h.b16 %v231
  %v637 = vunpack.c.l.b16 %v232
  %v638 = vunpack.c.h.b16 %v232
  %v639 = vunpack.c.l.b16 %v233
  %v640 = vunpack.c.h.b16 %v233
  %v641 = vunpack.c.l.b16 %v234
  %v642 = vunpack.c.h.b16 %v234
  %v643 = vunpack.c.l.b16 %v235
  %v644 = vunpack.c.h.b16 %v235
  %v645 = vunpack.c.l.b16 %v236
  %v646 = vunpack.c.h.b16 %v236
  %v647 = vunpack.c.l.b16 %v237
  %v648 = vunpack.c.h.b16 %v237
  %v649 = vunpack.c.l.b16 %v238
  %v650 = vunpack.c.h.b16 %v238
  %v651 = vunpack.c.l.b16 %v239
  %v652 = vunpack.c.h.b16 %v239
  %v653 = vunpack.c.l.b16 %v240
  %v654 = vunpack.c.h.b16 %v240
  %v655 = vunpack.c.l.b16 %v241
  %v656 = vunpack.c.h.b16 %v241
  %v657 = vunpack.c.l.b16 %v242
  %v658 = vunpack.c.h.b16 %v242
  %v659 = vunpack.c.l.b16 %v243
  %v660 = vunpack.c.h.b16 %v243
  %v661 = vunpack.c.l.b16 %v244
  %v662 = vunpack.c.h.b16 %v244
  %v663 = vunpack.c.l.b16 %v245
  %v664 = vunpack.c.h.b16 %v245
  %v665 = vunpack.c.l.b16 %v246
  %v666 = vunpack.c.h.b16 %v246
  %v667 = vunpack.c.l.b16 %v247
  %v668 = vunpack.c.h.b16 %v247
  %v669 = vunpack.c.l.b16 %v248
  %v670 = vunpack.c.h.b16 %v248
  %v671 = vunpack.c.l.b16 %v249
  %v672 = vunpack.c.h.b16 %v249
  %v673 = vunpack.c.l.b16 %v250
  %v674 = vunpack.c.h.b16 %v250
  %v675 = vunpack.c.l.b16 %v251
  %v676 = vunpack.c.h.b16 %v251
  %v677 = vunpack.c.l.b16 %v252
  %v678 = vunpack.c.h.b16 %v252
  %v679 = vunpack.c.l.b16 %v253
  %v680 = vunpack.c.h.b16 %v253
  %v681 = vunpack.c.l.b16 %v254
  %v682 = vunpack.c.h.b16 %v254
  %v683 = vunpack.c.l.b16 %v255
  %v684 = vunpack.c.h.b16 %v255
  %v685 = vunpack.c.l.b16 %v256
  %v686 = vunpack.c.h.b16 %v256
  %v687 = vunpack.c.l.b16 %v257
  %v688 = vunpack.c.h.b16 %v257
  %v689 = vunpack.c.l.b16 %v258
  %v690 = vunpack.c.h.b16 %v258
  %v691 = vunpack.c.l.b16 %v259
  %v692 = vunpack.c.h.b16 %v259
  %v693 = vunpack.c.l.b16 %v260
  %v694 = vunpack.c.h.b16 %v260
  %v695 = vunpack.c.l.b16 %v261
  %v696 = vunpack.c.h.b16 %v261
  %v697 = vunpack.c.l.b16 %v262
  %v698 = vunpack.c.h.b16 %v262
  %v699 = vunpack.c.l.b16 %v263
  %v700 = vunpack.c.h.b16 %v263
  %v701 = vunpack.c.l.b16 %v264
  %v702 = vunpack.c.h.b16 %v264
  %v703 = vunpack.c.l.b16 %v265
  %v704 = vunpack.c.h.b16 %v265
  %v705 = vunpack.c.l.b16 %v266
  %v706 = vunpack.c.h.b16 %v266
  %v707 = vunpack.c.l.b16 %v267
  %v708 = vunpack.c.h.b16 %v267
  %v709 = vunpack.c.l.b16 %v268
  %v710 = vunpack.c.h.b16 %v268
  %v711 = vunpack.c.l.b16 %v269
  %v712 = vunpack.c.h.b16 %v269
  %v713 = vunpack.c.l.b16 %v270
  %v714 = vunpack.c.h.b16 %v270
  %v715 = vunpack.c.l.b16 %v271
  %v716 = vunpack.c.h.b16 %v271
  %v717 = vunpack.c.l.b16 %v272
  %v718 = vunpack.c.h.b16 %v272
  %v719 = vunpack.c.l.b16 %v273
  %v720 = vunpack.c.h.b16 %v273
  %v721 = vunpack.c.l.b16 %v274
  %v722 = vunpack.c.h.b16 %v274
  %v723 = vpack.c.b16 %v471, %v467
  %v724 = vpack.c.b16 %v472, %v468
  %v725 = vpack.c.b16 %v473, %v469
  %v726 = vpack.c.b16 %v474, %v470
  %v727 = vpack.c.b16 %v479, %v475
  %v728 = vpack.c.b16 %v480, %v476
  %v729 = vpack.c.b16 %v481, %v477
  %v730 = vpack.c.b16 %v482, %v478
  %v731 = vpack.c.b16 %v487, %v483
  %v732 = vpack.c.b16 %v488, %v484
  %v733 = vpack.c.b16 %v489, %v485
  %v734 = vpack.c.b16 %v490, %v486
  %v735 = vpack.c.b16 %v495, %v491
  %v736 = vpack.c.b16 %v496, %v492
  %v737 = vpack.c.b16 %v497, %v493
  %v738 = vpack.c.b16 %v498, %v494
  %v739 = vpack.c.b16 %v503, %v499
  %v740 = vpack.c.b16 %v504, %v500
  %v741 = vpack.c.b16 %v505, %v501
  %v742 = vpack.c.b16 %v506, %v502
  %v743 = vpack.c.b16 %v511, %v507
  %v744 = vpack.c.b16 %v512, %v508
  %v745 = vpack.c.b16 %v513, %v509
  %v746 = vpack.c.b16 %v514, %v510
  %v747 = vpack.c.b16 %v519, %v515
  %v748 = vpack.c.b16 %v520, %v516
  %v749 = vpack.c.b16 %v521, %v517
  %v750 = vpack.c.b16 %v522, %v518
  %v751 = vpack.c.b16 %v527, %v523
  %v752 = vpack.c.b16 %v528, %v524
  %v753 = vpack.c.b16 %v529, %v525
  %v754 = vpack.c.b16 %v530, %v526
  %v755 = vpack.c.b16 %v535, %v531
  %v756 = vpack.c.b16 %v536, %v532
  %v757 = vpack.c.b16 %v537, %v533
  %v758 = vpack.c.b16 %v538, %v534
  %v759 = vpack.c.b16 %v543, %v539
  %v760 = vpack.c.b16 %v544, %v540
  %v761 = vpack.c.b16 %v545, %v541
  %v762 = vpack.c.b16 %v546, %v542
  %v763 = vpack.c.b16 %v551, %v547
  %v764 = vpack.c.b16 %v552, %v548
  %v765 = vpack.c.b16 %v553, %v549
  %v766 = vpack.c.b16 %v554, %v550
  %v767 = vpack.c.b16 %v559, %v555
  %v768 = vpack.c.b16 %v560, %v556
  %v769 = vpack.c.b16 %v561, %v557
  %v770 = vpack.c.b16 %v562, %v558
  %v771 = vpack.c.b16 %v567, %v563
  %v772 = vpack.c.b16 %v568, %v564
  %v773 = vpack.c.b16 %v569, %v565
  %v774 = vpack.c.b16 %v570, %v566
  %v775 = vpack.c.b16 %v575, %v571
  %v776 = vpack.c.b16 %v576, %v572
  %v777 = vpack.c.b16 %v577, %v573
  %v778 = vpack.c.b16 %v578, %v574
  %v779 = vpack.c.b16 %v583, %v579
  %v780 = vpack.c.b16 %v584, %v580
  %v781 = vpack.c.b16 %v585, %v581
  %v782 = vpack.c.b16 %v586, %v582
  %v783 = vpack.c.b16 %v591, %v587
  %v784 = vpack.c.b16 %v592, %v588
  %v785 = vpack.c.b16 %v593, %v589
  %v786 = vpack.c.b16 %v594, %v590
  %v787 = vpack.c.b16 %v599, %v595
  %v788 = vpack.c.b16 %v600, %v596
  %v789 = vpack.c.b16 %v601, %v597
  %v790 = vpack.c.b16 %v602, %v598
  %v791 = vpack.c.b16 %v607, %v603
  %v792 = vpack.c.b16 %v608, %v604
  %v793 = vpack.c.b16 %v609, %v605
  %v794 = vpack.c.b16 %v610, %v606
  %v795 = vpack.c.b16 %v615, %v611
  %v796 = vpack.c.b16 %v616, %v612
  %v797 = vpack.c.b16 %v617, %v613
  %v798 = vpack.c.b16 %v618, %v614
  %v799 = vpack.c.b16 %v623, %v619
  %v800 = vpack.c.b16 %v624, %v620
  %v801 = vpack.c.b16 %v625, %v621
  %v802 = vpack.c.b16 %v626, %v622
  %v803 = vpack.c.b16 %v631, %v627
  %v804 = vpack.c.b16 %v632, %v628
  %v805 = vpack.c.b16 %v633, %v629
  %v806 = vpack.c.b16 %v634, %v630
  %v807 = vpack.c.b16 %v639, %v635
  %v808 = vpack.c.b16 %v640, %v636
  %v809 = vpack.c.b16 %v641, %v637
  %v810 = vpack.c.b16 %v642, %v638
  %v811 = vpack.c.b16 %v647, %v643
  %v812 = vpack.c.b16 %v648, %v644
  %v813 = vpack.c.b16 %v649, %v645
  %v814 = vpack.c.b16 %v650, %v646
  %v815 = vpack.c.b16 %v655, %v651
  %v816 = vpack.c.b16 %v656, %v652
  %v817 = vpack.c.b16 %v657, %v653
  %v818 = vpack.c.b16 %v658, %v654
  %v819 = vpack.c.b16 %v663, %v659
  %v820 = vpack.c.b16 %v664, %v660
  %v821 = vpack.c.b16 %v665, %v661
  %v822 = vpack.c.b16 %v666, %v662
  %v823 = vpack.c.b16 %v671, %v667
  %v824 = vpack.c.b16 %v672, %v668
  %v825 = vpack.c.b16 %v673, %v669
  %v826 = vpack.c.b16 %v674, %v670
  %v827 = vpack.c.b16 %v679, %v675
  %v828 = vpack.c.b16 %v680, %v676
  %v829 = vpack.c.b16 %v681, %v677
  %v830 = vpack.c.b16 %v682, %v678
  %v831 = vpack.c.b16 %v687, %v683
  %v832 = vpack.c.b16 %v688, %v684
  %v833 = vpack.c.b16 %v689, %v685
  %v834 = vpack.c.b16 %v690, %v686
  %v835 = vpack.c.b16 %v695, %v691
  %v836 = vpack.c.b16 %v696, %v692
  %v837 = vpack.c.b16 %v697, %v693
  %v838 = vpack.c.b16 %v698, %v694
  %v839 = vpack.c.b16 %v703, %v699
  %v840 = vpack.c.b16 %v704, %v700
  %v841 = vpack.c.b16 %v705, %v701
  %v842 = vpack.c.b16 %v706, %v702
  %v843 = vpack.c.b16 %v711, %v707
  %v844 = vpack.c.b16 %v712, %v708
  %v845 = vpack.c.b16 %v713, %v709
  %v846 = vpack.c.b16 %v714, %v710
  %v847 = vpack.c.b16 %v719, %v715
  %v848 = vpack.c.b16 %v720, %v716
  %v849 = vpack.c.b16 %v721, %v717
  %v850 = vpack.c.b16 %v722, %v718
  %v1043 = vunpack.c.l.b16 %v275
  %v1044 = vunpack.c.l.b16 %v276
  %v1045 = vunpack.c.l.b16 %v277
  %v1046 = vunpack.c.l.b16 %v278
  %v1047 = vunpack.c.l.b16 %v279
  %v1048 = vunpack.c.l.b16 %v280
  %v1049 = vunpack.c.l.b16 %v281
  %v1050 = vunpack.c.l.b16 %v282
  %v1051 = vunpack.c.l.b16 %v283
  %v1052 = vunpack.c.l.b16 %v284
  %v1053 = vunpack.c.l.b16 %v285
  %v1054 = vunpack.c.l.b16 %v286
  %v1055 = vunpack.c.l.b16 %v287
  %v1056 = vunpack.c.l.b16 %v288
  %v1057 = vunpack.c.l.b16 %v289
  %v1058 = vunpack.c.l.b16 %v290
  %v1059 = vunpack.c.l.b16 %v291
  %v1060 = vunpack.c.l.b16 %v292
  %v1061 = vunpack.c.l.b16 %v293
  %v1062 = vunpack.c.l.b16 %v294
  %v1063 = vunpack.c.l.b16 %v295
  %v1064 = vunpack.c.l.b16 %v296
  %v1065 = vunpack.c.l.b16 %v297
  %v1066 = vunpack.c.l.b16 %v298
  %v1067 = vunpack.c.l.b16 %v299
  %v1068 = vunpack.c.l.b16 %v300
  %v1069 = vunpack.c.l.b16 %v301
  %v1070 = vunpack.c.l.b16 %v302
  %v1071 = vunpack.c.l.b16 %v303
  %v1072 = vunpack.c.l.b16 %v304
  %v1073 = vunpack.c.l.b16 %v305
  %v1074 = vunpack.c.l.b16 %v306
  %v1075 = vunpack.c.l.b16 %v307
  %v1076 = vunpack.c.l.b16 %v308
  %v1077 = vunpack.c.l.b16 %v309
  %v1078 = vunpack.c.l.b16 %v310
  %v1079 = vunpack.c.l.b16 %v311
  %v1080 = vunpack.c.l.b16 %v312
  %v1081 = vunpack.c.l.b16 %v313
  %v1082 = vunpack.c.l.b16 %v314
  %v1083 = vunpack.c.l.b16 %v315
  %v1084 = vunpack.c.l.b16 %v316
  %v1085 = vunpack.c.l.b16 %v317
  %v1086 = vunpack.c.l.b16 %v318
  %v1087 = vunpack.c.l.b16 %v319
  %v1088 = vunpack.c.l.b16 %v320
  %v1089 = vunpack.c.l.b16 %v321
  %v1090 = vunpack.c.l.b16 %v322
  %v1091 = vunpack.c.l.b16 %v323
  %v1092 = vunpack.c.l.b16 %v324
  %v1093 = vunpack.c.l.b16 %v325
  %v1094 = vunpack.c.l.b16 %v326
  %v1095 = vunpack.c.l.b16 %v327
  %v1096 = vunpack.c.l.b16 %v328
  %v1097 = vunpack.c.l.b16 %v329
  %v1098 = vunpack.c.l.b16 %v330
  %v1099 = vunpack.c.l.b16 %v331
  %v1100 = vunpack.c.l.b16 %v332
  %v1101 = vunpack.c.l.b16 %v333
  %v1102 = vunpack.c.l.b16 %v334
  %v1103 = vunpack.c.l.b16 %v335
  %v1104 = vunpack.c.l.b16 %v336
  %v1105 = vunpack.c.l.b16 %v337
  %v1106 = vunpack.c.l.b16 %v338
  %v1107 = vpack.c.b16 %v1044, %v1043
  %v1108 = vpack.c.b16 %v1046, %v1045
  %v1109 = vpack.c.b16 %v1048, %v1047
  %v1110 = vpack.c.b16 %v1050, %v1049
  %v1111 = vpack.c.b16 %v1052, %v1051
  %v1112 = vpack.c.b16 %v1054, %v1053
  %v1113 = vpack.c.b16 %v1056, %v1055
  %v1114 = vpack.c.b16 %v1058, %v1057
  %v1115 = vpack.c.b16 %v1060, %v1059
  %v1116 = vpack.c.b16 %v1062, %v1061
  %v1117 = vpack.c.b16 %v1064, %v1063
  %v1118 = vpack.c.b16 %v1066, %v1065
  %v1119 = vpack.c.b16 %v1068, %v1067
  %v1120 = vpack.c.b16 %v1070, %v1069
  %v1121 = vpack.c.b16 %v1072, %v1071
  %v1122 = vpack.c.b16 %v1074, %v1073
  %v1123 = vpack.c.b16 %v1076, %v1075
  %v1124 = vpack.c.b16 %v1078, %v1077
  %v1125 = vpack.c.b16 %v1080, %v1079
  %v1126 = vpack.c.b16 %v1082, %v1081
  %v1127 = vpack.c.b16 %v1084, %v1083
  %v1128 = vpack.c.b16 %v1086, %v1085
  %v1129 = vpack.c.b16 %v1088, %v1087
  %v1130 = vpack.c.b16 %v1090, %v1089
  %v1131 = vpack.c.b16 %v1092, %v1091
  %v1132 = vpack.c.b16 %v1094, %v1093
  %v1133 = vpack.c.b16 %v1096, %v1095
  %v1134 = vpack.c.b16 %v1098, %v1097
  %v1135 = vpack.c.b16 %v1100, %v1099
  %v1136 = vpack.c.b16 %v1102, %v1101
  %v1137 = vpack.c.b16 %v1104, %v1103
  %v1138 = vpack.c.b16 %v1106, %v1105
  %1171 = vmatprep.subr.bf16.mxu0 0
  %1172 = vmatpush1.bf16.msra.mxu0 %v1107
  %1173 = vmatprep.subr.bf16.mxu0 0
  %1174 = vmatpush1.bf16.msra.mxu0 %v1108
  %1175 = vmatprep.subr.bf16.mxu0 0
  %1176 = vmatpush1.bf16.msra.mxu0 %v1109
  %1177 = vmatprep.subr.bf16.mxu0 0
  %1178 = vmatpush1.bf16.msra.mxu0 %v1110
  %1179 = vmatprep.subr.bf16.mxu0 0
  %1180 = vmatpush1.bf16.msra.mxu0 %v1111
  %1181 = vmatprep.subr.bf16.mxu0 0
  %1182 = vmatpush1.bf16.msra.mxu0 %v1112
  %1183 = vmatprep.subr.bf16.mxu0 0
  %1184 = vmatpush1.bf16.msra.mxu0 %v1113
  %1185 = vmatprep.subr.bf16.mxu0 0
  %1186 = vmatpush1.bf16.msra.mxu0 %v1114
  %1187 = vmatprep.subr.bf16.mxu0 0
  %1188 = vmatpush1.bf16.msra.mxu0 %v1115
  %1189 = vmatprep.subr.bf16.mxu0 0
  %1190 = vmatpush1.bf16.msra.mxu0 %v1116
  %1191 = vmatprep.subr.bf16.mxu0 0
  %1192 = vmatpush1.bf16.msra.mxu0 %v1117
  %1193 = vmatprep.subr.bf16.mxu0 0
  %1194 = vmatpush1.bf16.msra.mxu0 %v1118
  %1195 = vmatprep.subr.bf16.mxu0 0
  %1196 = vmatpush1.bf16.msra.mxu0 %v1119
  %1197 = vmatprep.subr.bf16.mxu0 0
  %1198 = vmatpush1.bf16.msra.mxu0 %v1120
  %1199 = vmatprep.subr.bf16.mxu0 0
  %1200 = vmatpush1.bf16.msra.mxu0 %v1121
  %1201 = vmatprep.subr.bf16.mxu0 0
  %1202 = vmatpush1.bf16.msra.mxu0 %v1122
  %1203 = vmatprep.mubr.bf16.mxu0 %v724
  %1204 = vmatmul.mubr.bf16.gmra.mrb[0].mxu0 %v723
  %v1205 = vpop.f32.mrb[0].mxu0
  %v1206 = vadd.f32 0.0, %v1205
  %v1207 = vpop.f32.mrb[0].mxu0
  %v1208 = vpop.f32.mrb[0].mxu0
  %v1209 = vadd.f32 0.0, %v1208
  %v1210 = vpop.f32.mrb[0].mxu0
  %1211 = vmatprep.mubr.bf16.mxu0 %v728
  %1212 = vmatmul.mubr.bf16.gmra.mrb[0].mxu0 %v727
  %v1213 = vpop.f32.mrb[0].mxu0
  %v1214 = vadd.f32 0.0, %v1213
  %v1215 = vpop.f32.mrb[0].mxu0
  %v1216 = vpop.f32.mrb[0].mxu0
  %v1217 = vadd.f32 0.0, %v1216
  %v1218 = vpop.f32.mrb[0].mxu0
  %1219 = vmatprep.mubr.bf16.mxu0 %v732
  %1220 = vmatmul.mubr.bf16.gmra.mrb[0].mxu0 %v731
  %v1221 = vpop.f32.mrb[0].mxu0
  %v1222 = vadd.f32 0.0, %v1221
  %v1223 = vpop.f32.mrb[0].mxu0
  %v1224 = vpop.f32.mrb[0].mxu0
  %v1225 = vadd.f32 0.0, %v1224
  %v1226 = vpop.f32.mrb[0].mxu0
  %1227 = vmatprep.mubr.bf16.mxu0 %v736
  %1228 = vmatmul.mubr.bf16.gmra.mrb[0].mxu0 %v735
  %v1229 = vpop.f32.mrb[0].mxu0
  %v1230 = vadd.f32 0.0, %v1229
  %v1231 = vpop.f32.mrb[0].mxu0
  %v1232 = vpop.f32.mrb[0].mxu0
  %v1233 = vadd.f32 0.0, %v1232
  %v1234 = vpop.f32.mrb[0].mxu0
  %1235 = vmatprep.mubr.bf16.mxu0 %v740
  %1236 = vmatmul.mubr.bf16.gmra.mrb[0].mxu0 %v739
  %v1237 = vpop.f32.mrb[0].mxu0
  %v1238 = vadd.f32 0.0, %v1237
  %v1239 = vpop.f32.mrb[0].mxu0
  %v1240 = vpop.f32.mrb[0].mxu0
  %v1241 = vadd.f32 0.0, %v1240
  %v1242 = vpop.f32.mrb[0].mxu0
  %1243 = vmatprep.mubr.bf16.mxu0 %v744
  %1244 = vmatmul.mubr.bf16.gmra.mrb[0].mxu0 %v743
  %v1245 = vpop.f32.mrb[0].mxu0
  %v1246 = vadd.f32 0.0, %v1245
  %v1247 = vpop.f32.mrb[0].mxu0
  %v1248 = vpop.f32.mrb[0].mxu0
  %v1249 = vadd.f32 0.0, %v1248
  %v1250 = vpop.f32.mrb[0].mxu0
  %1251 = vmatprep.mubr.bf16.mxu0 %v748
  %1252 = vmatmul.mubr.bf16.gmra.mrb[0].mxu0 %v747
  %v1253 = vpop.f32.mrb[0].mxu0
  %v1254 = vadd.f32 0.0, %v1253
  %v1255 = vpop.f32.mrb[0].mxu0
  %v1256 = vpop.f32.mrb[0].mxu0
  %v1257 = vadd.f32 0.0, %v1256
  %v1258 = vpop.f32.mrb[0].mxu0
  %1259 = vmatprep.mubr.bf16.mxu0 %v752
  %1260 = vmatmul.mubr.bf16.gmra.mrb[0].mxu0 %v751
  %v1261 = vpop.f32.mrb[0].mxu0
  %v1262 = vadd.f32 0.0, %v1261
  %v1263 = vpop.f32.mrb[0].mxu0
  %v1264 = vpop.f32.mrb[0].mxu0
  %v1265 = vadd.f32 0.0, %v1264
  %v1266 = vpop.f32.mrb[0].mxu0
  %1267 = vmatprep.mubr.bf16.mxu0 %v756
  %1268 = vmatmul.mubr.bf16.gmra.mrb[0].mxu0 %v755
  %v1269 = vpop.f32.mrb[0].mxu0
  %v1270 = vadd.f32 0.0, %v1269
  %v1271 = vpop.f32.mrb[0].mxu0
  %v1272 = vpop.f32.mrb[0].mxu0
  %v1273 = vadd.f32 0.0, %v1272
  %v1274 = vpop.f32.mrb[0].mxu0
  %1275 = vmatprep.mubr.bf16.mxu0 %v760
  %1276 = vmatmul.mubr.bf16.gmra.mrb[0].mxu0 %v759
  %v1277 = vpop.f32.mrb[0].mxu0
  %v1278 = vadd.f32 0.0, %v1277
  %v1279 = vpop.f32.mrb[0].mxu0
  %v1280 = vpop.f32.mrb[0].mxu0
  %v1281 = vadd.f32 0.0, %v1280
  %v1282 = vpop.f32.mrb[0].mxu0
  %1283 = vmatprep.mubr.bf16.mxu0 %v764
  %1284 = vmatmul.mubr.bf16.gmra.mrb[0].mxu0 %v763
  %v1285 = vpop.f32.mrb[0].mxu0
  %v1286 = vadd.f32 0.0, %v1285
  %v1287 = vpop.f32.mrb[0].mxu0
  %v1288 = vpop.f32.mrb[0].mxu0
  %v1289 = vadd.f32 0.0, %v1288
  %v1290 = vpop.f32.mrb[0].mxu0
  %1291 = vmatprep.mubr.bf16.mxu0 %v768
  %1292 = vmatmul.mubr.bf16.gmra.mrb[0].mxu0 %v767
  %v1293 = vpop.f32.mrb[0].mxu0
  %v1294 = vadd.f32 0.0, %v1293
  %v1295 = vpop.f32.mrb[0].mxu0
  %v1296 = vpop.f32.mrb[0].mxu0
  %v1297 = vadd.f32 0.0, %v1296
  %v1298 = vpop.f32.mrb[0].mxu0
  %1299 = vmatprep.mubr.bf16.mxu0 %v772
  %1300 = vmatmul.mubr.bf16.gmra.mrb[0].mxu0 %v771
  %v1301 = vpop.f32.mrb[0].mxu0
  %v1302 = vadd.f32 0.0, %v1301
  %v1303 = vpop.f32.mrb[0].mxu0
  %v1304 = vpop.f32.mrb[0].mxu0
  %v1305 = vadd.f32 0.0, %v1304
  %v1306 = vpop.f32.mrb[0].mxu0
  %1307 = vmatprep.mubr.bf16.mxu0 %v776
  %1308 = vmatmul.mubr.bf16.gmra.mrb[0].mxu0 %v775
  %v1309 = vpop.f32.mrb[0].mxu0
  %v1310 = vadd.f32 0.0, %v1309
  %v1311 = vpop.f32.mrb[0].mxu0
  %v1312 = vpop.f32.mrb[0].mxu0
  %v1313 = vadd.f32 0.0, %v1312
  %v1314 = vpop.f32.mrb[0].mxu0
  %1315 = vmatprep.mubr.bf16.mxu0 %v780
  %1316 = vmatmul.mubr.bf16.gmra.mrb[0].mxu0 %v779
  %v1317 = vpop.f32.mrb[0].mxu0
  %v1318 = vadd.f32 0.0, %v1317
  %v1319 = vpop.f32.mrb[0].mxu0
  %v1320 = vpop.f32.mrb[0].mxu0
  %v1321 = vadd.f32 0.0, %v1320
  %v1322 = vpop.f32.mrb[0].mxu0
  %1323 = vmatprep.mubr.bf16.mxu0 %v784
  %1324 = vmatmul.mubr.bf16.gmra.mrb[0].mxu0 %v783
  %v1325 = vpop.f32.mrb[0].mxu0
  %v1326 = vadd.f32 0.0, %v1325
  %v1327 = vpop.f32.mrb[0].mxu0
  %v1328 = vpop.f32.mrb[0].mxu0
  %v1329 = vadd.f32 0.0, %v1328
  %v1330 = vpop.f32.mrb[0].mxu0
  %1331 = vmatprep.mubr.bf16.mxu0 %v788
  %1332 = vmatmul.mubr.bf16.gmra.mrb[0].mxu0 %v787
  %v1333 = vpop.f32.mrb[0].mxu0
  %v1334 = vadd.f32 0.0, %v1333
  %v1335 = vpop.f32.mrb[0].mxu0
  %v1336 = vpop.f32.mrb[0].mxu0
  %v1337 = vadd.f32 0.0, %v1336
  %v1338 = vpop.f32.mrb[0].mxu0
  %1339 = vmatprep.mubr.bf16.mxu0 %v792
  %1340 = vmatmul.mubr.bf16.gmra.mrb[0].mxu0 %v791
  %v1341 = vpop.f32.mrb[0].mxu0
  %v1342 = vadd.f32 0.0, %v1341
  %v1343 = vpop.f32.mrb[0].mxu0
  %v1344 = vpop.f32.mrb[0].mxu0
  %v1345 = vadd.f32 0.0, %v1344
  %v1346 = vpop.f32.mrb[0].mxu0
  %1347 = vmatprep.mubr.bf16.mxu0 %v796
  %1348 = vmatmul.mubr.bf16.gmra.mrb[0].mxu0 %v795
  %v1349 = vpop.f32.mrb[0].mxu0
  %v1350 = vadd.f32 0.0, %v1349
  %v1351 = vpop.f32.mrb[0].mxu0
  %v1352 = vpop.f32.mrb[0].mxu0
  %v1353 = vadd.f32 0.0, %v1352
  %v1354 = vpop.f32.mrb[0].mxu0
  %1355 = vmatprep.mubr.bf16.mxu0 %v800
  %1356 = vmatmul.mubr.bf16.gmra.mrb[0].mxu0 %v799
  %v1357 = vpop.f32.mrb[0].mxu0
  %v1358 = vadd.f32 0.0, %v1357
  %v1359 = vpop.f32.mrb[0].mxu0
  %v1360 = vpop.f32.mrb[0].mxu0
  %v1361 = vadd.f32 0.0, %v1360
  %v1362 = vpop.f32.mrb[0].mxu0
  %1363 = vmatprep.mubr.bf16.mxu0 %v804
  %1364 = vmatmul.mubr.bf16.gmra.mrb[0].mxu0 %v803
  %v1365 = vpop.f32.mrb[0].mxu0
  %v1366 = vadd.f32 0.0, %v1365
  %v1367 = vpop.f32.mrb[0].mxu0
  %v1368 = vpop.f32.mrb[0].mxu0
  %v1369 = vadd.f32 0.0, %v1368
  %v1370 = vpop.f32.mrb[0].mxu0
  %1371 = vmatprep.mubr.bf16.mxu0 %v808
  %1372 = vmatmul.mubr.bf16.gmra.mrb[0].mxu0 %v807
  %v1373 = vpop.f32.mrb[0].mxu0
  %v1374 = vadd.f32 0.0, %v1373
  %v1375 = vpop.f32.mrb[0].mxu0
  %v1376 = vpop.f32.mrb[0].mxu0
  %v1377 = vadd.f32 0.0, %v1376
  %v1378 = vpop.f32.mrb[0].mxu0
  %1379 = vmatprep.mubr.bf16.mxu0 %v812
  %1380 = vmatmul.mubr.bf16.gmra.mrb[0].mxu0 %v811
  %v1381 = vpop.f32.mrb[0].mxu0
  %v1382 = vadd.f32 0.0, %v1381
  %v1383 = vpop.f32.mrb[0].mxu0
  %v1384 = vpop.f32.mrb[0].mxu0
  %v1385 = vadd.f32 0.0, %v1384
  %v1386 = vpop.f32.mrb[0].mxu0
  %1387 = vmatprep.mubr.bf16.mxu0 %v816
  %1388 = vmatmul.mubr.bf16.gmra.mrb[0].mxu0 %v815
  %v1389 = vpop.f32.mrb[0].mxu0
  %v1390 = vadd.f32 0.0, %v1389
  %v1391 = vpop.f32.mrb[0].mxu0
  %v1392 = vpop.f32.mrb[0].mxu0
  %v1393 = vadd.f32 0.0, %v1392
  %v1394 = vpop.f32.mrb[0].mxu0
  %1395 = vmatprep.mubr.bf16.mxu0 %v820
  %1396 = vmatmul.mubr.bf16.gmra.mrb[0].mxu0 %v819
  %v1397 = vpop.f32.mrb[0].mxu0
  %v1398 = vadd.f32 0.0, %v1397
  %v1399 = vpop.f32.mrb[0].mxu0
  %v1400 = vpop.f32.mrb[0].mxu0
  %v1401 = vadd.f32 0.0, %v1400
  %v1402 = vpop.f32.mrb[0].mxu0
  %1403 = vmatprep.mubr.bf16.mxu0 %v824
  %1404 = vmatmul.mubr.bf16.gmra.mrb[0].mxu0 %v823
  %v1405 = vpop.f32.mrb[0].mxu0
  %v1406 = vadd.f32 0.0, %v1405
  %v1407 = vpop.f32.mrb[0].mxu0
  %v1408 = vpop.f32.mrb[0].mxu0
  %v1409 = vadd.f32 0.0, %v1408
  %v1410 = vpop.f32.mrb[0].mxu0
  %1411 = vmatprep.mubr.bf16.mxu0 %v828
  %1412 = vmatmul.mubr.bf16.gmra.mrb[0].mxu0 %v827
  %v1413 = vpop.f32.mrb[0].mxu0
  %v1414 = vadd.f32 0.0, %v1413
  %v1415 = vpop.f32.mrb[0].mxu0
  %v1416 = vpop.f32.mrb[0].mxu0
  %v1417 = vadd.f32 0.0, %v1416
  %v1418 = vpop.f32.mrb[0].mxu0
  %1419 = vmatprep.mubr.bf16.mxu0 %v832
  %1420 = vmatmul.mubr.bf16.gmra.mrb[0].mxu0 %v831
  %v1421 = vpop.f32.mrb[0].mxu0
  %v1422 = vadd.f32 0.0, %v1421
  %v1423 = vpop.f32.mrb[0].mxu0
  %v1424 = vpop.f32.mrb[0].mxu0
  %v1425 = vadd.f32 0.0, %v1424
  %v1426 = vpop.f32.mrb[0].mxu0
  %1427 = vmatprep.mubr.bf16.mxu0 %v836
  %1428 = vmatmul.mubr.bf16.gmra.mrb[0].mxu0 %v835
  %v1429 = vpop.f32.mrb[0].mxu0
  %v1430 = vadd.f32 0.0, %v1429
  %v1431 = vpop.f32.mrb[0].mxu0
  %v1432 = vpop.f32.mrb[0].mxu0
  %v1433 = vadd.f32 0.0, %v1432
  %v1434 = vpop.f32.mrb[0].mxu0
  %1435 = vmatprep.mubr.bf16.mxu0 %v840
  %1436 = vmatmul.mubr.bf16.gmra.mrb[0].mxu0 %v839
  %v1437 = vpop.f32.mrb[0].mxu0
  %v1438 = vadd.f32 0.0, %v1437
  %v1439 = vpop.f32.mrb[0].mxu0
  %v1440 = vpop.f32.mrb[0].mxu0
  %v1441 = vadd.f32 0.0, %v1440
  %v1442 = vpop.f32.mrb[0].mxu0
  %1443 = vmatprep.mubr.bf16.mxu0 %v844
  %1444 = vmatmul.mubr.bf16.gmra.mrb[0].mxu0 %v843
  %v1445 = vpop.f32.mrb[0].mxu0
  %v1446 = vadd.f32 0.0, %v1445
  %v1447 = vpop.f32.mrb[0].mxu0
  %v1448 = vpop.f32.mrb[0].mxu0
  %v1449 = vadd.f32 0.0, %v1448
  %v1450 = vpop.f32.mrb[0].mxu0
  %1451 = vmatprep.mubr.bf16.mxu0 %v848
  %1452 = vmatmul.mubr.bf16.gmra.mrb[0].mxu0 %v847
  %v1453 = vpop.f32.mrb[0].mxu0
  %v1454 = vadd.f32 0.0, %v1453
  %v1455 = vpop.f32.mrb[0].mxu0
  %v1456 = vpop.f32.mrb[0].mxu0
  %v1457 = vadd.f32 0.0, %v1456
  %v1458 = vpop.f32.mrb[0].mxu0
  %1459 = vdwg.mxu0
  %1460 = vmatprep.subr.bf16.mxu0 0
  %1461 = vmatpush1.bf16.msra.mxu0 %v1123
  %1462 = vmatprep.subr.bf16.mxu0 0
  %1463 = vmatpush1.bf16.msra.mxu0 %v1124
  %1464 = vmatprep.subr.bf16.mxu0 0
  %1465 = vmatpush1.bf16.msra.mxu0 %v1125
  %1466 = vmatprep.subr.bf16.mxu0 0
  %1467 = vmatpush1.bf16.msra.mxu0 %v1126
  %1468 = vmatprep.subr.bf16.mxu0 0
  %1469 = vmatpush1.bf16.msra.mxu0 %v1127
  %1470 = vmatprep.subr.bf16.mxu0 0
  %1471 = vmatpush1.bf16.msra.mxu0 %v1128
  %1472 = vmatprep.subr.bf16.mxu0 0
  %1473 = vmatpush1.bf16.msra.mxu0 %v1129
  %1474 = vmatprep.subr.bf16.mxu0 0
  %1475 = vmatpush1.bf16.msra.mxu0 %v1130
  %1476 = vmatprep.subr.bf16.mxu0 0
  %1477 = vmatpush1.bf16.msra.mxu0 %v1131
  %1478 = vmatprep.subr.bf16.mxu0 0
  %1479 = vmatpush1.bf16.msra.mxu0 %v1132
  %1480 = vmatprep.subr.bf16.mxu0 0
  %1481 = vmatpush1.bf16.msra.mxu0 %v1133
  %1482 = vmatprep.subr.bf16.mxu0 0
  %1483 = vmatpush1.bf16.msra.mxu0 %v1134
  %1484 = vmatprep.subr.bf16.mxu0 0
  %1485 = vmatpush1.bf16.msra.mxu0 %v1135
  %1486 = vmatprep.subr.bf16.mxu0 0
  %1487 = vmatpush1.bf16.msra.mxu0 %v1136
  %1488 = vmatprep.subr.bf16.mxu0 0
  %1489 = vmatpush1.bf16.msra.mxu0 %v1137
  %1490 = vmatprep.subr.bf16.mxu0 0
  %1491 = vmatpush1.bf16.msra.mxu0 %v1138
  %1492 = vmatprep.mubr.bf16.mxu0 %v726
  %1493 = vmatmul.mubr.bf16.gmra.mrb[0].mxu0 %v725
  %v1494 = vpop.f32.mrb[0].mxu0
  %v1495 = vadd.f32 %v1206, %v1494
  %v1496 = vpop.f32.mrb[0].mxu0
  %v1497 = vpop.f32.mrb[0].mxu0
  %v1498 = vadd.f32 %v1209, %v1497
  %v1499 = vpop.f32.mrb[0].mxu0
  %1500 = vmatprep.mubr.bf16.mxu0 %v730
  %1501 = vmatmul.mubr.bf16.gmra.mrb[0].mxu0 %v729
  %v1502 = vpop.f32.mrb[0].mxu0
  %v1503 = vadd.f32 %v1214, %v1502
  %v1504 = vpop.f32.mrb[0].mxu0
  %v1505 = vpop.f32.mrb[0].mxu0
  %v1506 = vadd.f32 %v1217, %v1505
  %v1507 = vpop.f32.mrb[0].mxu0
  %1508 = vmatprep.mubr.bf16.mxu0 %v734
  %1509 = vmatmul.mubr.bf16.gmra.mrb[0].mxu0 %v733
  %v1510 = vpop.f32.mrb[0].mxu0
  %v1511 = vadd.f32 %v1222, %v1510
  %v1512 = vpop.f32.mrb[0].mxu0
  %v1513 = vpop.f32.mrb[0].mxu0
  %v1514 = vadd.f32 %v1225, %v1513
  %v1515 = vpop.f32.mrb[0].mxu0
  %1516 = vmatprep.mubr.bf16.mxu0 %v738
  %1517 = vmatmul.mubr.bf16.gmra.mrb[0].mxu0 %v737
  %v1518 = vpop.f32.mrb[0].mxu0
  %v1519 = vadd.f32 %v1230, %v1518
  %v1520 = vpop.f32.mrb[0].mxu0
  %v1521 = vpop.f32.mrb[0].mxu0
  %v1522 = vadd.f32 %v1233, %v1521
  %v1523 = vpop.f32.mrb[0].mxu0
  %1524 = vmatprep.mubr.bf16.mxu0 %v742
  %1525 = vmatmul.mubr.bf16.gmra.mrb[0].mxu0 %v741
  %v1526 = vpop.f32.mrb[0].mxu0
  %v1527 = vadd.f32 %v1238, %v1526
  %v1528 = vpop.f32.mrb[0].mxu0
  %v1529 = vpop.f32.mrb[0].mxu0
  %v1530 = vadd.f32 %v1241, %v1529
  %v1531 = vpop.f32.mrb[0].mxu0
  %1532 = vmatprep.mubr.bf16.mxu0 %v746
  %1533 = vmatmul.mubr.bf16.gmra.mrb[0].mxu0 %v745
  %v1534 = vpop.f32.mrb[0].mxu0
  %v1535 = vadd.f32 %v1246, %v1534
  %v1536 = vpop.f32.mrb[0].mxu0
  %v1537 = vpop.f32.mrb[0].mxu0
  %v1538 = vadd.f32 %v1249, %v1537
  %v1539 = vpop.f32.mrb[0].mxu0
  %1540 = vmatprep.mubr.bf16.mxu0 %v750
  %1541 = vmatmul.mubr.bf16.gmra.mrb[0].mxu0 %v749
  %v1542 = vpop.f32.mrb[0].mxu0
  %v1543 = vadd.f32 %v1254, %v1542
  %v1544 = vpop.f32.mrb[0].mxu0
  %v1545 = vpop.f32.mrb[0].mxu0
  %v1546 = vadd.f32 %v1257, %v1545
  %v1547 = vpop.f32.mrb[0].mxu0
  %1548 = vmatprep.mubr.bf16.mxu0 %v754
  %1549 = vmatmul.mubr.bf16.gmra.mrb[0].mxu0 %v753
  %v1550 = vpop.f32.mrb[0].mxu0
  %v1551 = vadd.f32 %v1262, %v1550
  %v1552 = vpop.f32.mrb[0].mxu0
  %v1553 = vpop.f32.mrb[0].mxu0
  %v1554 = vadd.f32 %v1265, %v1553
  %v1555 = vpop.f32.mrb[0].mxu0
  %1556 = vmatprep.mubr.bf16.mxu0 %v758
  %1557 = vmatmul.mubr.bf16.gmra.mrb[0].mxu0 %v757
  %v1558 = vpop.f32.mrb[0].mxu0
  %v1559 = vadd.f32 %v1270, %v1558
  %v1560 = vpop.f32.mrb[0].mxu0
  %v1561 = vpop.f32.mrb[0].mxu0
  %v1562 = vadd.f32 %v1273, %v1561
  %v1563 = vpop.f32.mrb[0].mxu0
  %1564 = vmatprep.mubr.bf16.mxu0 %v762
  %1565 = vmatmul.mubr.bf16.gmra.mrb[0].mxu0 %v761
  %v1566 = vpop.f32.mrb[0].mxu0
  %v1567 = vadd.f32 %v1278, %v1566
  %v1568 = vpop.f32.mrb[0].mxu0
  %v1569 = vpop.f32.mrb[0].mxu0
  %v1570 = vadd.f32 %v1281, %v1569
  %v1571 = vpop.f32.mrb[0].mxu0
  %1572 = vmatprep.mubr.bf16.mxu0 %v766
  %1573 = vmatmul.mubr.bf16.gmra.mrb[0].mxu0 %v765
  %v1574 = vpop.f32.mrb[0].mxu0
  %v1575 = vadd.f32 %v1286, %v1574
  %v1576 = vpop.f32.mrb[0].mxu0
  %v1577 = vpop.f32.mrb[0].mxu0
  %v1578 = vadd.f32 %v1289, %v1577
  %v1579 = vpop.f32.mrb[0].mxu0
  %1580 = vmatprep.mubr.bf16.mxu0 %v770
  %1581 = vmatmul.mubr.bf16.gmra.mrb[0].mxu0 %v769
  %v1582 = vpop.f32.mrb[0].mxu0
  %v1583 = vadd.f32 %v1294, %v1582
  %v1584 = vpop.f32.mrb[0].mxu0
  %v1585 = vpop.f32.mrb[0].mxu0
  %v1586 = vadd.f32 %v1297, %v1585
  %v1587 = vpop.f32.mrb[0].mxu0
  %1588 = vmatprep.mubr.bf16.mxu0 %v774
  %1589 = vmatmul.mubr.bf16.gmra.mrb[0].mxu0 %v773
  %v1590 = vpop.f32.mrb[0].mxu0
  %v1591 = vadd.f32 %v1302, %v1590
  %v1592 = vpop.f32.mrb[0].mxu0
  %v1593 = vpop.f32.mrb[0].mxu0
  %v1594 = vadd.f32 %v1305, %v1593
  %v1595 = vpop.f32.mrb[0].mxu0
  %1596 = vmatprep.mubr.bf16.mxu0 %v778
  %1597 = vmatmul.mubr.bf16.gmra.mrb[0].mxu0 %v777
  %v1598 = vpop.f32.mrb[0].mxu0
  %v1599 = vadd.f32 %v1310, %v1598
  %v1600 = vpop.f32.mrb[0].mxu0
  %v1601 = vpop.f32.mrb[0].mxu0
  %v1602 = vadd.f32 %v1313, %v1601
  %v1603 = vpop.f32.mrb[0].mxu0
  %1604 = vmatprep.mubr.bf16.mxu0 %v782
  %1605 = vmatmul.mubr.bf16.gmra.mrb[0].mxu0 %v781
  %v1606 = vpop.f32.mrb[0].mxu0
  %v1607 = vadd.f32 %v1318, %v1606
  %v1608 = vpop.f32.mrb[0].mxu0
  %v1609 = vpop.f32.mrb[0].mxu0
  %v1610 = vadd.f32 %v1321, %v1609
  %v1611 = vpop.f32.mrb[0].mxu0
  %1612 = vmatprep.mubr.bf16.mxu0 %v786
  %1613 = vmatmul.mubr.bf16.gmra.mrb[0].mxu0 %v785
  %v1614 = vpop.f32.mrb[0].mxu0
  %v1615 = vadd.f32 %v1326, %v1614
  %v1616 = vpop.f32.mrb[0].mxu0
  %v1617 = vpop.f32.mrb[0].mxu0
  %v1618 = vadd.f32 %v1329, %v1617
  %v1619 = vpop.f32.mrb[0].mxu0
  %1620 = vmatprep.mubr.bf16.mxu0 %v790
  %1621 = vmatmul.mubr.bf16.gmra.mrb[0].mxu0 %v789
  %v1622 = vpop.f32.mrb[0].mxu0
  %v1623 = vadd.f32 %v1334, %v1622
  %v1624 = vpop.f32.mrb[0].mxu0
  %v1625 = vpop.f32.mrb[0].mxu0
  %v1626 = vadd.f32 %v1337, %v1625
  %v1627 = vpop.f32.mrb[0].mxu0
  %1628 = vmatprep.mubr.bf16.mxu0 %v794
  %1629 = vmatmul.mubr.bf16.gmra.mrb[0].mxu0 %v793
  %v1630 = vpop.f32.mrb[0].mxu0
  %v1631 = vadd.f32 %v1342, %v1630
  %v1632 = vpop.f32.mrb[0].mxu0
  %v1633 = vpop.f32.mrb[0].mxu0
  %v1634 = vadd.f32 %v1345, %v1633
  %v1635 = vpop.f32.mrb[0].mxu0
  %1636 = vmatprep.mubr.bf16.mxu0 %v798
  %1637 = vmatmul.mubr.bf16.gmra.mrb[0].mxu0 %v797
  %v1638 = vpop.f32.mrb[0].mxu0
  %v1639 = vadd.f32 %v1350, %v1638
  %v1640 = vpop.f32.mrb[0].mxu0
  %v1641 = vpop.f32.mrb[0].mxu0
  %v1642 = vadd.f32 %v1353, %v1641
  %v1643 = vpop.f32.mrb[0].mxu0
  %1644 = vmatprep.mubr.bf16.mxu0 %v802
  %1645 = vmatmul.mubr.bf16.gmra.mrb[0].mxu0 %v801
  %v1646 = vpop.f32.mrb[0].mxu0
  %v1647 = vadd.f32 %v1358, %v1646
  %v1648 = vpop.f32.mrb[0].mxu0
  %v1649 = vpop.f32.mrb[0].mxu0
  %v1650 = vadd.f32 %v1361, %v1649
  %v1651 = vpop.f32.mrb[0].mxu0
  %1652 = vmatprep.mubr.bf16.mxu0 %v806
  %1653 = vmatmul.mubr.bf16.gmra.mrb[0].mxu0 %v805
  %v1654 = vpop.f32.mrb[0].mxu0
  %v1655 = vadd.f32 %v1366, %v1654
  %v1656 = vpop.f32.mrb[0].mxu0
  %v1657 = vpop.f32.mrb[0].mxu0
  %v1658 = vadd.f32 %v1369, %v1657
  %v1659 = vpop.f32.mrb[0].mxu0
  %1660 = vmatprep.mubr.bf16.mxu0 %v810
  %1661 = vmatmul.mubr.bf16.gmra.mrb[0].mxu0 %v809
  %v1662 = vpop.f32.mrb[0].mxu0
  %v1663 = vadd.f32 %v1374, %v1662
  %v1664 = vpop.f32.mrb[0].mxu0
  %v1665 = vpop.f32.mrb[0].mxu0
  %v1666 = vadd.f32 %v1377, %v1665
  %v1667 = vpop.f32.mrb[0].mxu0
  %1668 = vmatprep.mubr.bf16.mxu0 %v814
  %1669 = vmatmul.mubr.bf16.gmra.mrb[0].mxu0 %v813
  %v1670 = vpop.f32.mrb[0].mxu0
  %v1671 = vadd.f32 %v1382, %v1670
  %v1672 = vpop.f32.mrb[0].mxu0
  %v1673 = vpop.f32.mrb[0].mxu0
  %v1674 = vadd.f32 %v1385, %v1673
  %v1675 = vpop.f32.mrb[0].mxu0
  %1676 = vmatprep.mubr.bf16.mxu0 %v818
  %1677 = vmatmul.mubr.bf16.gmra.mrb[0].mxu0 %v817
  %v1678 = vpop.f32.mrb[0].mxu0
  %v1679 = vadd.f32 %v1390, %v1678
  %v1680 = vpop.f32.mrb[0].mxu0
  %v1681 = vpop.f32.mrb[0].mxu0
  %v1682 = vadd.f32 %v1393, %v1681
  %v1683 = vpop.f32.mrb[0].mxu0
  %1684 = vmatprep.mubr.bf16.mxu0 %v822
  %1685 = vmatmul.mubr.bf16.gmra.mrb[0].mxu0 %v821
  %v1686 = vpop.f32.mrb[0].mxu0
  %v1687 = vadd.f32 %v1398, %v1686
  %v1688 = vpop.f32.mrb[0].mxu0
  %v1689 = vpop.f32.mrb[0].mxu0
  %v1690 = vadd.f32 %v1401, %v1689
  %v1691 = vpop.f32.mrb[0].mxu0
  %1692 = vmatprep.mubr.bf16.mxu0 %v826
  %1693 = vmatmul.mubr.bf16.gmra.mrb[0].mxu0 %v825
  %v1694 = vpop.f32.mrb[0].mxu0
  %v1695 = vadd.f32 %v1406, %v1694
  %v1696 = vpop.f32.mrb[0].mxu0
  %v1697 = vpop.f32.mrb[0].mxu0
  %v1698 = vadd.f32 %v1409, %v1697
  %v1699 = vpop.f32.mrb[0].mxu0
  %1700 = vmatprep.mubr.bf16.mxu0 %v830
  %1701 = vmatmul.mubr.bf16.gmra.mrb[0].mxu0 %v829
  %v1702 = vpop.f32.mrb[0].mxu0
  %v1703 = vadd.f32 %v1414, %v1702
  %v1704 = vpop.f32.mrb[0].mxu0
  %v1705 = vpop.f32.mrb[0].mxu0
  %v1706 = vadd.f32 %v1417, %v1705
  %v1707 = vpop.f32.mrb[0].mxu0
  %1708 = vmatprep.mubr.bf16.mxu0 %v834
  %1709 = vmatmul.mubr.bf16.gmra.mrb[0].mxu0 %v833
  %v1710 = vpop.f32.mrb[0].mxu0
  %v1711 = vadd.f32 %v1422, %v1710
  %v1712 = vpop.f32.mrb[0].mxu0
  %v1713 = vpop.f32.mrb[0].mxu0
  %v1714 = vadd.f32 %v1425, %v1713
  %v1715 = vpop.f32.mrb[0].mxu0
  %1716 = vmatprep.mubr.bf16.mxu0 %v838
  %1717 = vmatmul.mubr.bf16.gmra.mrb[0].mxu0 %v837
  %v1718 = vpop.f32.mrb[0].mxu0
  %v1719 = vadd.f32 %v1430, %v1718
  %v1720 = vpop.f32.mrb[0].mxu0
  %v1721 = vpop.f32.mrb[0].mxu0
  %v1722 = vadd.f32 %v1433, %v1721
  %v1723 = vpop.f32.mrb[0].mxu0
  %1724 = vmatprep.mubr.bf16.mxu0 %v842
  %1725 = vmatmul.mubr.bf16.gmra.mrb[0].mxu0 %v841
  %v1726 = vpop.f32.mrb[0].mxu0
  %v1727 = vadd.f32 %v1438, %v1726
  %v1728 = vpop.f32.mrb[0].mxu0
  %v1729 = vpop.f32.mrb[0].mxu0
  %v1730 = vadd.f32 %v1441, %v1729
  %v1731 = vpop.f32.mrb[0].mxu0
  %1732 = vmatprep.mubr.bf16.mxu0 %v846
  %1733 = vmatmul.mubr.bf16.gmra.mrb[0].mxu0 %v845
  %v1734 = vpop.f32.mrb[0].mxu0
  %v1735 = vadd.f32 %v1446, %v1734
  %v1736 = vpop.f32.mrb[0].mxu0
  %v1737 = vpop.f32.mrb[0].mxu0
  %v1738 = vadd.f32 %v1449, %v1737
  %v1739 = vpop.f32.mrb[0].mxu0
  %1740 = vmatprep.mubr.bf16.mxu0 %v850
  %1741 = vmatmul.mubr.bf16.gmra.mrb[0].mxu0 %v849
  %v1742 = vpop.f32.mrb[0].mxu0
  %v1743 = vadd.f32 %v1454, %v1742
  %v1744 = vpop.f32.mrb[0].mxu0
  %v1745 = vpop.f32.mrb[0].mxu0
  %v1746 = vadd.f32 %v1457, %v1745
  %v1747 = vpop.f32.mrb[0].mxu0
  %1748 = vdwg.mxu0
  %v1749 = vadd.f32 %v83, %v1495
  %v1750 = vadd.f32 %v84, %v1498
  %v1751 = vadd.f32 %v85, %v1503
  %v1752 = vadd.f32 %v86, %v1506
  %v1753 = vadd.f32 %v87, %v1511
  %v1754 = vadd.f32 %v88, %v1514
  %v1755 = vadd.f32 %v89, %v1519
  %v1756 = vadd.f32 %v90, %v1522
  %v1757 = vadd.f32 %v91, %v1527
  %v1758 = vadd.f32 %v92, %v1530
  %v1759 = vadd.f32 %v93, %v1535
  %v1760 = vadd.f32 %v94, %v1538
  %v1761 = vadd.f32 %v95, %v1543
  %v1762 = vadd.f32 %v96, %v1546
  %v1763 = vadd.f32 %v97, %v1551
  %v1764 = vadd.f32 %v98, %v1554
  %v1765 = vadd.f32 %v99, %v1559
  %v1766 = vadd.f32 %v100, %v1562
  %v1767 = vadd.f32 %v101, %v1567
  %v1768 = vadd.f32 %v102, %v1570
  %v1769 = vadd.f32 %v103, %v1575
  %v1770 = vadd.f32 %v104, %v1578
  %v1771 = vadd.f32 %v105, %v1583
  %v1772 = vadd.f32 %v106, %v1586
  %v1773 = vadd.f32 %v107, %v1591
  %v1774 = vadd.f32 %v108, %v1594
  %v1775 = vadd.f32 %v109, %v1599
  %v1776 = vadd.f32 %v110, %v1602
  %v1777 = vadd.f32 %v111, %v1607
  %v1778 = vadd.f32 %v112, %v1610
  %v1779 = vadd.f32 %v113, %v1615
  %v1780 = vadd.f32 %v114, %v1618
  %v1781 = vadd.f32 %v115, %v1623
  %v1782 = vadd.f32 %v116, %v1626
  %v1783 = vadd.f32 %v117, %v1631
  %v1784 = vadd.f32 %v118, %v1634
  %v1785 = vadd.f32 %v119, %v1639
  %v1786 = vadd.f32 %v120, %v1642
  %v1787 = vadd.f32 %v121, %v1647
  %v1788 = vadd.f32 %v122, %v1650
  %v1789 = vadd.f32 %v123, %v1655
  %v1790 = vadd.f32 %v124, %v1658
  %v1791 = vadd.f32 %v125, %v1663
  %v1792 = vadd.f32 %v126, %v1666
  %v1793 = vadd.f32 %v127, %v1671
  %v1794 = vadd.f32 %v128, %v1674
  %v1795 = vadd.f32 %v129, %v1679
  %v1796 = vadd.f32 %v130, %v1682
  %v1797 = vadd.f32 %v131, %v1687
  %v1798 = vadd.f32 %v132, %v1690
  %v1799 = vadd.f32 %v133, %v1695
  %v1800 = vadd.f32 %v134, %v1698
  %v1801 = vadd.f32 %v135, %v1703
  %v1802 = vadd.f32 %v136, %v1706
  %v1803 = vadd.f32 %v137, %v1711
  %v1804 = vadd.f32 %v138, %v1714
  %v1805 = vadd.f32 %v139, %v1719
  %v1806 = vadd.f32 %v140, %v1722
  %v1807 = vadd.f32 %v141, %v1727
  %v1808 = vadd.f32 %v142, %v1730
  %v1809 = vadd.f32 %v143, %v1735
  %v1810 = vadd.f32 %v144, %v1738
  %v1811 = vadd.f32 %v145, %v1743
  %v1812 = vadd.f32 %v146, %v1746
  %1813 = vst [vmem:[#allocation2] sm:$0xff] %v1749
  %1814 = vst [vmem:[#allocation2 + $0x8] sm:$0xff] %v1750
  %1815 = vst [vmem:[#allocation2 + $0x10] sm:$0xff] %v1751
  %1816 = vst [vmem:[#allocation2 + $0x18] sm:$0xff] %v1752
  %1817 = vst [vmem:[#allocation2 + $0x20] sm:$0xff] %v1753
  %1818 = vst [vmem:[#allocation2 + $0x28] sm:$0xff] %v1754
  %1819 = vst [vmem:[#allocation2 + $0x30] sm:$0xff] %v1755
  %1820 = vst [vmem:[#allocation2 + $0x38] sm:$0xff] %v1756
  %1821 = vst [vmem:[#allocation2 + $0x40] sm:$0xff] %v1757
  %1822 = vst [vmem:[#allocation2 + $0x48] sm:$0xff] %v1758
  %1823 = vst [vmem:[#allocation2 + $0x50] sm:$0xff] %v1759
  %1824 = vst [vmem:[#allocation2 + $0x58] sm:$0xff] %v1760
  %1825 = vst [vmem:[#allocation2 + $0x60] sm:$0xff] %v1761
  %1826 = vst [vmem:[#allocation2 + $0x68] sm:$0xff] %v1762
  %1827 = vst [vmem:[#allocation2 + $0x70] sm:$0xff] %v1763
  %1828 = vst [vmem:[#allocation2 + $0x78] sm:$0xff] %v1764
  %1829 = vst [vmem:[#allocation2 + $0x80] sm:$0xff] %v1765
  %1830 = vst [vmem:[#allocation2 + $0x88] sm:$0xff] %v1766
  %1831 = vst [vmem:[#allocation2 + $0x90] sm:$0xff] %v1767
  %1832 = vst [vmem:[#allocation2 + $0x98] sm:$0xff] %v1768
  %1833 = vst [vmem:[#allocation2 + $0xa0] sm:$0xff] %v1769
  %1834 = vst [vmem:[#allocation2 + $0xa8] sm:$0xff] %v1770
  %1835 = vst [vmem:[#allocation2 + $0xb0] sm:$0xff] %v1771
  %1836 = vst [vmem:[#allocation2 + $0xb8] sm:$0xff] %v1772
  %1837 = vst [vmem:[#allocation2 + $0xc0] sm:$0xff] %v1773
  %1838 = vst [vmem:[#allocation2 + $0xc8] sm:$0xff] %v1774
  %1839 = vst [vmem:[#allocation2 + $0xd0] sm:$0xff] %v1775
  %1840 = vst [vmem:[#allocation2 + $0xd8] sm:$0xff] %v1776
  %1841 = vst [vmem:[#allocation2 + $0xe0] sm:$0xff] %v1777
  %1842 = vst [vmem:[#allocation2 + $0xe8] sm:$0xff] %v1778
  %1843 = vst [vmem:[#allocation2 + $0xf0] sm:$0xff] %v1779
  %1844 = vst [vmem:[#allocation2 + $0xf8] sm:$0xff] %v1780
  %1845 = vst [vmem:[#allocation2 + $0x100] sm:$0xff] %v1781
  %1846 = vst [vmem:[#allocation2 + $0x108] sm:$0xff] %v1782
  %1847 = vst [vmem:[#allocation2 + $0x110] sm:$0xff] %v1783
  %1848 = vst [vmem:[#allocation2 + $0x118] sm:$0xff] %v1784
  %1849 = vst [vmem:[#allocation2 + $0x120] sm:$0xff] %v1785
  %1850 = vst [vmem:[#allocation2 + $0x128] sm:$0xff] %v1786
  %1851 = vst [vmem:[#allocation2 + $0x130] sm:$0xff] %v1787
  %1852 = vst [vmem:[#allocation2 + $0x138] sm:$0xff] %v1788
  %1853 = vst [vmem:[#allocation2 + $0x140] sm:$0xff] %v1789
  %1854 = vst [vmem:[#allocation2 + $0x148] sm:$0xff] %v1790
  %1855 = vst [vmem:[#allocation2 + $0x150] sm:$0xff] %v1791
  %1856 = vst [vmem:[#allocation2 + $0x158] sm:$0xff] %v1792
  %1857 = vst [vmem:[#allocation2 + $0x160] sm:$0xff] %v1793
  %1858 = vst [vmem:[#allocation2 + $0x168] sm:$0xff] %v1794
  %1859 = vst [vmem:[#allocation2 + $0x170] sm:$0xff] %v1795
  %1860 = vst [vmem:[#allocation2 + $0x178] sm:$0xff] %v1796
  %1861 = vst [vmem:[#allocation2 + $0x180] sm:$0xff] %v1797
  %1862 = vst [vmem:[#allocation2 + $0x188] sm:$0xff] %v1798
  %1863 = vst [vmem:[#allocation2 + $0x190] sm:$0xff] %v1799
  %1864 = vst [vmem:[#allocation2 + $0x198] sm:$0xff] %v1800
  %1865 = vst [vmem:[#allocation2 + $0x1a0] sm:$0xff] %v1801
  %1866 = vst [vmem:[#allocation2 + $0x1a8] sm:$0xff] %v1802
  %1867 = vst [vmem:[#allocation2 + $0x1b0] sm:$0xff] %v1803
  %1868 = vst [vmem:[#allocation2 + $0x1b8] sm:$0xff] %v1804
  %1869 = vst [vmem:[#allocation2 + $0x1c0] sm:$0xff] %v1805
  %1870 = vst [vmem:[#allocation2 + $0x1c8] sm:$0xff] %v1806
  %1871 = vst [vmem:[#allocation2 + $0x1d0] sm:$0xff] %v1807
  %1872 = vst [vmem:[#allocation2 + $0x1d8] sm:$0xff] %v1808
  %1873 = vst [vmem:[#allocation2 + $0x1e0] sm:$0xff] %v1809
  %1874 = vst [vmem:[#allocation2 + $0x1e8] sm:$0xff] %v1810
  %1875 = vst [vmem:[#allocation2 + $0x1f0] sm:$0xff] %v1811
  %1876 = vst [vmem:[#allocation2 + $0x1f8] sm:$0xff] %v1812
  // Predicated region
  $region18: #{hyper_analysis_ex.4} parent=0 // pred_check
    %p1877 = pneg %p15
  $region19: #{hyper_analysis_ex.4} parent=0 // pred_check_branch
    %1879 = sbr.rel (%p1877) target = $region21
  $region20: #{hyper_analysis_ex.4} parent=0 // pred_region
    %v1880 = vld [vmem:[#allocation2] sm:$0xff]
    %v1881 = vld [vmem:[#allocation2 + $0x8] sm:$0xff]
    %v1882 = vld [vmem:[#allocation2 + $0x10] sm:$0xff]
    %v1883 = vld [vmem:[#allocation2 + $0x18] sm:$0xff]
    %v1884 = vld [vmem:[#allocation2 + $0x20] sm:$0xff]
    %v1885 = vld [vmem:[#allocation2 + $0x28] sm:$0xff]
    %v1886 = vld [vmem:[#allocation2 + $0x30] sm:$0xff]
    %v1887 = vld [vmem:[#allocation2 + $0x38] sm:$0xff]
    %v1888 = vld [vmem:[#allocation2 + $0x40] sm:$0xff]
    %v1889 = vld [vmem:[#allocation2 + $0x48] sm:$0xff]
    %v1890 = vld [vmem:[#allocation2 + $0x50] sm:$0xff]
    %v1891 = vld [vmem:[#allocation2 + $0x58] sm:$0xff]
    %v1892 = vld [vmem:[#allocation2 + $0x60] sm:$0xff]
    %v1893 = vld [vmem:[#allocation2 + $0x68] sm:$0xff]
    %v1894 = vld [vmem:[#allocation2 + $0x70] sm:$0xff]
    %v1895 = vld [vmem:[#allocation2 + $0x78] sm:$0xff]
    %v1896 = vld [vmem:[#allocation2 + $0x80] sm:$0xff]
    %v1897 = vld [vmem:[#allocation2 + $0x88] sm:$0xff]
    %v1898 = vld [vmem:[#allocation2 + $0x90] sm:$0xff]
    %v1899 = vld [vmem:[#allocation2 + $0x98] sm:$0xff]
    %v1900 = vld [vmem:[#allocation2 + $0xa0] sm:$0xff]
    %v1901 = vld [vmem:[#allocation2 + $0xa8] sm:$0xff]
    %v1902 = vld [vmem:[#allocation2 + $0xb0] sm:$0xff]
    %v1903 = vld [vmem:[#allocation2 + $0xb8] sm:$0xff]
    %v1904 = vld [vmem:[#allocation2 + $0xc0] sm:$0xff]
    %v1905 = vld [vmem:[#allocation2 + $0xc8] sm:$0xff]
    %v1906 = vld [vmem:[#allocation2 + $0xd0] sm:$0xff]
    %v1907 = vld [vmem:[#allocation2 + $0xd8] sm:$0xff]
    %v1908 = vld [vmem:[#allocation2 + $0xe0] sm:$0xff]
    %v1909 = vld [vmem:[#allocation2 + $0xe8] sm:$0xff]
    %v1910 = vld [vmem:[#allocation2 + $0xf0] sm:$0xff]
    %v1911 = vld [vmem:[#allocation2 + $0xf8] sm:$0xff]
    %v1912 = vld [vmem:[#allocation2 + $0x100] sm:$0xff]
    %v1913 = vld [vmem:[#allocation2 + $0x108] sm:$0xff]
    %v1914 = vld [vmem:[#allocation2 + $0x110] sm:$0xff]
    %v1915 = vld [vmem:[#allocation2 + $0x118] sm:$0xff]
    %v1916 = vld [vmem:[#allocation2 + $0x120] sm:$0xff]
    %v1917 = vld [vmem:[#allocation2 + $0x128] sm:$0xff]
    %v1918 = vld [vmem:[#allocation2 + $0x130] sm:$0xff]
    %v1919 = vld [vmem:[#allocation2 + $0x138] sm:$0xff]
    %v1920 = vld [vmem:[#allocation2 + $0x140] sm:$0xff]
    %v1921 = vld [vmem:[#allocation2 + $0x148] sm:$0xff]
    %v1922 = vld [vmem:[#allocation2 + $0x150] sm:$0xff]
    %v1923 = vld [vmem:[#allocation2 + $0x158] sm:$0xff]
    %v1924 = vld [vmem:[#allocation2 + $0x160] sm:$0xff]
    %v1925 = vld [vmem:[#allocation2 + $0x168] sm:$0xff]
    %v1926 = vld [vmem:[#allocation2 + $0x170] sm:$0xff]
    %v1927 = vld [vmem:[#allocation2 + $0x178] sm:$0xff]
    %v1928 = vld [vmem:[#allocation2 + $0x180] sm:$0xff]
    %v1929 = vld [vmem:[#allocation2 + $0x188] sm:$0xff]
    %v1930 = vld [vmem:[#allocation2 + $0x190] sm:$0xff]
    %v1931 = vld [vmem:[#allocation2 + $0x198] sm:$0xff]
    %v1932 = vld [vmem:[#allocation2 + $0x1a0] sm:$0xff]
    %v1933 = vld [vmem:[#allocation2 + $0x1a8] sm:$0xff]
    %v1934 = vld [vmem:[#allocation2 + $0x1b0] sm:$0xff]
    %v1935 = vld [vmem:[#allocation2 + $0x1b8] sm:$0xff]
    %v1936 = vld [vmem:[#allocation2 + $0x1c0] sm:$0xff]
    %v1937 = vld [vmem:[#allocation2 + $0x1c8] sm:$0xff]
    %v1938 = vld [vmem:[#allocation2 + $0x1d0] sm:$0xff]
    %v1939 = vld [vmem:[#allocation2 + $0x1d8] sm:$0xff]
    %v1940 = vld [vmem:[#allocation2 + $0x1e0] sm:$0xff]
    %v1941 = vld [vmem:[#allocation2 + $0x1e8] sm:$0xff]
    %v1942 = vld [vmem:[#allocation2 + $0x1f0] sm:$0xff]
    %v1943 = vld [vmem:[#allocation2 + $0x1f8] sm:$0xff]
    %v1944 = vld [vmem:[%s2] sm:$0x1]
    %v1946 = vlaneseq
    %v1947 = vshrl.u32 %v1946, 7
    %v1948 = vsub.s32 0, %v1947
    %v1949 = vrot.slane %v1944, %v1948
    %v1951 = vadd.f32 %v1880, %v1949
    %v1952 = vadd.f32 %v1881, %v1949
    %v1953 = vadd.f32 %v1882, %v1949
    %v1954 = vadd.f32 %v1883, %v1949
    %v1955 = vadd.f32 %v1884, %v1949
    %v1956 = vadd.f32 %v1885, %v1949
    %v1957 = vadd.f32 %v1886, %v1949
    %v1958 = vadd.f32 %v1887, %v1949
    %v1959 = vadd.f32 %v1888, %v1949
    %v1960 = vadd.f32 %v1889, %v1949
    %v1961 = vadd.f32 %v1890, %v1949
    %v1962 = vadd.f32 %v1891, %v1949
    %v1963 = vadd.f32 %v1892, %v1949
    %v1964 = vadd.f32 %v1893, %v1949
    %v1965 = vadd.f32 %v1894, %v1949
    %v1966 = vadd.f32 %v1895, %v1949
    %v1967 = vadd.f32 %v1896, %v1949
    %v1968 = vadd.f32 %v1897, %v1949
    %v1969 = vadd.f32 %v1898, %v1949
    %v1970 = vadd.f32 %v1899, %v1949
    %v1971 = vadd.f32 %v1900, %v1949
    %v1972 = vadd.f32 %v1901, %v1949
    %v1973 = vadd.f32 %v1902, %v1949
    %v1974 = vadd.f32 %v1903, %v1949
    %v1975 = vadd.f32 %v1904, %v1949
    %v1976 = vadd.f32 %v1905, %v1949
    %v1977 = vadd.f32 %v1906, %v1949
    %v1978 = vadd.f32 %v1907, %v1949
    %v1979 = vadd.f32 %v1908, %v1949
    %v1980 = vadd.f32 %v1909, %v1949
    %v1981 = vadd.f32 %v1910, %v1949
    %v1982 = vadd.f32 %v1911, %v1949
    %v1983 = vadd.f32 %v1912, %v1949
    %v1984 = vadd.f32 %v1913, %v1949
    %v1985 = vadd.f32 %v1914, %v1949
    %v1986 = vadd.f32 %v1915, %v1949
    %v1987 = vadd.f32 %v1916, %v1949
    %v1988 = vadd.f32 %v1917, %v1949
    %v1989 = vadd.f32 %v1918, %v1949
    %v1990 = vadd.f32 %v1919, %v1949
    %v1991 = vadd.f32 %v1920, %v1949
    %v1992 = vadd.f32 %v1921, %v1949
    %v1993 = vadd.f32 %v1922, %v1949
    %v1994 = vadd.f32 %v1923, %v1949
    %v1995 = vadd.f32 %v1924, %v1949
    %v1996 = vadd.f32 %v1925, %v1949
    %v1997 = vadd.f32 %v1926, %v1949
    %v1998 = vadd.f32 %v1927, %v1949
    %v1999 = vadd.f32 %v1928, %v1949
    %v2000 = vadd.f32 %v1929, %v1949
    %v2001 = vadd.f32 %v1930, %v1949
    %v2002 = vadd.f32 %v1931, %v1949
    %v2003 = vadd.f32 %v1932, %v1949
    %v2004 = vadd.f32 %v1933, %v1949
    %v2005 = vadd.f32 %v1934, %v1949
    %v2006 = vadd.f32 %v1935, %v1949
    %v2007 = vadd.f32 %v1936, %v1949
    %v2008 = vadd.f32 %v1937, %v1949
    %v2009 = vadd.f32 %v1938, %v1949
    %v2010 = vadd.f32 %v1939, %v1949
    %v2011 = vadd.f32 %v1940, %v1949
    %v2012 = vadd.f32 %v1941, %v1949
    %v2013 = vadd.f32 %v1942, %v1949
    %v2014 = vadd.f32 %v1943, %v1949
    %v2015 = vmax.f32 %v1951, 0.0
    %v2016 = vmax.f32 %v1952, 0.0
    %v2017 = vmax.f32 %v1953, 0.0
    %v2018 = vmax.f32 %v1954, 0.0
    %v2019 = vmax.f32 %v1955, 0.0
    %v2020 = vmax.f32 %v1956, 0.0
    %v2021 = vmax.f32 %v1957, 0.0
    %v2022 = vmax.f32 %v1958, 0.0
    %v2023 = vmax.f32 %v1959, 0.0
    %v2024 = vmax.f32 %v1960, 0.0
    %v2025 = vmax.f32 %v1961, 0.0
    %v2026 = vmax.f32 %v1962, 0.0
    %v2027 = vmax.f32 %v1963, 0.0
    %v2028 = vmax.f32 %v1964, 0.0
    %v2029 = vmax.f32 %v1965, 0.0
    %v2030 = vmax.f32 %v1966, 0.0
    %v2031 = vmax.f32 %v1967, 0.0
    %v2032 = vmax.f32 %v1968, 0.0
    %v2033 = vmax.f32 %v1969, 0.0
    %v2034 = vmax.f32 %v1970, 0.0
    %v2035 = vmax.f32 %v1971, 0.0
    %v2036 = vmax.f32 %v1972, 0.0
    %v2037 = vmax.f32 %v1973, 0.0
    %v2038 = vmax.f32 %v1974, 0.0
    %v2039 = vmax.f32 %v1975, 0.0
    %v2040 = vmax.f32 %v1976, 0.0
    %v2041 = vmax.f32 %v1977, 0.0
    %v2042 = vmax.f32 %v1978, 0.0
    %v2043 = vmax.f32 %v1979, 0.0
    %v2044 = vmax.f32 %v1980, 0.0
    %v2045 = vmax.f32 %v1981, 0.0
    %v2046 = vmax.f32 %v1982, 0.0
    %v2047 = vmax.f32 %v1983, 0.0
    %v2048 = vmax.f32 %v1984, 0.0
    %v2049 = vmax.f32 %v1985, 0.0
    %v2050 = vmax.f32 %v1986, 0.0
    %v2051 = vmax.f32 %v1987, 0.0
    %v2052 = vmax.f32 %v1988, 0.0
    %v2053 = vmax.f32 %v1989, 0.0
    %v2054 = vmax.f32 %v1990, 0.0
    %v2055 = vmax.f32 %v1991, 0.0
    %v2056 = vmax.f32 %v1992, 0.0
    %v2057 = vmax.f32 %v1993, 0.0
    %v2058 = vmax.f32 %v1994, 0.0
    %v2059 = vmax.f32 %v1995, 0.0
    %v2060 = vmax.f32 %v1996, 0.0
    %v2061 = vmax.f32 %v1997, 0.0
    %v2062 = vmax.f32 %v1998, 0.0
    %v2063 = vmax.f32 %v1999, 0.0
    %v2064 = vmax.f32 %v2000, 0.0
    %v2065 = vmax.f32 %v2001, 0.0
    %v2066 = vmax.f32 %v2002, 0.0
    %v2067 = vmax.f32 %v2003, 0.0
    %v2068 = vmax.f32 %v2004, 0.0
    %v2069 = vmax.f32 %v2005, 0.0
    %v2070 = vmax.f32 %v2006, 0.0
    %v2071 = vmax.f32 %v2007, 0.0
    %v2072 = vmax.f32 %v2008, 0.0
    %v2073 = vmax.f32 %v2009, 0.0
    %v2074 = vmax.f32 %v2010, 0.0
    %v2075 = vmax.f32 %v2011, 0.0
    %v2076 = vmax.f32 %v2012, 0.0
    %v2077 = vmax.f32 %v2013, 0.0
    %v2078 = vmax.f32 %v2014, 0.0
    %v2079 = vpack.c.bf16 %v2016, %v2015
    %v2080 = vpack.c.bf16 %v2018, %v2017
    %v2081 = vpack.c.bf16 %v2020, %v2019
    %v2082 = vpack.c.bf16 %v2022, %v2021
    %v2083 = vpack.c.bf16 %v2024, %v2023
    %v2084 = vpack.c.bf16 %v2026, %v2025
    %v2085 = vpack.c.bf16 %v2028, %v2027
    %v2086 = vpack.c.bf16 %v2030, %v2029
    %v2087 = vpack.c.bf16 %v2032, %v2031
    %v2088 = vpack.c.bf16 %v2034, %v2033
    %v2089 = vpack.c.bf16 %v2036, %v2035
    %v2090 = vpack.c.bf16 %v2038, %v2037
    %v2091 = vpack.c.bf16 %v2040, %v2039
    %v2092 = vpack.c.bf16 %v2042, %v2041
    %v2093 = vpack.c.bf16 %v2044, %v2043
    %v2094 = vpack.c.bf16 %v2046, %v2045
    %v2095 = vpack.c.bf16 %v2048, %v2047
    %v2096 = vpack.c.bf16 %v2050, %v2049
    %v2097 = vpack.c.bf16 %v2052, %v2051
    %v2098 = vpack.c.bf16 %v2054, %v2053
    %v2099 = vpack.c.bf16 %v2056, %v2055
    %v2100 = vpack.c.bf16 %v2058, %v2057
    %v2101 = vpack.c.bf16 %v2060, %v2059
    %v2102 = vpack.c.bf16 %v2062, %v2061
    %v2103 = vpack.c.bf16 %v2064, %v2063
    %v2104 = vpack.c.bf16 %v2066, %v2065
    %v2105 = vpack.c.bf16 %v2068, %v2067
    %v2106 = vpack.c.bf16 %v2070, %v2069
    %v2107 = vpack.c.bf16 %v2072, %v2071
    %v2108 = vpack.c.bf16 %v2074, %v2073
    %v2109 = vpack.c.bf16 %v2076, %v2075
    %v2110 = vpack.c.bf16 %v2078, %v2077
    %v2143 = vunpack.c.l.b16 %v2079
    %v2144 = vunpack.c.h.b16 %v2079
    %v2145 = vunpack.c.l.b16 %v2080
    %v2146 = vunpack.c.h.b16 %v2080
    %v2147 = vunpack.c.l.b16 %v2081
    %v2148 = vunpack.c.h.b16 %v2081
    %v2149 = vunpack.c.l.b16 %v2082
    %v2150 = vunpack.c.h.b16 %v2082
    %v2151 = vunpack.c.l.b16 %v2083
    %v2152 = vunpack.c.h.b16 %v2083
    %v2153 = vunpack.c.l.b16 %v2084
    %v2154 = vunpack.c.h.b16 %v2084
    %v2155 = vunpack.c.l.b16 %v2085
    %v2156 = vunpack.c.h.b16 %v2085
    %v2157 = vunpack.c.l.b16 %v2086
    %v2158 = vunpack.c.h.b16 %v2086
    %v2159 = vunpack.c.l.b16 %v2087
    %v2160 = vunpack.c.h.b16 %v2087
    %v2161 = vunpack.c.l.b16 %v2088
    %v2162 = vunpack.c.h.b16 %v2088
    %v2163 = vunpack.c.l.b16 %v2089
    %v2164 = vunpack.c.h.b16 %v2089
    %v2165 = vunpack.c.l.b16 %v2090
    %v2166 = vunpack.c.h.b16 %v2090
    %v2167 = vunpack.c.l.b16 %v2091
    %v2168 = vunpack.c.h.b16 %v2091
    %v2169 = vunpack.c.l.b16 %v2092
    %v2170 = vunpack.c.h.b16 %v2092
    %v2171 = vunpack.c.l.b16 %v2093
    %v2172 = vunpack.c.h.b16 %v2093
    %v2173 = vunpack.c.l.b16 %v2094
    %v2174 = vunpack.c.h.b16 %v2094
    %v2175 = vunpack.c.l.b16 %v2095
    %v2176 = vunpack.c.h.b16 %v2095
    %v2177 = vunpack.c.l.b16 %v2096
    %v2178 = vunpack.c.h.b16 %v2096
    %v2179 = vunpack.c.l.b16 %v2097
    %v2180 = vunpack.c.h.b16 %v2097
    %v2181 = vunpack.c.l.b16 %v2098
    %v2182 = vunpack.c.h.b16 %v2098
    %v2183 = vunpack.c.l.b16 %v2099
    %v2184 = vunpack.c.h.b16 %v2099
    %v2185 = vunpack.c.l.b16 %v2100
    %v2186 = vunpack.c.h.b16 %v2100
    %v2187 = vunpack.c.l.b16 %v2101
    %v2188 = vunpack.c.h.b16 %v2101
    %v2189 = vunpack.c.l.b16 %v2102
    %v2190 = vunpack.c.h.b16 %v2102
    %v2191 = vunpack.c.l.b16 %v2103
    %v2192 = vunpack.c.h.b16 %v2103
    %v2193 = vunpack.c.l.b16 %v2104
    %v2194 = vunpack.c.h.b16 %v2104
    %v2195 = vunpack.c.l.b16 %v2105
    %v2196 = vunpack.c.h.b16 %v2105
    %v2197 = vunpack.c.l.b16 %v2106
    %v2198 = vunpack.c.h.b16 %v2106
    %v2199 = vunpack.c.l.b16 %v2107
    %v2200 = vunpack.c.h.b16 %v2107
    %v2201 = vunpack.c.l.b16 %v2108
    %v2202 = vunpack.c.h.b16 %v2108
    %v2203 = vunpack.c.l.b16 %v2109
    %v2204 = vunpack.c.h.b16 %v2109
    %v2205 = vunpack.c.l.b16 %v2110
    %v2206 = vunpack.c.h.b16 %v2110
    %v2207 = vpack.c.b16 %v2143, %v2143
    %v2208 = vpack.c.b16 %v2144, %v2144
    %v2209 = vpack.c.b16 %v2145, %v2145
    %v2210 = vpack.c.b16 %v2146, %v2146
    %v2211 = vpack.c.b16 %v2147, %v2147
    %v2212 = vpack.c.b16 %v2148, %v2148
    %v2213 = vpack.c.b16 %v2149, %v2149
    %v2214 = vpack.c.b16 %v2150, %v2150
    %v2215 = vpack.c.b16 %v2151, %v2151
    %v2216 = vpack.c.b16 %v2152, %v2152
    %v2217 = vpack.c.b16 %v2153, %v2153
    %v2218 = vpack.c.b16 %v2154, %v2154
    %v2219 = vpack.c.b16 %v2155, %v2155
    %v2220 = vpack.c.b16 %v2156, %v2156
    %v2221 = vpack.c.b16 %v2157, %v2157
    %v2222 = vpack.c.b16 %v2158, %v2158
    %v2223 = vpack.c.b16 %v2159, %v2159
    %v2224 = vpack.c.b16 %v2160, %v2160
    %v2225 = vpack.c.b16 %v2161, %v2161
    %v2226 = vpack.c.b16 %v2162, %v2162
    %v2227 = vpack.c.b16 %v2163, %v2163
    %v2228 = vpack.c.b16 %v2164, %v2164
    %v2229 = vpack.c.b16 %v2165, %v2165
    %v2230 = vpack.c.b16 %v2166, %v2166
    %v2231 = vpack.c.b16 %v2167, %v2167
    %v2232 = vpack.c.b16 %v2168, %v2168
    %v2233 = vpack.c.b16 %v2169, %v2169
    %v2234 = vpack.c.b16 %v2170, %v2170
    %v2235 = vpack.c.b16 %v2171, %v2171
    %v2236 = vpack.c.b16 %v2172, %v2172
    %v2237 = vpack.c.b16 %v2173, %v2173
    %v2238 = vpack.c.b16 %v2174, %v2174
    %v2239 = vpack.c.b16 %v2175, %v2175
    %v2240 = vpack.c.b16 %v2176, %v2176
    %v2241 = vpack.c.b16 %v2177, %v2177
    %v2242 = vpack.c.b16 %v2178, %v2178
    %v2243 = vpack.c.b16 %v2179, %v2179
    %v2244 = vpack.c.b16 %v2180, %v2180
    %v2245 = vpack.c.b16 %v2181, %v2181
    %v2246 = vpack.c.b16 %v2182, %v2182
    %v2247 = vpack.c.b16 %v2183, %v2183
    %v2248 = vpack.c.b16 %v2184, %v2184
    %v2249 = vpack.c.b16 %v2185, %v2185
    %v2250 = vpack.c.b16 %v2186, %v2186
    %v2251 = vpack.c.b16 %v2187, %v2187
    %v2252 = vpack.c.b16 %v2188, %v2188
    %v2253 = vpack.c.b16 %v2189, %v2189
    %v2254 = vpack.c.b16 %v2190, %v2190
    %v2255 = vpack.c.b16 %v2191, %v2191
    %v2256 = vpack.c.b16 %v2192, %v2192
    %v2257 = vpack.c.b16 %v2193, %v2193
    %v2258 = vpack.c.b16 %v2194, %v2194
    %v2259 = vpack.c.b16 %v2195, %v2195
    %v2260 = vpack.c.b16 %v2196, %v2196
    %v2261 = vpack.c.b16 %v2197, %v2197
    %v2262 = vpack.c.b16 %v2198, %v2198
    %v2263 = vpack.c.b16 %v2199, %v2199
    %v2264 = vpack.c.b16 %v2200, %v2200
    %v2265 = vpack.c.b16 %v2201, %v2201
    %v2266 = vpack.c.b16 %v2202, %v2202
    %v2267 = vpack.c.b16 %v2203, %v2203
    %v2268 = vpack.c.b16 %v2204, %v2204
    %v2269 = vpack.c.b16 %v2205, %v2205
    %v2270 = vpack.c.b16 %v2206, %v2206
    %2335 = vst [vmem:[%s3] sm:$0xf] %v2207
    %2336 = vst [vmem:[%s3 + $0x4] sm:$0xf] %v2208
    %2337 = vst [vmem:[%s3 + $0x8] sm:$0xf] %v2209
    %2338 = vst [vmem:[%s3 + $0xc] sm:$0xf] %v2210
    %2339 = vst [vmem:[%s3 + $0x10] sm:$0xf] %v2211
    %2340 = vst [vmem:[%s3 + $0x14] sm:$0xf] %v2212
    %2341 = vst [vmem:[%s3 + $0x18] sm:$0xf] %v2213
    %2342 = vst [vmem:[%s3 + $0x1c] sm:$0xf] %v2214
    %2343 = vst [vmem:[%s3 + $0x20] sm:$0xf] %v2215
    %2344 = vst [vmem:[%s3 + $0x24] sm:$0xf] %v2216
    %2345 = vst [vmem:[%s3 + $0x28] sm:$0xf] %v2217
    %2346 = vst [vmem:[%s3 + $0x2c] sm:$0xf] %v2218
    %2347 = vst [vmem:[%s3 + $0x30] sm:$0xf] %v2219
    %2348 = vst [vmem:[%s3 + $0x34] sm:$0xf] %v2220
    %2349 = vst [vmem:[%s3 + $0x38] sm:$0xf] %v2221
    %2350 = vst [vmem:[%s3 + $0x3c] sm:$0xf] %v2222
    %2351 = vst [vmem:[%s3 + $0x40] sm:$0xf] %v2223
    %2352 = vst [vmem:[%s3 + $0x44] sm:$0xf] %v2224
    %2353 = vst [vmem:[%s3 + $0x48] sm:$0xf] %v2225
    %2354 = vst [vmem:[%s3 + $0x4c] sm:$0xf] %v2226
    %2355 = vst [vmem:[%s3 + $0x50] sm:$0xf] %v2227
    %2356 = vst [vmem:[%s3 + $0x54] sm:$0xf] %v2228
    %2357 = vst [vmem:[%s3 + $0x58] sm:$0xf] %v2229
    %2358 = vst [vmem:[%s3 + $0x5c] sm:$0xf] %v2230
    %2359 = vst [vmem:[%s3 + $0x60] sm:$0xf] %v2231
    %2360 = vst [vmem:[%s3 + $0x64] sm:$0xf] %v2232
    %2361 = vst [vmem:[%s3 + $0x68] sm:$0xf] %v2233
    %2362 = vst [vmem:[%s3 + $0x6c] sm:$0xf] %v2234
    %2363 = vst [vmem:[%s3 + $0x70] sm:$0xf] %v2235
    %2364 = vst [vmem:[%s3 + $0x74] sm:$0xf] %v2236
    %2365 = vst [vmem:[%s3 + $0x78] sm:$0xf] %v2237
    %2366 = vst [vmem:[%s3 + $0x7c] sm:$0xf] %v2238
    %2367 = vst [vmem:[%s3 + $0x80] sm:$0xf] %v2239
    %2368 = vst [vmem:[%s3 + $0x84] sm:$0xf] %v2240
    %2369 = vst [vmem:[%s3 + $0x88] sm:$0xf] %v2241
    %2370 = vst [vmem:[%s3 + $0x8c] sm:$0xf] %v2242
    %2371 = vst [vmem:[%s3 + $0x90] sm:$0xf] %v2243
    %2372 = vst [vmem:[%s3 + $0x94] sm:$0xf] %v2244
    %2373 = vst [vmem:[%s3 + $0x98] sm:$0xf] %v2245
    %2374 = vst [vmem:[%s3 + $0x9c] sm:$0xf] %v2246
    %2375 = vst [vmem:[%s3 + $0xa0] sm:$0xf] %v2247
    %2376 = vst [vmem:[%s3 + $0xa4] sm:$0xf] %v2248
    %2377 = vst [vmem:[%s3 + $0xa8] sm:$0xf] %v2249
    %2378 = vst [vmem:[%s3 + $0xac] sm:$0xf] %v2250
    %2379 = vst [vmem:[%s3 + $0xb0] sm:$0xf] %v2251
    %2380 = vst [vmem:[%s3 + $0xb4] sm:$0xf] %v2252
    %2381 = vst [vmem:[%s3 + $0xb8] sm:$0xf] %v2253
    %2382 = vst [vmem:[%s3 + $0xbc] sm:$0xf] %v2254
    %2383 = vst [vmem:[%s3 + $0xc0] sm:$0xf] %v2255
    %2384 = vst [vmem:[%s3 + $0xc4] sm:$0xf] %v2256
    %2385 = vst [vmem:[%s3 + $0xc8] sm:$0xf] %v2257
    %2386 = vst [vmem:[%s3 + $0xcc] sm:$0xf] %v2258
    %2387 = vst [vmem:[%s3 + $0xd0] sm:$0xf] %v2259
    %2388 = vst [vmem:[%s3 + $0xd4] sm:$0xf] %v2260
    %2389 = vst [vmem:[%s3 + $0xd8] sm:$0xf] %v2261
    %2390 = vst [vmem:[%s3 + $0xdc] sm:$0xf] %v2262
    %2391 = vst [vmem:[%s3 + $0xe0] sm:$0xf] %v2263
    %2392 = vst [vmem:[%s3 + $0xe4] sm:$0xf] %v2264
    %2393 = vst [vmem:[%s3 + $0xe8] sm:$0xf] %v2265
    %2394 = vst [vmem:[%s3 + $0xec] sm:$0xf] %v2266
    %2395 = vst [vmem:[%s3 + $0xf0] sm:$0xf] %v2267
    %2396 = vst [vmem:[%s3 + $0xf4] sm:$0xf] %v2268
    %2397 = vst [vmem:[%s3 + $0xf8] sm:$0xf] %v2269
    %2398 = vst [vmem:[%s3 + $0xfc] sm:$0xf] %v2270
  $region21: #{hyper_analysis_ex.4} parent=0 // pred_fallthru
    _
  // Predicated region
  $region22: #{hyper_analysis_ex.4} parent=0 // pred_check
    _
  $region23: #{hyper_analysis_ex.4} parent=0 // pred_check_branch
    %2400 = sbr.rel (0) target = $region25
  $region24: #{hyper_analysis_ex.4} parent=0 // pred_region
    _
  $region25: #{hyper_analysis_ex.4} parent=0 // pred_fallthru
    _
  // Predicated region
  $region26: #{hyper_analysis_ex.4} parent=0 // pred_check
    _
  $region27: #{hyper_analysis_ex.4} parent=0 // pred_check_branch
    %2402 = sbr.rel (0) target = $region29
  $region28: #{hyper_analysis_ex.4} parent=0 // pred_region
    _
  $region29: #{hyper_analysis_ex.4} parent=0 // pred_fallthru
    _

// kernel: hyper_analysis_ex.5
$region0: #{hyper_analysis_ex.5}
  #allocation0 [shape = 'u32[]', space=smem, size = 0x4, offset = 0x4, fixed_abs, tag = 'smem constant byte address 0x4 - core index']
  #allocation1 [shape = 'u32[144,128]{1,0:T(1,128)}', space=vmem, size = 0x12000, scoped, tag = 'internal scratch']
  #allocation2 [shape = 'f32[128,128]{1,0:T(8,128)}', space=vmem, size = 0x10000, scoped, tag = 'scratch operand']
  %s0 = inlined_call_operand.vmem [shape: bf16[128,512], index: 0, kind: input, shape index: {}]
  %s1 = inlined_call_operand.vmem [shape: bf16[512,128], index: 1, kind: input, shape index: {}]
  %s2 = inlined_call_operand.vmem [shape: f32[1,128], index: 2, kind: input, shape index: {}]
  %s3 = inlined_call_operand.hbm [shape: f32[128,128], index: 3, kind: output, shape index: {}]
  %s4 = sld [smem:[#allocation0]]
  $region30: #{hyper_analysis_ex.5} parent=0
    _
  %s6 = ssub.s32 1, %s4
  %s7 = scalar_select 0, %s6, %s4
  $region1: #{hyper_analysis_ex.5} parent=0
    #allocation3 [shape = 'u8[65536]{0}', space=vmem, size = 0x10000, scoped, tag = 'output window, operand 0, single buffered']
    #allocation4 [shape = 's32[1]{0}', space=sflag, size = 0x4, scoped, tag = 'scoped memory for hyper_analysis_ex.5']
    %8 = vsyncpa [#allocation4], 0
    // Predicated region
    $region2: #{hyper_analysis_ex.5} parent=1 // pred_check
      _
    $region3: #{hyper_analysis_ex.5} parent=1 // pred_check_branch
      %10 = sbr.rel (0) target = $region5
    $region4: #{hyper_analysis_ex.5} parent=1 // pred_region
      _
    $region5: #{hyper_analysis_ex.5} parent=1 // pred_fallthru
      _
    // Predicated region
    $region6: #{hyper_analysis_ex.5} parent=1 // pred_check
      _
    $region7: #{hyper_analysis_ex.5} parent=1 // pred_check_branch
      %12 = sbr.rel (0) target = $region9
    $region8: #{hyper_analysis_ex.5} parent=1 // pred_region
      _
    $region9: #{hyper_analysis_ex.5} parent=1 // pred_fallthru
      _
    // Predicated region
    $region10: #{hyper_analysis_ex.5} parent=1 // pred_check
      _
    $region11: #{hyper_analysis_ex.5} parent=1 // pred_check_branch
      %14 = sbr.rel (0) target = $region13
    $region12: #{hyper_analysis_ex.5} parent=1 // pred_region
      _
    $region13: #{hyper_analysis_ex.5} parent=1 // pred_fallthru
      _
    %p16 = scmp.eq.s32.totalorder 0, 0
    // Predicated region
    $region14: #{hyper_analysis_ex.5} parent=1 // pred_check
      %p17 = pneg %p16
    $region15: #{hyper_analysis_ex.5} parent=1 // pred_check_branch
      %19 = sbr.rel (%p17) target = $region17
    $region16: #{hyper_analysis_ex.5} parent=1 // pred_region
      %20 = vst [vmem:[#allocation2] sm:$0xff] 0.0
      %21 = vst [vmem:[#allocation2 + $0x8] sm:$0xff] 0.0
      %22 = vst [vmem:[#allocation2 + $0x10] sm:$0xff] 0.0
      %23 = vst [vmem:[#allocation2 + $0x18] sm:$0xff] 0.0
      %24 = vst [vmem:[#allocation2 + $0x20] sm:$0xff] 0.0
      %25 = vst [vmem:[#allocation2 + $0x28] sm:$0xff] 0.0
      %26 = vst [vmem:[#allocation2 + $0x30] sm:$0xff] 0.0
      %27 = vst [vmem:[#allocation2 + $0x38] sm:$0xff] 0.0
      %28 = vst [vmem:[#allocation2 + $0x40] sm:$0xff] 0.0
      %29 = vst [vmem:[#allocation2 + $0x48] sm:$0xff] 0.0
      %30 = vst [vmem:[#allocation2 + $0x50] sm:$0xff] 0.0
      %31 = vst [vmem:[#allocation2 + $0x58] sm:$0xff] 0.0
      %32 = vst [vmem:[#allocation2 + $0x60] sm:$0xff] 0.0
      %33 = vst [vmem:[#allocation2 + $0x68] sm:$0xff] 0.0
      %34 = vst [vmem:[#allocation2 + $0x70] sm:$0xff] 0.0
      %35 = vst [vmem:[#allocation2 + $0x78] sm:$0xff] 0.0
    $region17: #{hyper_analysis_ex.5} parent=1 // pred_fallthru
      _
    %v36 = vld [vmem:[#allocation2] sm:$0xff]
    %v37 = vld [vmem:[#allocation2 + $0x8] sm:$0xff]
    %v38 = vld [vmem:[#allocation2 + $0x10] sm:$0xff]
    %v39 = vld [vmem:[#allocation2 + $0x18] sm:$0xff]
    %v40 = vld [vmem:[#allocation2 + $0x20] sm:$0xff]
    %v41 = vld [vmem:[#allocation2 + $0x28] sm:$0xff]
    %v42 = vld [vmem:[#allocation2 + $0x30] sm:$0xff]
    %v43 = vld [vmem:[#allocation2 + $0x38] sm:$0xff]
    %v44 = vld [vmem:[#allocation2 + $0x40] sm:$0xff]
    %v45 = vld [vmem:[#allocation2 + $0x48] sm:$0xff]
    %v46 = vld [vmem:[#allocation2 + $0x50] sm:$0xff]
    %v47 = vld [vmem:[#allocation2 + $0x58] sm:$0xff]
    %v48 = vld [vmem:[#allocation2 + $0x60] sm:$0xff]
    %v49 = vld [vmem:[#allocation2 + $0x68] sm:$0xff]
    %v50 = vld [vmem:[#allocation2 + $0x70] sm:$0xff]
    %v51 = vld [vmem:[#allocation2 + $0x78] sm:$0xff]
    %v52 = vld [vmem:[%s0] sm:$0xff]
    %v53 = vld [vmem:[%s0 + $0x8] sm:$0xff]
    %v54 = vld [vmem:[%s0 + $0x10] sm:$0xff]
    %v55 = vld [vmem:[%s0 + $0x18] sm:$0xff]
    %v56 = vld [vmem:[%s0 + $0x20] sm:$0xff]
    %v57 = vld [vmem:[%s0 + $0x28] sm:$0xff]
    %v58 = vld [vmem:[%s0 + $0x30] sm:$0xff]
    %v59 = vld [vmem:[%s0 + $0x38] sm:$0xff]
    %v60 = vld [vmem:[%s0 + $0x40] sm:$0xff]
    %v61 = vld [vmem:[%s0 + $0x48] sm:$0xff]
    %v62 = vld [vmem:[%s0 + $0x50] sm:$0xff]
    %v63 = vld [vmem:[%s0 + $0x58] sm:$0xff]
    %v64 = vld [vmem:[%s0 + $0x60] sm:$0xff]
    %v65 = vld [vmem:[%s0 + $0x68] sm:$0xff]
    %v66 = vld [vmem:[%s0 + $0x70] sm:$0xff]
    %v67 = vld [vmem:[%s0 + $0x78] sm:$0xff]
    %v68 = vld [vmem:[%s0 + $0x80] sm:$0xff]
    %v69 = vld [vmem:[%s0 + $0x88] sm:$0xff]
    %v70 = vld [vmem:[%s0 + $0x90] sm:$0xff]
    %v71 = vld [vmem:[%s0 + $0x98] sm:$0xff]
    %v72 = vld [vmem:[%s0 + $0xa0] sm:$0xff]
    %v73 = vld [vmem:[%s0 + $0xa8] sm:$0xff]
    %v74 = vld [vmem:[%s0 + $0xb0] sm:$0xff]
    %v75 = vld [vmem:[%s0 + $0xb8] sm:$0xff]
    %v76 = vld [vmem:[%s0 + $0xc0] sm:$0xff]
    %v77 = vld [vmem:[%s0 + $0xc8] sm:$0xff]
    %v78 = vld [vmem:[%s0 + $0xd0] sm:$0xff]
    %v79 = vld [vmem:[%s0 + $0xd8] sm:$0xff]
    %v80 = vld [vmem:[%s0 + $0xe0] sm:$0xff]
    %v81 = vld [vmem:[%s0 + $0xe8] sm:$0xff]
    %v82 = vld [vmem:[%s0 + $0xf0] sm:$0xff]
    %v83 = vld [vmem:[%s0 + $0xf8] sm:$0xff]
    %v84 = vld [vmem:[%s1] sm:$0xf]
    %v85 = vld [vmem:[%s1 + $0x4] sm:$0xf]
    %v86 = vld [vmem:[%s1 + $0x8] sm:$0xf]
    %v87 = vld [vmem:[%s1 + $0xc] sm:$0xf]
    %v88 = vld [vmem:[%s1 + $0x10] sm:$0xf]
    %v89 = vld [vmem:[%s1 + $0x14] sm:$0xf]
    %v90 = vld [vmem:[%s1 + $0x18] sm:$0xf]
    %v91 = vld [vmem:[%s1 + $0x1c] sm:$0xf]
    %v92 = vld [vmem:[%s1 + $0x20] sm:$0xf]
    %v93 = vld [vmem:[%s1 + $0x24] sm:$0xf]
    %v94 = vld [vmem:[%s1 + $0x28] sm:$0xf]
    %v95 = vld [vmem:[%s1 + $0x2c] sm:$0xf]
    %v96 = vld [vmem:[%s1 + $0x30] sm:$0xf]
    %v97 = vld [vmem:[%s1 + $0x34] sm:$0xf]
    %v98 = vld [vmem:[%s1 + $0x38] sm:$0xf]
    %v99 = vld [vmem:[%s1 + $0x3c] sm:$0xf]
    %v100 = vld [vmem:[%s1 + $0x40] sm:$0xf]
    %v101 = vld [vmem:[%s1 + $0x44] sm:$0xf]
    %v102 = vld [vmem:[%s1 + $0x48] sm:$0xf]
    %v103 = vld [vmem:[%s1 + $0x4c] sm:$0xf]
    %v104 = vld [vmem:[%s1 + $0x50] sm:$0xf]
    %v105 = vld [vmem:[%s1 + $0x54] sm:$0xf]
    %v106 = vld [vmem:[%s1 + $0x58] sm:$0xf]
    %v107 = vld [vmem:[%s1 + $0x5c] sm:$0xf]
    %v108 = vld [vmem:[%s1 + $0x60] sm:$0xf]
    %v109 = vld [vmem:[%s1 + $0x64] sm:$0xf]
    %v110 = vld [vmem:[%s1 + $0x68] sm:$0xf]
    %v111 = vld [vmem:[%s1 + $0x6c] sm:$0xf]
    %v112 = vld [vmem:[%s1 + $0x70] sm:$0xf]
    %v113 = vld [vmem:[%s1 + $0x74] sm:$0xf]
    %v114 = vld [vmem:[%s1 + $0x78] sm:$0xf]
    %v115 = vld [vmem:[%s1 + $0x7c] sm:$0xf]
    %v116 = vld [vmem:[%s1 + $0x80] sm:$0xf]
    %v117 = vld [vmem:[%s1 + $0x84] sm:$0xf]
    %v118 = vld [vmem:[%s1 + $0x88] sm:$0xf]
    %v119 = vld [vmem:[%s1 + $0x8c] sm:$0xf]
    %v120 = vld [vmem:[%s1 + $0x90] sm:$0xf]
    %v121 = vld [vmem:[%s1 + $0x94] sm:$0xf]
    %v122 = vld [vmem:[%s1 + $0x98] sm:$0xf]
    %v123 = vld [vmem:[%s1 + $0x9c] sm:$0xf]
    %v124 = vld [vmem:[%s1 + $0xa0] sm:$0xf]
    %v125 = vld [vmem:[%s1 + $0xa4] sm:$0xf]
    %v126 = vld [vmem:[%s1 + $0xa8] sm:$0xf]
    %v127 = vld [vmem:[%s1 + $0xac] sm:$0xf]
    %v128 = vld [vmem:[%s1 + $0xb0] sm:$0xf]
    %v129 = vld [vmem:[%s1 + $0xb4] sm:$0xf]
    %v130 = vld [vmem:[%s1 + $0xb8] sm:$0xf]
    %v131 = vld [vmem:[%s1 + $0xbc] sm:$0xf]
    %v132 = vld [vmem:[%s1 + $0xc0] sm:$0xf]
    %v133 = vld [vmem:[%s1 + $0xc4] sm:$0xf]
    %v134 = vld [vmem:[%s1 + $0xc8] sm:$0xf]
    %v135 = vld [vmem:[%s1 + $0xcc] sm:$0xf]
    %v136 = vld [vmem:[%s1 + $0xd0] sm:$0xf]
    %v137 = vld [vmem:[%s1 + $0xd4] sm:$0xf]
    %v138 = vld [vmem:[%s1 + $0xd8] sm:$0xf]
    %v139 = vld [vmem:[%s1 + $0xdc] sm:$0xf]
    %v140 = vld [vmem:[%s1 + $0xe0] sm:$0xf]
    %v141 = vld [vmem:[%s1 + $0xe4] sm:$0xf]
    %v142 = vld [vmem:[%s1 + $0xe8] sm:$0xf]
    %v143 = vld [vmem:[%s1 + $0xec] sm:$0xf]
    %v144 = vld [vmem:[%s1 + $0xf0] sm:$0xf]
    %v145 = vld [vmem:[%s1 + $0xf4] sm:$0xf]
    %v146 = vld [vmem:[%s1 + $0xf8] sm:$0xf]
    %v147 = vld [vmem:[%s1 + $0xfc] sm:$0xf]
    %v180 = vunpack.c.l.b16 %v52
    %v181 = vunpack.c.h.b16 %v52
    %v182 = vunpack.c.l.b16 %v53
    %v183 = vunpack.c.h.b16 %v53
    %v184 = vunpack.c.l.b16 %v54
    %v185 = vunpack.c.h.b16 %v54
    %v186 = vunpack.c.l.b16 %v55
    %v187 = vunpack.c.h.b16 %v55
    %v188 = vunpack.c.l.b16 %v56
    %v189 = vunpack.c.h.b16 %v56
    %v190 = vunpack.c.l.b16 %v57
    %v191 = vunpack.c.h.b16 %v57
    %v192 = vunpack.c.l.b16 %v58
    %v193 = vunpack.c.h.b16 %v58
    %v194 = vunpack.c.l.b16 %v59
    %v195 = vunpack.c.h.b16 %v59
    %v196 = vunpack.c.l.b16 %v60
    %v197 = vunpack.c.h.b16 %v60
    %v198 = vunpack.c.l.b16 %v61
    %v199 = vunpack.c.h.b16 %v61
    %v200 = vunpack.c.l.b16 %v62
    %v201 = vunpack.c.h.b16 %v62
    %v202 = vunpack.c.l.b16 %v63
    %v203 = vunpack.c.h.b16 %v63
    %v204 = vunpack.c.l.b16 %v64
    %v205 = vunpack.c.h.b16 %v64
    %v206 = vunpack.c.l.b16 %v65
    %v207 = vunpack.c.h.b16 %v65
    %v208 = vunpack.c.l.b16 %v66
    %v209 = vunpack.c.h.b16 %v66
    %v210 = vunpack.c.l.b16 %v67
    %v211 = vunpack.c.h.b16 %v67
    %v212 = vunpack.c.l.b16 %v68
    %v213 = vunpack.c.h.b16 %v68
    %v214 = vunpack.c.l.b16 %v69
    %v215 = vunpack.c.h.b16 %v69
    %v216 = vunpack.c.l.b16 %v70
    %v217 = vunpack.c.h.b16 %v70
    %v218 = vunpack.c.l.b16 %v71
    %v219 = vunpack.c.h.b16 %v71
    %v220 = vunpack.c.l.b16 %v72
    %v221 = vunpack.c.h.b16 %v72
    %v222 = vunpack.c.l.b16 %v73
    %v223 = vunpack.c.h.b16 %v73
    %v224 = vunpack.c.l.b16 %v74
    %v225 = vunpack.c.h.b16 %v74
    %v226 = vunpack.c.l.b16 %v75
    %v227 = vunpack.c.h.b16 %v75
    %v228 = vunpack.c.l.b16 %v76
    %v229 = vunpack.c.h.b16 %v76
    %v230 = vunpack.c.l.b16 %v77
    %v231 = vunpack.c.h.b16 %v77
    %v232 = vunpack.c.l.b16 %v78
    %v233 = vunpack.c.h.b16 %v78
    %v234 = vunpack.c.l.b16 %v79
    %v235 = vunpack.c.h.b16 %v79
    %v236 = vunpack.c.l.b16 %v80
    %v237 = vunpack.c.h.b16 %v80
    %v238 = vunpack.c.l.b16 %v81
    %v239 = vunpack.c.h.b16 %v81
    %v240 = vunpack.c.l.b16 %v82
    %v241 = vunpack.c.h.b16 %v82
    %v242 = vunpack.c.l.b16 %v83
    %v243 = vunpack.c.h.b16 %v83
    %v244 = vpack.c.b16 %v184, %v180
    %v245 = vpack.c.b16 %v185, %v181
    %v246 = vpack.c.b16 %v186, %v182
    %v247 = vpack.c.b16 %v187, %v183
    %v248 = vpack.c.b16 %v192, %v188
    %v249 = vpack.c.b16 %v193, %v189
    %v250 = vpack.c.b16 %v194, %v190
    %v251 = vpack.c.b16 %v195, %v191
    %v252 = vpack.c.b16 %v200, %v196
    %v253 = vpack.c.b16 %v201, %v197
    %v254 = vpack.c.b16 %v202, %v198
    %v255 = vpack.c.b16 %v203, %v199
    %v256 = vpack.c.b16 %v208, %v204
    %v257 = vpack.c.b16 %v209, %v205
    %v258 = vpack.c.b16 %v210, %v206
    %v259 = vpack.c.b16 %v211, %v207
    %v260 = vpack.c.b16 %v216, %v212
    %v261 = vpack.c.b16 %v217, %v213
    %v262 = vpack.c.b16 %v218, %v214
    %v263 = vpack.c.b16 %v219, %v215
    %v264 = vpack.c.b16 %v224, %v220
    %v265 = vpack.c.b16 %v225, %v221
    %v266 = vpack.c.b16 %v226, %v222
    %v267 = vpack.c.b16 %v227, %v223
    %v268 = vpack.c.b16 %v232, %v228
    %v269 = vpack.c.b16 %v233, %v229
    %v270 = vpack.c.b16 %v234, %v230
    %v271 = vpack.c.b16 %v235, %v231
    %v272 = vpack.c.b16 %v240, %v236
    %v273 = vpack.c.b16 %v241, %v237
    %v274 = vpack.c.b16 %v242, %v238
    %v275 = vpack.c.b16 %v243, %v239
    %v372 = vunpack.c.l.b16 %v84
    %v373 = vunpack.c.l.b16 %v85
    %v374 = vunpack.c.l.b16 %v86
    %v375 = vunpack.c.l.b16 %v87
    %v376 = vunpack.c.l.b16 %v88
    %v377 = vunpack.c.l.b16 %v89
    %v378 = vunpack.c.l.b16 %v90
    %v379 = vunpack.c.l.b16 %v91
    %v380 = vunpack.c.l.b16 %v92
    %v381 = vunpack.c.l.b16 %v93
    %v382 = vunpack.c.l.b16 %v94
    %v383 = vunpack.c.l.b16 %v95
    %v384 = vunpack.c.l.b16 %v96
    %v385 = vunpack.c.l.b16 %v97
    %v386 = vunpack.c.l.b16 %v98
    %v387 = vunpack.c.l.b16 %v99
    %v388 = vunpack.c.l.b16 %v100
    %v389 = vunpack.c.l.b16 %v101
    %v390 = vunpack.c.l.b16 %v102
    %v391 = vunpack.c.l.b16 %v103
    %v392 = vunpack.c.l.b16 %v104
    %v393 = vunpack.c.l.b16 %v105
    %v394 = vunpack.c.l.b16 %v106
    %v395 = vunpack.c.l.b16 %v107
    %v396 = vunpack.c.l.b16 %v108
    %v397 = vunpack.c.l.b16 %v109
    %v398 = vunpack.c.l.b16 %v110
    %v399 = vunpack.c.l.b16 %v111
    %v400 = vunpack.c.l.b16 %v112
    %v401 = vunpack.c.l.b16 %v113
    %v402 = vunpack.c.l.b16 %v114
    %v403 = vunpack.c.l.b16 %v115
    %v404 = vunpack.c.l.b16 %v116
    %v405 = vunpack.c.l.b16 %v117
    %v406 = vunpack.c.l.b16 %v118
    %v407 = vunpack.c.l.b16 %v119
    %v408 = vunpack.c.l.b16 %v120
    %v409 = vunpack.c.l.b16 %v121
    %v410 = vunpack.c.l.b16 %v122
    %v411 = vunpack.c.l.b16 %v123
    %v412 = vunpack.c.l.b16 %v124
    %v413 = vunpack.c.l.b16 %v125
    %v414 = vunpack.c.l.b16 %v126
    %v415 = vunpack.c.l.b16 %v127
    %v416 = vunpack.c.l.b16 %v128
    %v417 = vunpack.c.l.b16 %v129
    %v418 = vunpack.c.l.b16 %v130
    %v419 = vunpack.c.l.b16 %v131
    %v420 = vunpack.c.l.b16 %v132
    %v421 = vunpack.c.l.b16 %v133
    %v422 = vunpack.c.l.b16 %v134
    %v423 = vunpack.c.l.b16 %v135
    %v424 = vunpack.c.l.b16 %v136
    %v425 = vunpack.c.l.b16 %v137
    %v426 = vunpack.c.l.b16 %v138
    %v427 = vunpack.c.l.b16 %v139
    %v428 = vunpack.c.l.b16 %v140
    %v429 = vunpack.c.l.b16 %v141
    %v430 = vunpack.c.l.b16 %v142
    %v431 = vunpack.c.l.b16 %v143
    %v432 = vunpack.c.l.b16 %v144
    %v433 = vunpack.c.l.b16 %v145
    %v434 = vunpack.c.l.b16 %v146
    %v435 = vunpack.c.l.b16 %v147
    %v436 = vpack.c.b16 %v373, %v372
    %v437 = vpack.c.b16 %v375, %v374
    %v438 = vpack.c.b16 %v377, %v376
    %v439 = vpack.c.b16 %v379, %v378
    %v440 = vpack.c.b16 %v381, %v380
    %v441 = vpack.c.b16 %v383, %v382
    %v442 = vpack.c.b16 %v385, %v384
    %v443 = vpack.c.b16 %v387, %v386
    %v444 = vpack.c.b16 %v389, %v388
    %v445 = vpack.c.b16 %v391, %v390
    %v446 = vpack.c.b16 %v393, %v392
    %v447 = vpack.c.b16 %v395, %v394
    %v448 = vpack.c.b16 %v397, %v396
    %v449 = vpack.c.b16 %v399, %v398
    %v450 = vpack.c.b16 %v401, %v400
    %v451 = vpack.c.b16 %v403, %v402
    %v452 = vpack.c.b16 %v405, %v404
    %v453 = vpack.c.b16 %v407, %v406
    %v454 = vpack.c.b16 %v409, %v408
    %v455 = vpack.c.b16 %v411, %v410
    %v456 = vpack.c.b16 %v413, %v412
    %v457 = vpack.c.b16 %v415, %v414
    %v458 = vpack.c.b16 %v417, %v416
    %v459 = vpack.c.b16 %v419, %v418
    %v460 = vpack.c.b16 %v421, %v420
    %v461 = vpack.c.b16 %v423, %v422
    %v462 = vpack.c.b16 %v425, %v424
    %v463 = vpack.c.b16 %v427, %v426
    %v464 = vpack.c.b16 %v429, %v428
    %v465 = vpack.c.b16 %v431, %v430
    %v466 = vpack.c.b16 %v433, %v432
    %v467 = vpack.c.b16 %v435, %v434
    %500 = vmatprep.subr.bf16.mxu0 0
    %501 = vmatpush1.bf16.msra.mxu0 %v436
    %502 = vmatprep.subr.bf16.mxu0 0
    %503 = vmatpush1.bf16.msra.mxu0 %v437
    %504 = vmatprep.subr.bf16.mxu0 0
    %505 = vmatpush1.bf16.msra.mxu0 %v438
    %506 = vmatprep.subr.bf16.mxu0 0
    %507 = vmatpush1.bf16.msra.mxu0 %v439
    %508 = vmatprep.subr.bf16.mxu0 0
    %509 = vmatpush1.bf16.msra.mxu0 %v440
    %510 = vmatprep.subr.bf16.mxu0 0
    %511 = vmatpush1.bf16.msra.mxu0 %v441
    %512 = vmatprep.subr.bf16.mxu0 0
    %513 = vmatpush1.bf16.msra.mxu0 %v442
    %514 = vmatprep.subr.bf16.mxu0 0
    %515 = vmatpush1.bf16.msra.mxu0 %v443
    %516 = vmatprep.subr.bf16.mxu0 0
    %517 = vmatpush1.bf16.msra.mxu0 %v444
    %518 = vmatprep.subr.bf16.mxu0 0
    %519 = vmatpush1.bf16.msra.mxu0 %v445
    %520 = vmatprep.subr.bf16.mxu0 0
    %521 = vmatpush1.bf16.msra.mxu0 %v446
    %522 = vmatprep.subr.bf16.mxu0 0
    %523 = vmatpush1.bf16.msra.mxu0 %v447
    %524 = vmatprep.subr.bf16.mxu0 0
    %525 = vmatpush1.bf16.msra.mxu0 %v448
    %526 = vmatprep.subr.bf16.mxu0 0
    %527 = vmatpush1.bf16.msra.mxu0 %v449
    %528 = vmatprep.subr.bf16.mxu0 0
    %529 = vmatpush1.bf16.msra.mxu0 %v450
    %530 = vmatprep.subr.bf16.mxu0 0
    %531 = vmatpush1.bf16.msra.mxu0 %v451
    %532 = vmatprep.mubr.bf16.mxu0 %v245
    %533 = vmatmul.mubr.bf16.gmra.mrb[0].mxu0 %v244
    %v534 = vpop.f32.mrb[0].mxu0
    %v535 = vadd.f32 0.0, %v534
    %v536 = vpop.f32.mrb[0].mxu0
    %v537 = vpop.f32.mrb[0].mxu0
    %v538 = vadd.f32 0.0, %v537
    %v539 = vpop.f32.mrb[0].mxu0
    %540 = vmatprep.mubr.bf16.mxu0 %v249
    %541 = vmatmul.mubr.bf16.gmra.mrb[0].mxu0 %v248
    %v542 = vpop.f32.mrb[0].mxu0
    %v543 = vadd.f32 0.0, %v542
    %v544 = vpop.f32.mrb[0].mxu0
    %v545 = vpop.f32.mrb[0].mxu0
    %v546 = vadd.f32 0.0, %v545
    %v547 = vpop.f32.mrb[0].mxu0
    %548 = vmatprep.mubr.bf16.mxu0 %v253
    %549 = vmatmul.mubr.bf16.gmra.mrb[0].mxu0 %v252
    %v550 = vpop.f32.mrb[0].mxu0
    %v551 = vadd.f32 0.0, %v550
    %v552 = vpop.f32.mrb[0].mxu0
    %v553 = vpop.f32.mrb[0].mxu0
    %v554 = vadd.f32 0.0, %v553
    %v555 = vpop.f32.mrb[0].mxu0
    %556 = vmatprep.mubr.bf16.mxu0 %v257
    %557 = vmatmul.mubr.bf16.gmra.mrb[0].mxu0 %v256
    %v558 = vpop.f32.mrb[0].mxu0
    %v559 = vadd.f32 0.0, %v558
    %v560 = vpop.f32.mrb[0].mxu0
    %v561 = vpop.f32.mrb[0].mxu0
    %v562 = vadd.f32 0.0, %v561
    %v563 = vpop.f32.mrb[0].mxu0
    %564 = vmatprep.mubr.bf16.mxu0 %v261
    %565 = vmatmul.mubr.bf16.gmra.mrb[0].mxu0 %v260
    %v566 = vpop.f32.mrb[0].mxu0
    %v567 = vadd.f32 0.0, %v566
    %v568 = vpop.f32.mrb[0].mxu0
    %v569 = vpop.f32.mrb[0].mxu0
    %v570 = vadd.f32 0.0, %v569
    %v571 = vpop.f32.mrb[0].mxu0
    %572 = vmatprep.mubr.bf16.mxu0 %v265
    %573 = vmatmul.mubr.bf16.gmra.mrb[0].mxu0 %v264
    %v574 = vpop.f32.mrb[0].mxu0
    %v575 = vadd.f32 0.0, %v574
    %v576 = vpop.f32.mrb[0].mxu0
    %v577 = vpop.f32.mrb[0].mxu0
    %v578 = vadd.f32 0.0, %v577
    %v579 = vpop.f32.mrb[0].mxu0
    %580 = vmatprep.mubr.bf16.mxu0 %v269
    %581 = vmatmul.mubr.bf16.gmra.mrb[0].mxu0 %v268
    %v582 = vpop.f32.mrb[0].mxu0
    %v583 = vadd.f32 0.0, %v582
    %v584 = vpop.f32.mrb[0].mxu0
    %v585 = vpop.f32.mrb[0].mxu0
    %v586 = vadd.f32 0.0, %v585
    %v587 = vpop.f32.mrb[0].mxu0
    %588 = vmatprep.mubr.bf16.mxu0 %v273
    %589 = vmatmul.mubr.bf16.gmra.mrb[0].mxu0 %v272
    %v590 = vpop.f32.mrb[0].mxu0
    %v591 = vadd.f32 0.0, %v590
    %v592 = vpop.f32.mrb[0].mxu0
    %v593 = vpop.f32.mrb[0].mxu0
    %v594 = vadd.f32 0.0, %v593
    %v595 = vpop.f32.mrb[0].mxu0
    %596 = vdwg.mxu0
    %597 = vmatprep.subr.bf16.mxu0 0
    %598 = vmatpush1.bf16.msra.mxu0 %v452
    %599 = vmatprep.subr.bf16.mxu0 0
    %600 = vmatpush1.bf16.msra.mxu0 %v453
    %601 = vmatprep.subr.bf16.mxu0 0
    %602 = vmatpush1.bf16.msra.mxu0 %v454
    %603 = vmatprep.subr.bf16.mxu0 0
    %604 = vmatpush1.bf16.msra.mxu0 %v455
    %605 = vmatprep.subr.bf16.mxu0 0
    %606 = vmatpush1.bf16.msra.mxu0 %v456
    %607 = vmatprep.subr.bf16.mxu0 0
    %608 = vmatpush1.bf16.msra.mxu0 %v457
    %609 = vmatprep.subr.bf16.mxu0 0
    %610 = vmatpush1.bf16.msra.mxu0 %v458
    %611 = vmatprep.subr.bf16.mxu0 0
    %612 = vmatpush1.bf16.msra.mxu0 %v459
    %613 = vmatprep.subr.bf16.mxu0 0
    %614 = vmatpush1.bf16.msra.mxu0 %v460
    %615 = vmatprep.subr.bf16.mxu0 0
    %616 = vmatpush1.bf16.msra.mxu0 %v461
    %617 = vmatprep.subr.bf16.mxu0 0
    %618 = vmatpush1.bf16.msra.mxu0 %v462
    %619 = vmatprep.subr.bf16.mxu0 0
    %620 = vmatpush1.bf16.msra.mxu0 %v463
    %621 = vmatprep.subr.bf16.mxu0 0
    %622 = vmatpush1.bf16.msra.mxu0 %v464
    %623 = vmatprep.subr.bf16.mxu0 0
    %624 = vmatpush1.bf16.msra.mxu0 %v465
    %625 = vmatprep.subr.bf16.mxu0 0
    %626 = vmatpush1.bf16.msra.mxu0 %v466
    %627 = vmatprep.subr.bf16.mxu0 0
    %628 = vmatpush1.bf16.msra.mxu0 %v467
    %629 = vmatprep.mubr.bf16.mxu0 %v247
    %630 = vmatmul.mubr.bf16.gmra.mrb[0].mxu0 %v246
    %v631 = vpop.f32.mrb[0].mxu0
    %v632 = vadd.f32 %v535, %v631
    %v633 = vpop.f32.mrb[0].mxu0
    %v634 = vpop.f32.mrb[0].mxu0
    %v635 = vadd.f32 %v538, %v634
    %v636 = vpop.f32.mrb[0].mxu0
    %637 = vmatprep.mubr.bf16.mxu0 %v251
    %638 = vmatmul.mubr.bf16.gmra.mrb[0].mxu0 %v250
    %v639 = vpop.f32.mrb[0].mxu0
    %v640 = vadd.f32 %v543, %v639
    %v641 = vpop.f32.mrb[0].mxu0
    %v642 = vpop.f32.mrb[0].mxu0
    %v643 = vadd.f32 %v546, %v642
    %v644 = vpop.f32.mrb[0].mxu0
    %645 = vmatprep.mubr.bf16.mxu0 %v255
    %646 = vmatmul.mubr.bf16.gmra.mrb[0].mxu0 %v254
    %v647 = vpop.f32.mrb[0].mxu0
    %v648 = vadd.f32 %v551, %v647
    %v649 = vpop.f32.mrb[0].mxu0
    %v650 = vpop.f32.mrb[0].mxu0
    %v651 = vadd.f32 %v554, %v650
    %v652 = vpop.f32.mrb[0].mxu0
    %653 = vmatprep.mubr.bf16.mxu0 %v259
    %654 = vmatmul.mubr.bf16.gmra.mrb[0].mxu0 %v258
    %v655 = vpop.f32.mrb[0].mxu0
    %v656 = vadd.f32 %v559, %v655
    %v657 = vpop.f32.mrb[0].mxu0
    %v658 = vpop.f32.mrb[0].mxu0
    %v659 = vadd.f32 %v562, %v658
    %v660 = vpop.f32.mrb[0].mxu0
    %661 = vmatprep.mubr.bf16.mxu0 %v263
    %662 = vmatmul.mubr.bf16.gmra.mrb[0].mxu0 %v262
    %v663 = vpop.f32.mrb[0].mxu0
    %v664 = vadd.f32 %v567, %v663
    %v665 = vpop.f32.mrb[0].mxu0
    %v666 = vpop.f32.mrb[0].mxu0
    %v667 = vadd.f32 %v570, %v666
    %v668 = vpop.f32.mrb[0].mxu0
    %669 = vmatprep.mubr.bf16.mxu0 %v267
    %670 = vmatmul.mubr.bf16.gmra.mrb[0].mxu0 %v266
    %v671 = vpop.f32.mrb[0].mxu0
    %v672 = vadd.f32 %v575, %v671
    %v673 = vpop.f32.mrb[0].mxu0
    %v674 = vpop.f32.mrb[0].mxu0
    %v675 = vadd.f32 %v578, %v674
    %v676 = vpop.f32.mrb[0].mxu0
    %677 = vmatprep.mubr.bf16.mxu0 %v271
    %678 = vmatmul.mubr.bf16.gmra.mrb[0].mxu0 %v270
    %v679 = vpop.f32.mrb[0].mxu0
    %v680 = vadd.f32 %v583, %v679
    %v681 = vpop.f32.mrb[0].mxu0
    %v682 = vpop.f32.mrb[0].mxu0
    %v683 = vadd.f32 %v586, %v682
    %v684 = vpop.f32.mrb[0].mxu0
    %685 = vmatprep.mubr.bf16.mxu0 %v275
    %686 = vmatmul.mubr.bf16.gmra.mrb[0].mxu0 %v274
    %v687 = vpop.f32.mrb[0].mxu0
    %v688 = vadd.f32 %v591, %v687
    %v689 = vpop.f32.mrb[0].mxu0
    %v690 = vpop.f32.mrb[0].mxu0
    %v691 = vadd.f32 %v594, %v690
    %v692 = vpop.f32.mrb[0].mxu0
    %693 = vdwg.mxu0
    %v694 = vadd.f32 %v36, %v632
    %v695 = vadd.f32 %v37, %v635
    %v696 = vadd.f32 %v38, %v640
    %v697 = vadd.f32 %v39, %v643
    %v698 = vadd.f32 %v40, %v648
    %v699 = vadd.f32 %v41, %v651
    %v700 = vadd.f32 %v42, %v656
    %v701 = vadd.f32 %v43, %v659
    %v702 = vadd.f32 %v44, %v664
    %v703 = vadd.f32 %v45, %v667
    %v704 = vadd.f32 %v46, %v672
    %v705 = vadd.f32 %v47, %v675
    %v706 = vadd.f32 %v48, %v680
    %v707 = vadd.f32 %v49, %v683
    %v708 = vadd.f32 %v50, %v688
    %v709 = vadd.f32 %v51, %v691
    %710 = vst [vmem:[#allocation2] sm:$0xff] %v694
    %711 = vst [vmem:[#allocation2 + $0x8] sm:$0xff] %v695
    %712 = vst [vmem:[#allocation2 + $0x10] sm:$0xff] %v696
    %713 = vst [vmem:[#allocation2 + $0x18] sm:$0xff] %v697
    %714 = vst [vmem:[#allocation2 + $0x20] sm:$0xff] %v698
    %715 = vst [vmem:[#allocation2 + $0x28] sm:$0xff] %v699
    %716 = vst [vmem:[#allocation2 + $0x30] sm:$0xff] %v700
    %717 = vst [vmem:[#allocation2 + $0x38] sm:$0xff] %v701
    %718 = vst [vmem:[#allocation2 + $0x40] sm:$0xff] %v702
    %719 = vst [vmem:[#allocation2 + $0x48] sm:$0xff] %v703
    %720 = vst [vmem:[#allocation2 + $0x50] sm:$0xff] %v704
    %721 = vst [vmem:[#allocation2 + $0x58] sm:$0xff] %v705
    %722 = vst [vmem:[#allocation2 + $0x60] sm:$0xff] %v706
    %723 = vst [vmem:[#allocation2 + $0x68] sm:$0xff] %v707
    %724 = vst [vmem:[#allocation2 + $0x70] sm:$0xff] %v708
    %725 = vst [vmem:[#allocation2 + $0x78] sm:$0xff] %v709
    // Predicated region
    $region18: #{hyper_analysis_ex.5} parent=1 // pred_check
      %p726 = pneg %p16
    $region19: #{hyper_analysis_ex.5} parent=1 // pred_check_branch
      %728 = sbr.rel (%p726) target = $region21
    $region20: #{hyper_analysis_ex.5} parent=1 // pred_region
      %v729 = vld [vmem:[#allocation2] sm:$0xff]
      %v730 = vld [vmem:[#allocation2 + $0x8] sm:$0xff]
      %v731 = vld [vmem:[#allocation2 + $0x10] sm:$0xff]
      %v732 = vld [vmem:[#allocation2 + $0x18] sm:$0xff]
      %v733 = vld [vmem:[#allocation2 + $0x20] sm:$0xff]
      %v734 = vld [vmem:[#allocation2 + $0x28] sm:$0xff]
      %v735 = vld [vmem:[#allocation2 + $0x30] sm:$0xff]
      %v736 = vld [vmem:[#allocation2 + $0x38] sm:$0xff]
      %v737 = vld [vmem:[#allocation2 + $0x40] sm:$0xff]
      %v738 = vld [vmem:[#allocation2 + $0x48] sm:$0xff]
      %v739 = vld [vmem:[#allocation2 + $0x50] sm:$0xff]
      %v740 = vld [vmem:[#allocation2 + $0x58] sm:$0xff]
      %v741 = vld [vmem:[#allocation2 + $0x60] sm:$0xff]
      %v742 = vld [vmem:[#allocation2 + $0x68] sm:$0xff]
      %v743 = vld [vmem:[#allocation2 + $0x70] sm:$0xff]
      %v744 = vld [vmem:[#allocation2 + $0x78] sm:$0xff]
      %v745 = vld [vmem:[%s2] sm:$0x1]
      %v747 = vlaneseq
      %v748 = vshrl.u32 %v747, 7
      %v749 = vsub.s32 0, %v748
      %v750 = vrot.slane %v745, %v749
      %v752 = vadd.f32 %v729, %v750
      %v753 = vadd.f32 %v730, %v750
      %v754 = vadd.f32 %v731, %v750
      %v755 = vadd.f32 %v732, %v750
      %v756 = vadd.f32 %v733, %v750
      %v757 = vadd.f32 %v734, %v750
      %v758 = vadd.f32 %v735, %v750
      %v759 = vadd.f32 %v736, %v750
      %v760 = vadd.f32 %v737, %v750
      %v761 = vadd.f32 %v738, %v750
      %v762 = vadd.f32 %v739, %v750
      %v763 = vadd.f32 %v740, %v750
      %v764 = vadd.f32 %v741, %v750
      %v765 = vadd.f32 %v742, %v750
      %v766 = vadd.f32 %v743, %v750
      %v767 = vadd.f32 %v744, %v750
      %768 = vst [vmem:[#allocation3] sm:$0xff] %v752
      %769 = vst [vmem:[#allocation3 + $0x8] sm:$0xff] %v753
      %770 = vst [vmem:[#allocation3 + $0x10] sm:$0xff] %v754
      %771 = vst [vmem:[#allocation3 + $0x18] sm:$0xff] %v755
      %772 = vst [vmem:[#allocation3 + $0x20] sm:$0xff] %v756
      %773 = vst [vmem:[#allocation3 + $0x28] sm:$0xff] %v757
      %774 = vst [vmem:[#allocation3 + $0x30] sm:$0xff] %v758
      %775 = vst [vmem:[#allocation3 + $0x38] sm:$0xff] %v759
      %776 = vst [vmem:[#allocation3 + $0x40] sm:$0xff] %v760
      %777 = vst [vmem:[#allocation3 + $0x48] sm:$0xff] %v761
      %778 = vst [vmem:[#allocation3 + $0x50] sm:$0xff] %v762
      %779 = vst [vmem:[#allocation3 + $0x58] sm:$0xff] %v763
      %780 = vst [vmem:[#allocation3 + $0x60] sm:$0xff] %v764
      %781 = vst [vmem:[#allocation3 + $0x68] sm:$0xff] %v765
      %782 = vst [vmem:[#allocation3 + $0x70] sm:$0xff] %v766
      %783 = vst [vmem:[#allocation3 + $0x78] sm:$0xff] %v767
    $region21: #{hyper_analysis_ex.5} parent=1 // pred_fallthru
      _
    // Predicated region
    $region22: #{hyper_analysis_ex.5} parent=1 // pred_check
      _
    $region23: #{hyper_analysis_ex.5} parent=1 // pred_check_branch
      %785 = sbr.rel (0) target = $region25
    $region24: #{hyper_analysis_ex.5} parent=1 // pred_region
      %s787 = ssub.s32 2048, 2048
      %788 = vsyncadd [#allocation4], %s787
      %s789 = sshll.u32 [#allocation3], 4
      %s790 = int_to_ptr.vmem [resolvable:$true] %s789
      %795 = dma.vmem_to_hbm [thread:$0]  %s790, 2048, %s3, [#allocation4], 128, 128, 8
    $region25: #{hyper_analysis_ex.5} parent=1 // pred_fallthru
      _
    // Predicated region
    $region26: #{hyper_analysis_ex.5} parent=1 // pred_check
      _
    $region27: #{hyper_analysis_ex.5} parent=1 // pred_check_branch
      %797 = sbr.rel (0) target = $region29
    $region28: #{hyper_analysis_ex.5} parent=1 // pred_region
      %798 = dma.done [#allocation4], 2048
    $region29: #{hyper_analysis_ex.5} parent=1 // pred_fallthru
      _
    %799 = vsyncpa [#allocation4], 1

</llo_original>
